<compile_context>
chip_gen: v7x
topology: tpu7x:2x2x1
jax: 0.10.0
libtpu: 0.0.40
codegen_flags: <defaults>
</compile_context>

<pallas_src>
import functools
import numpy as np
import jax
import jax.numpy as jnp
from jax.experimental import pallas as pl
from jax.experimental.pallas import tpu as pltpu

LN_EPS = 1e-5   # nn.LayerNorm default
SA_EPS = 1e-8   # SlotAttention eps


def _ln(x, g, b, eps=LN_EPS):
    mu = jnp.mean(x, axis=-1, keepdims=True)
    var = jnp.mean((x - mu) ** 2, axis=-1, keepdims=True)
    return (x - mu) * jax.lax.rsqrt(var + eps) * g + b


def _num_tensorcore_splits():
    """Grid split factor: 2 only on chips with >1 TensorCore per device (v4/v7x)."""
    try:
        kind = jax.devices()[0].device_kind.lower()
    except Exception:
        return 1
    if "v7" in kind or "7x" in kind or "v4" in kind:
        return 2
    return 1


# ---------------------------------------------------------------------------
# Fused kernel: patch-embed (CLIP stub) + MLP + LayerNorm + SlotAttention.
# One grid step handles a block of batch elements; `feats` never leaves VMEM.
# ---------------------------------------------------------------------------
def slot_image_kernel(num_iter,
                      patches_ref, slots0_ref,
                      pw_ref, pb_ref, w1_ref, w2_ref, enc_vec_ref,
                      sa_mat_ref, sa_vec_ref,
                      img_emb_ref, attn_ref, slots_ref):
    B, Np, Cpp = patches_ref.shape
    _, S, D = slots0_ref.shape
    Dm = pw_ref.shape[1]
    BN = B * Np
    BS = B * S
    scale = D ** -0.5

    # ----- encoder: patch embedding (bf16 MXU operands, f32 accumulate) -----
    patches = patches_ref[...].reshape(BN, Cpp)
    img_emb = jnp.dot(patches, pw_ref[...],
                      preferred_element_type=jnp.float32) + pb_ref[...]
    img_emb_ref[...] = img_emb.reshape(B, Np, Dm)

    # encoder bias/LN slab: [mlp_b1 | mlp_b2 | ln_g | ln_b]
    mlp_b1 = enc_vec_ref[:, 0:D]
    mlp_b2 = enc_vec_ref[:, D:2 * D]
    ln_g = enc_vec_ref[:, 2 * D:3 * D]
    ln_b = enc_vec_ref[:, 3 * D:4 * D]

    # self.mlp (Linear -> ReLU -> Linear) + self.layer_norm, all f32
    h = jnp.maximum(jnp.dot(img_emb, w1_ref[...],
                            preferred_element_type=jnp.float32) + mlp_b1, 0.0)
    z = jnp.dot(h, w2_ref[...], preferred_element_type=jnp.float32) + mlp_b2
    feats = _ln(z, ln_g, ln_b)                       # (BN, D), VMEM-resident

    # ----- SlotAttention weights, sliced from the two packed slabs -----
    # sa_mat columns: [wq | wk wv | wir wiz win | whr whz whn | mw1 | mw2]
    wq = sa_mat_ref[:, 0:D]
    wkv = sa_mat_ref[:, D:3 * D]
    wi = sa_mat_ref[:, 3 * D:6 * D]
    wh = sa_mat_ref[:, 6 * D:9 * D]
    mw1 = sa_mat_ref[:, 9 * D:10 * D]
    mw2 = sa_mat_ref[:, 10 * D:11 * D]
    # sa_vec columns: [bq|bk bv|bi(3D)|bh(3D)|mb1|mb2|lni_g|lni_b|lns_g|lns_b|lnf_g|lnf_b]
    bq = sa_vec_ref[:, 0:D]
    bkv = sa_vec_ref[:, D:3 * D]
    bi = sa_vec_ref[:, 3 * D:6 * D]
    bh = sa_vec_ref[:, 6 * D:9 * D]
    mb1 = sa_vec_ref[:, 9 * D:10 * D]
    mb2 = sa_vec_ref[:, 10 * D:11 * D]
    lni_g = sa_vec_ref[:, 11 * D:12 * D]
    lni_b = sa_vec_ref[:, 12 * D:13 * D]
    lns_g = sa_vec_ref[:, 13 * D:14 * D]
    lns_b = sa_vec_ref[:, 14 * D:15 * D]
    lnf_g = sa_vec_ref[:, 15 * D:16 * D]
    lnf_b = sa_vec_ref[:, 16 * D:17 * D]

    # ----- loop-invariant: norm_input, fused k/v projection, bias broadcasts -----
    inp_n = _ln(feats, lni_g, lni_b)                 # norm_input
    kv = jnp.dot(inp_n, wkv, preferred_element_type=jnp.float32) + bkv
    k = kv[:, :D].reshape(B, Np, D)
    v = kv[:, D:].reshape(B, Np, D)

    bq_b = jnp.broadcast_to(bq, (BS, D))
    bi_b = jnp.broadcast_to(bi, (BS, 3 * D))
    bh_b = jnp.broadcast_to(bh, (BS, 3 * D))
    mb1_b = jnp.broadcast_to(mb1, (BS, D))
    mb2_b = jnp.broadcast_to(mb2, (BS, D))

    slots = slots0_ref[...].reshape(BS, D)
    if num_iter <= 0:      # static guard only; attn is produced in iteration 0 otherwise
        attn = jnp.zeros((B, S, Np), jnp.float32)

    # num_iter is small (3); statically unrolled.
    # TODO(synk): switch to lax.fori_loop(unroll=True) if num_iter grows past ~4.
    for _ in range(num_iter):
        slots_prev = slots
        sn = _ln(slots, lns_g, lns_b)                # norm_slots
        q = jnp.dot(sn, wq, preferred_element_type=jnp.float32) + bq_b
        # (B,S,D) x (B,Np,D) -> (B,S,Np): contracts last dims, no transpose of k
        dots = jnp.einsum('bsd,bnd->bsn', q.reshape(B, S, D), k,
                          preferred_element_type=jnp.float32) * scale
        # softmax over the slot axis (torch: dots.softmax(dim=1))
        dots = dots - jnp.max(dots, axis=1, keepdims=True)
        e = jnp.exp(dots)
        attn = e * pl.reciprocal(jnp.sum(e, axis=1, keepdims=True),
                                 approx=True) + SA_EPS
        # re-normalize over the input axis (exact divide; tiny and correctness-sensitive)
        attn = attn / jnp.sum(attn, axis=2, keepdims=True)
        updates = jnp.einsum('bsn,bnd->bsd', attn, v,
                             preferred_element_type=jnp.float32).reshape(BS, D)

        # nn.GRUCell(updates, slots_prev) with fused gate matmuls
        gi = jnp.dot(updates, wi, preferred_element_type=jnp.float32) + bi_b
        gh = jnp.dot(slots_prev, wh, preferred_element_type=jnp.float32) + bh_b
        r = jax.nn.sigmoid(gi[:, :D] + gh[:, :D])
        zg = jax.nn.sigmoid(gi[:, D:2 * D] + gh[:, D:2 * D])
        n = jnp.tanh(gi[:, 2 * D:] + r * gh[:, 2 * D:])
        slots = (1.0 - zg) * n + zg * slots_prev

        # slots = slots + mlp(norm_pre_ff(slots))
        sf = _ln(slots, lnf_g, lnf_b)
        hh = jnp.maximum(
            jnp.dot(sf, mw1, preferred_element_type=jnp.float32) + mb1_b, 0.0)
        slots = slots + jnp.dot(hh, mw2, preferred_element_type=jnp.float32) + mb2_b

    attn_ref[...] = attn
    slots_ref[...] = slots.reshape(B, S, D)


# ---------------------------------------------------------------------------
# Wrapper (glue: im2col, weight packing, slot init, grid selection)
# ---------------------------------------------------------------------------
def slot_image_forward(x, params, num_slots, num_iter, slot_dim, patch):
    N, C, H, W = x.shape
    P = patch
    Hp, Wp = H // P, W // P
    Np = Hp * Wp
    Dm = params["patch_w"].shape[1]
    Ds = slot_dim
    Cpp = C * P * P

    # im2col: NCHW -> (N, Np, C*P*P)
    # TODO(synk): at real image sizes fold this strided gather into the kernel's BlockSpec.
    patches = x.reshape(N, C, Hp, P, Wp, P).transpose(0, 2, 4, 1, 3, 5).reshape(N, Np, Cpp)
    patches_bf = patches.astype(jnp.bfloat16)
    pw_bf = params["patch_w"].astype(jnp.bfloat16)

    # slots = mu + sigma * noise  (torch.normal replaced by fixed-seed normal)
    noise = jax.random.normal(jax.random.PRNGKey(42), (N, num_slots, Ds), jnp.float32)
    slots0 = params["slots_mu"] + params["slots_sigma"] * noise

    # packed weight slabs (few DMA descriptors instead of ~20 tiny ones)
    enc_vec = jnp.concatenate(
        [params["mlp_b1"], params["mlp_b2"], params["ln_g"], params["ln_b"]], axis=1)
    sa_mat = jnp.concatenate(
        [params["sa_wq"],
         params["sa_wk"], params["sa_wv"],
         params["gru_wir"], params["gru_wiz"], params["gru_win"],
         params["gru_whr"], params["gru_whz"], params["gru_whn"],
         params["sa_mw1"], params["sa_mw2"]], axis=1)
    sa_vec = jnp.concatenate(
        [params["sa_bq"],
         params["sa_bk"], params["sa_bv"],
         params["gru_bir"], params["gru_biz"], params["gru_bin"],
         params["gru_bhr"], params["gru_bhz"], params["gru_bhn"],
         params["sa_mb1"], params["sa_mb2"],
         params["sa_lni_g"], params["sa_lni_b"],
         params["sa_lns_g"], params["sa_lns_b"],
         params["sa_lnf_g"], params["sa_lnf_b"]], axis=1)

    # grid: 1 step on single-TC chips (v5e/v6e); split over batch on 2-TC chips (v4/v7x)
    n_blocks = max(1, min(N, _num_tensorcore_splits()))
    while N % n_blocks:
        n_blocks -= 1
    b_blk = N // n_blocks

    kernel = functools.partial(slot_image_kernel, num_iter)
    img_emb, img_att, img_slots = pl.pallas_call(
        kernel,
        grid=(n_blocks,),
        in_specs=[
            pl.BlockSpec((b_blk, Np, Cpp), lambda b: (b, 0, 0)),        # patches
            pl.BlockSpec((b_blk, num_slots, Ds), lambda b: (b, 0, 0)),  # slots0
            pl.BlockSpec((Cpp, Dm), lambda b: (0, 0)),                  # patch_w (bf16)
            pl.BlockSpec((1, Dm), lambda b: (0, 0)),                    # patch_b
            pl.BlockSpec((Dm, Ds), lambda b: (0, 0)),                   # mlp_w1
            pl.BlockSpec((Ds, Ds), lambda b: (0, 0)),                   # mlp_w2
            pl.BlockSpec((1, 4 * Ds), lambda b: (0, 0)),                # enc_vec slab
            pl.BlockSpec((Ds, 11 * Ds), lambda b: (0, 0)),              # sa_mat slab
            pl.BlockSpec((1, 17 * Ds), lambda b: (0, 0)),               # sa_vec slab
        ],
        out_specs=[
            pl.BlockSpec((b_blk, Np, Dm), lambda b: (b, 0, 0)),         # img_emb
            pl.BlockSpec((b_blk, num_slots, Np), lambda b: (b, 0, 0)),  # attn
            pl.BlockSpec((b_blk, num_slots, Ds), lambda b: (b, 0, 0)),  # slots
        ],
        out_shape=(jax.ShapeDtypeStruct((N, Np, Dm), jnp.float32),
                   jax.ShapeDtypeStruct((N, num_slots, Np), jnp.float32),
                   jax.ShapeDtypeStruct((N, num_slots, Ds), jnp.float32)),
        compiler_params=pltpu.CompilerParams(
            dimension_semantics=("parallel",)),
    )(patches_bf, slots0, pw_bf, params["patch_b"],
      params["mlp_w1"], params["mlp_w2"], enc_vec, sa_mat, sa_vec)

    # (img_att, img_emb, img_slots) — same return order as the PyTorch module
    return img_att, img_emb, img_slots


# ---------------------------------------------------------------------------
# Deterministic parameter init (shapes implied by the module's __init__)
# ---------------------------------------------------------------------------
def init_params(key, C, P, Dm, Ds):
    keys = jax.random.split(key, 32)
    it = iter(keys)

    def lin(fan_in, shape):
        return (jax.random.normal(next(it), shape, jnp.float32) / np.sqrt(fan_in)).astype(jnp.float32)

    Cpp = C * P * P
    p = {}
    # CLIP stub: patch embedding
    p["patch_w"] = lin(Cpp, (Cpp, Dm))
    p["patch_b"] = jnp.zeros((1, Dm), jnp.float32)
    # self.mlp
    p["mlp_w1"] = lin(Dm, (Dm, Ds)); p["mlp_b1"] = lin(Dm, (1, Ds))
    p["mlp_w2"] = lin(Ds, (Ds, Ds)); p["mlp_b2"] = lin(Ds, (1, Ds))
    # self.layer_norm
    p["ln_g"] = jnp.ones((1, Ds), jnp.float32)
    p["ln_b"] = jnp.zeros((1, Ds), jnp.float32)
    # SlotAttention params
    p["slots_mu"] = jax.random.normal(next(it), (1, 1, Ds), jnp.float32)
    p["slots_sigma"] = jnp.abs(jax.random.normal(next(it), (1, 1, Ds), jnp.float32))
    for nm in ("lni", "lns", "lnf"):
        p[f"sa_{nm}_g"] = jnp.ones((1, Ds), jnp.float32)
        p[f"sa_{nm}_b"] = jnp.zeros((1, Ds), jnp.float32)
    for nm in ("q", "k", "v"):
        p[f"sa_w{nm}"] = lin(Ds, (Ds, Ds))
        p[f"sa_b{nm}"] = lin(Ds, (1, Ds))
    for g in ("r", "z", "n"):            # GRUCell gates, stored column-major (D_in, D_out)
        p[f"gru_wi{g}"] = lin(Ds, (Ds, Ds)); p[f"gru_bi{g}"] = lin(Ds, (1, Ds))
        p[f"gru_wh{g}"] = lin(Ds, (Ds, Ds)); p[f"gru_bh{g}"] = lin(Ds, (1, Ds))
    p["sa_mw1"] = lin(Ds, (Ds, Ds)); p["sa_mb1"] = lin(Ds, (1, Ds))
    p["sa_mw2"] = lin(Ds, (Ds, Ds)); p["sa_mb2"] = lin(Ds, (1, Ds))
    return p


if __name__ == "__main__":
    N, C, H, W = 2, 4, 16, 16      # input image, NCHW
    P = 4                          # patch size -> 16 tokens
    Dm = 32                        # mbert_out_size (CLIP hidden dim stub)
    Ds = 32                        # slot_dim
    S = 4                          # num_slots
    T = 3                          # num_iter

    key = jax.random.PRNGKey(0)
    kx, kp = jax.random.split(key)
    x = jax.random.normal(kx, (N, C, H, W), jnp.float32)
    params = init_params(kp, C, P, Dm, Ds)

    fwd = jax.jit(functools.partial(slot_image_forward,
                                    num_slots=S, num_iter=T, slot_dim=Ds, patch=P))
    img_att, img_emb, img_slots = fwd(x, params)
    jax.block_until_ready((img_att, img_emb, img_slots))

    Np = (H // P) * (W // P)
    assert img_att.shape == (N, S, Np)
    assert img_emb.shape == (N, Np, Dm)
    assert img_slots.shape == (N, S, Ds)
    assert bool(jnp.all(jnp.isfinite(img_att)))
    assert bool(jnp.all(jnp.isfinite(img_slots)))
    print("KERNEL_OK")
</pallas_src>

<mosaic_0001>
module attributes {stable_mosaic.version = 11 : i64} {
  func.func @slot_image_kernel(%arg0: i32, %arg1: memref<2x16x64xbf16, #tpu.memory_space<vmem>>, %arg2: memref<2x4x32xf32, #tpu.memory_space<vmem>>, %arg3: memref<64x32xbf16, #tpu.memory_space<vmem>>, %arg4: memref<1x32xf32, #tpu.memory_space<vmem>>, %arg5: memref<32x32xf32, #tpu.memory_space<vmem>>, %arg6: memref<32x32xf32, #tpu.memory_space<vmem>>, %arg7: memref<1x128xf32, #tpu.memory_space<vmem>>, %arg8: memref<32x352xf32, #tpu.memory_space<vmem>>, %arg9: memref<1x544xf32, #tpu.memory_space<vmem>>, %arg10: memref<2x16x32xf32, #tpu.memory_space<vmem>>, %arg11: memref<2x4x16xf32, #tpu.memory_space<vmem>>, %arg12: memref<2x4x32xf32, #tpu.memory_space<vmem>>) attributes {dimension_semantics = [#tpu.dimension_semantics<parallel>], iteration_bounds = array<i64: 1>, scalar_prefetch = 0 : i64, scratch_operands = 0 : i64, tpu.core_type = #tpu.core_type<tc>, window_params = [{transform_indices = @transform_0, window_bounds = array<i64: 2, 16, 64>}, {transform_indices = @transform_1, window_bounds = array<i64: 2, 4, 32>}, {pipeline_mode = #tpu.pipeline_mode<synchronous>, transform_indices = @transform_2, window_bounds = array<i64: 64, 32>}, {pipeline_mode = #tpu.pipeline_mode<synchronous>, transform_indices = @transform_3, window_bounds = array<i64: 1, 32>}, {pipeline_mode = #tpu.pipeline_mode<synchronous>, transform_indices = @transform_4, window_bounds = array<i64: 32, 32>}, {pipeline_mode = #tpu.pipeline_mode<synchronous>, transform_indices = @transform_5, window_bounds = array<i64: 32, 32>}, {pipeline_mode = #tpu.pipeline_mode<synchronous>, transform_indices = @transform_6, window_bounds = array<i64: 1, 128>}, {pipeline_mode = #tpu.pipeline_mode<synchronous>, transform_indices = @transform_7, window_bounds = array<i64: 32, 352>}, {pipeline_mode = #tpu.pipeline_mode<synchronous>, transform_indices = @transform_8, window_bounds = array<i64: 1, 544>}, {transform_indices = @transform_9, window_bounds = array<i64: 2, 16, 32>}, {transform_indices = @transform_10, window_bounds = array<i64: 2, 4, 16>}, {transform_indices = @transform_11, window_bounds = array<i64: 2, 4, 32>}]} {
    %c0 = arith.constant 0 : index
    %c0_0 = arith.constant 0 : index
    %c0_1 = arith.constant 0 : index
    %0 = vector.load %arg1[%c0, %c0_0, %c0_1] : memref<2x16x64xbf16, #tpu.memory_space<vmem>>, vector<2x16x64xbf16>
    %1 = vector.shape_cast %0 : vector<2x16x64xbf16> to vector<32x64xbf16>
    %c0_2 = arith.constant 0 : index
    %c0_3 = arith.constant 0 : index
    %2 = vector.load %arg3[%c0_2, %c0_3] : memref<64x32xbf16, #tpu.memory_space<vmem>>, vector<64x32xbf16>
    %cst = arith.constant dense<0.000000e+00> : vector<32x32xf32>
    %3 = tpu.matmul %1, %2, %cst {dimension_numbers = #tpu.dot_dimension_numbers<[1], [0], [0], [1], [0, 0, 1, 1], [], []>} : vector<32x64xbf16>, vector<64x32xbf16>, vector<32x32xf32> -> vector<32x32xf32>
    %c0_4 = arith.constant 0 : index
    %c0_5 = arith.constant 0 : index
    %4 = vector.load %arg4[%c0_4, %c0_5] : memref<1x32xf32, #tpu.memory_space<vmem>>, vector<1x32xf32>
    %5 = vector.broadcast %4 : vector<1x32xf32> to vector<32x32xf32>
    %6 = arith.addf %3, %5 : vector<32x32xf32>
    %7 = vector.shape_cast %6 : vector<32x32xf32> to vector<2x16x32xf32>
    %c0_6 = arith.constant 0 : index
    %c0_7 = arith.constant 0 : index
    %c0_8 = arith.constant 0 : index
    %8 = vector.load %arg10[%c0_6, %c0_7, %c0_8] : memref<2x16x32xf32, #tpu.memory_space<vmem>>, vector<2x16x32xf32>
    tpu.vector_store %arg10[%c0_6, %c0_7, %c0_8], %7 {strides = array<i32>} : memref<2x16x32xf32, #tpu.memory_space<vmem>>, vector<2x16x32xf32>,
    %c0_9 = arith.constant 0 : index
    %c0_10 = arith.constant 0 : index
    %9 = vector.load %arg7[%c0_9, %c0_10] : memref<1x128xf32, #tpu.memory_space<vmem>>, vector<1x32xf32>
    %c0_11 = arith.constant 0 : index
    %c32 = arith.constant 32 : index
    %10 = vector.load %arg7[%c0_11, %c32] : memref<1x128xf32, #tpu.memory_space<vmem>>, vector<1x32xf32>
    %c0_12 = arith.constant 0 : index
    %c64 = arith.constant 64 : index
    %11 = vector.load %arg7[%c0_12, %c64] : memref<1x128xf32, #tpu.memory_space<vmem>>, vector<1x32xf32>
    %c0_13 = arith.constant 0 : index
    %c96 = arith.constant 96 : index
    %12 = vector.load %arg7[%c0_13, %c96] : memref<1x128xf32, #tpu.memory_space<vmem>>, vector<1x32xf32>
    %c0_14 = arith.constant 0 : index
    %c0_15 = arith.constant 0 : index
    %13 = vector.load %arg5[%c0_14, %c0_15] : memref<32x32xf32, #tpu.memory_space<vmem>>, vector<32x32xf32>
    %cst_16 = arith.constant dense<0.000000e+00> : vector<32x32xf32>
    %14 = tpu.matmul %6, %13, %cst_16 {dimension_numbers = #tpu.dot_dimension_numbers<[1], [0], [0], [1], [0, 0, 1, 1], [], []>} : vector<32x32xf32>, vector<32x32xf32>, vector<32x32xf32> -> vector<32x32xf32>
    %15 = vector.broadcast %9 : vector<1x32xf32> to vector<32x32xf32>
    %16 = arith.addf %14, %15 : vector<32x32xf32>
    %cst_17 = arith.constant 0.000000e+00 : f32
    %17 = vector.broadcast %cst_17 : f32 to vector<32x32xf32>
    %18 = arith.maximumf %16, %17 : vector<32x32xf32>
    %c0_18 = arith.constant 0 : index
    %c0_19 = arith.constant 0 : index
    %19 = vector.load %arg6[%c0_18, %c0_19] : memref<32x32xf32, #tpu.memory_space<vmem>>, vector<32x32xf32>
    %cst_20 = arith.constant dense<0.000000e+00> : vector<32x32xf32>
    %20 = tpu.matmul %18, %19, %cst_20 {dimension_numbers = #tpu.dot_dimension_numbers<[1], [0], [0], [1], [0, 0, 1, 1], [], []>} : vector<32x32xf32>, vector<32x32xf32>, vector<32x32xf32> -> vector<32x32xf32>
    %21 = vector.broadcast %10 : vector<1x32xf32> to vector<32x32xf32>
    %22 = arith.addf %20, %21 : vector<32x32xf32>
    %cst_21 = arith.constant dense<0.000000e+00> : vector<32xf32>
    %23 = vector.multi_reduction <add>, %22, %cst_21 [1] : vector<32x32xf32> to vector<32xf32>
    %24 = vector.shape_cast %23 : vector<32xf32> to vector<32x1xf32>
    %cst_22 = arith.constant 3.200000e+01 : f32
    %25 = vector.broadcast %cst_22 : f32 to vector<32x1xf32>
    %26 = arith.divf %24, %25 : vector<32x1xf32>
    %27 = vector.broadcast %26 : vector<32x1xf32> to vector<32x32xf32>
    %28 = arith.subf %22, %27 : vector<32x32xf32>
    %29 = arith.mulf %28, %28 : vector<32x32xf32>
    %cst_23 = arith.constant dense<0.000000e+00> : vector<32xf32>
    %30 = vector.multi_reduction <add>, %29, %cst_23 [1] : vector<32x32xf32> to vector<32xf32>
    %31 = vector.shape_cast %30 : vector<32xf32> to vector<32x1xf32>
    %cst_24 = arith.constant 3.200000e+01 : f32
    %32 = vector.broadcast %cst_24 : f32 to vector<32x1xf32>
    %33 = arith.divf %31, %32 : vector<32x1xf32>
    %34 = vector.broadcast %26 : vector<32x1xf32> to vector<32x32xf32>
    %35 = arith.subf %22, %34 : vector<32x32xf32>
    %cst_25 = arith.constant 9.99999974E-6 : f32
    %36 = vector.broadcast %cst_25 : f32 to vector<32x1xf32>
    %37 = arith.addf %33, %36 : vector<32x1xf32>
    %38 = math.rsqrt %37 : vector<32x1xf32>
    %39 = vector.broadcast %38 : vector<32x1xf32> to vector<32x32xf32>
    %40 = arith.mulf %35, %39 : vector<32x32xf32>
    %41 = vector.broadcast %11 : vector<1x32xf32> to vector<32x32xf32>
    %42 = arith.mulf %40, %41 : vector<32x32xf32>
    %43 = vector.broadcast %12 : vector<1x32xf32> to vector<32x32xf32>
    %44 = arith.addf %42, %43 : vector<32x32xf32>
    %c0_26 = arith.constant 0 : index
    %c0_27 = arith.constant 0 : index
    %45 = vector.load %arg8[%c0_26, %c0_27] : memref<32x352xf32, #tpu.memory_space<vmem>>, vector<32x32xf32>
    %c0_28 = arith.constant 0 : index
    %c32_29 = arith.constant 32 : index
    %46 = vector.load %arg8[%c0_28, %c32_29] : memref<32x352xf32, #tpu.memory_space<vmem>>, vector<32x64xf32>
    %c0_30 = arith.constant 0 : index
    %c96_31 = arith.constant 96 : index
    %47 = vector.load %arg8[%c0_30, %c96_31] : memref<32x352xf32, #tpu.memory_space<vmem>>, vector<32x96xf32>
    %c0_32 = arith.constant 0 : index
    %c192 = arith.constant 192 : index
    %48 = vector.load %arg8[%c0_32, %c192] : memref<32x352xf32, #tpu.memory_space<vmem>>, vector<32x96xf32>
    %c0_33 = arith.constant 0 : index
    %c288 = arith.constant 288 : index
    %49 = vector.load %arg8[%c0_33, %c288] : memref<32x352xf32, #tpu.memory_space<vmem>>, vector<32x32xf32>
    %c0_34 = arith.constant 0 : index
    %c320 = arith.constant 320 : index
    %50 = vector.load %arg8[%c0_34, %c320] : memref<32x352xf32, #tpu.memory_space<vmem>>, vector<32x32xf32>
    %c0_35 = arith.constant 0 : index
    %c0_36 = arith.constant 0 : index
    %51 = vector.load %arg9[%c0_35, %c0_36] : memref<1x544xf32, #tpu.memory_space<vmem>>, vector<1x32xf32>
    %c0_37 = arith.constant 0 : index
    %c32_38 = arith.constant 32 : index
    %52 = vector.load %arg9[%c0_37, %c32_38] : memref<1x544xf32, #tpu.memory_space<vmem>>, vector<1x64xf32>
    %c0_39 = arith.constant 0 : index
    %c96_40 = arith.constant 96 : index
    %53 = vector.load %arg9[%c0_39, %c96_40] : memref<1x544xf32, #tpu.memory_space<vmem>>, vector<1x96xf32>
    %c0_41 = arith.constant 0 : index
    %c192_42 = arith.constant 192 : index
    %54 = vector.load %arg9[%c0_41, %c192_42] : memref<1x544xf32, #tpu.memory_space<vmem>>, vector<1x96xf32>
    %c0_43 = arith.constant 0 : index
    %c288_44 = arith.constant 288 : index
    %55 = vector.load %arg9[%c0_43, %c288_44] : memref<1x544xf32, #tpu.memory_space<vmem>>, vector<1x32xf32>
    %c0_45 = arith.constant 0 : index
    %c320_46 = arith.constant 320 : index
    %56 = vector.load %arg9[%c0_45, %c320_46] : memref<1x544xf32, #tpu.memory_space<vmem>>, vector<1x32xf32>
    %c0_47 = arith.constant 0 : index
    %c352 = arith.constant 352 : index
    %57 = vector.load %arg9[%c0_47, %c352] : memref<1x544xf32, #tpu.memory_space<vmem>>, vector<1x32xf32>
    %c0_48 = arith.constant 0 : index
    %c384 = arith.constant 384 : index
    %58 = vector.load %arg9[%c0_48, %c384] : memref<1x544xf32, #tpu.memory_space<vmem>>, vector<1x32xf32>
    %c0_49 = arith.constant 0 : index
    %c416 = arith.constant 416 : index
    %59 = vector.load %arg9[%c0_49, %c416] : memref<1x544xf32, #tpu.memory_space<vmem>>, vector<1x32xf32>
    %c0_50 = arith.constant 0 : index
    %c448 = arith.constant 448 : index
    %60 = vector.load %arg9[%c0_50, %c448] : memref<1x544xf32, #tpu.memory_space<vmem>>, vector<1x32xf32>
    %c0_51 = arith.constant 0 : index
    %c480 = arith.constant 480 : index
    %61 = vector.load %arg9[%c0_51, %c480] : memref<1x544xf32, #tpu.memory_space<vmem>>, vector<1x32xf32>
    %c0_52 = arith.constant 0 : index
    %c512 = arith.constant 512 : index
    %62 = vector.load %arg9[%c0_52, %c512] : memref<1x544xf32, #tpu.memory_space<vmem>>, vector<1x32xf32>
    %cst_53 = arith.constant dense<0.000000e+00> : vector<32xf32>
    %63 = vector.multi_reduction <add>, %44, %cst_53 [1] : vector<32x32xf32> to vector<32xf32>
    %64 = vector.shape_cast %63 : vector<32xf32> to vector<32x1xf32>
    %cst_54 = arith.constant 3.200000e+01 : f32
    %65 = vector.broadcast %cst_54 : f32 to vector<32x1xf32>
    %66 = arith.divf %64, %65 : vector<32x1xf32>
    %67 = vector.broadcast %66 : vector<32x1xf32> to vector<32x32xf32>
    %68 = arith.subf %44, %67 : vector<32x32xf32>
    %69 = arith.mulf %68, %68 : vector<32x32xf32>
    %cst_55 = arith.constant dense<0.000000e+00> : vector<32xf32>
    %70 = vector.multi_reduction <add>, %69, %cst_55 [1] : vector<32x32xf32> to vector<32xf32>
    %71 = vector.shape_cast %70 : vector<32xf32> to vector<32x1xf32>
    %cst_56 = arith.constant 3.200000e+01 : f32
    %72 = vector.broadcast %cst_56 : f32 to vector<32x1xf32>
    %73 = arith.divf %71, %72 : vector<32x1xf32>
    %74 = vector.broadcast %66 : vector<32x1xf32> to vector<32x32xf32>
    %75 = arith.subf %44, %74 : vector<32x32xf32>
    %cst_57 = arith.constant 9.99999974E-6 : f32
    %76 = vector.broadcast %cst_57 : f32 to vector<32x1xf32>
    %77 = arith.addf %73, %76 : vector<32x1xf32>
    %78 = math.rsqrt %77 : vector<32x1xf32>
    %79 = vector.broadcast %78 : vector<32x1xf32> to vector<32x32xf32>
    %80 = arith.mulf %75, %79 : vector<32x32xf32>
    %81 = vector.broadcast %57 : vector<1x32xf32> to vector<32x32xf32>
    %82 = arith.mulf %80, %81 : vector<32x32xf32>
    %83 = vector.broadcast %58 : vector<1x32xf32> to vector<32x32xf32>
    %84 = arith.addf %82, %83 : vector<32x32xf32>
    %cst_58 = arith.constant dense<0.000000e+00> : vector<32x64xf32>
    %85 = tpu.matmul %84, %46, %cst_58 {dimension_numbers = #tpu.dot_dimension_numbers<[1], [0], [0], [1], [0, 0, 1, 1], [], []>} : vector<32x32xf32>, vector<32x64xf32>, vector<32x64xf32> -> vector<32x64xf32>
    %86 = vector.broadcast %52 : vector<1x64xf32> to vector<32x64xf32>
    %87 = arith.addf %85, %86 : vector<32x64xf32>
    %88 = vector.extract_strided_slice %87 {offsets = [0, 0], sizes = [32, 32], strides = [1, 1]} : vector<32x64xf32> to vector<32x32xf32>
    %89 = vector.shape_cast %88 : vector<32x32xf32> to vector<2x16x32xf32>
    %90 = vector.extract_strided_slice %87 {offsets = [0, 32], sizes = [32, 32], strides = [1, 1]} : vector<32x64xf32> to vector<32x32xf32>
    %91 = vector.shape_cast %90 : vector<32x32xf32> to vector<2x16x32xf32>
    %92 = vector.shape_cast %51 : vector<1x32xf32> to vector<1x32xf32>
    %93 = vector.broadcast %92 : vector<1x32xf32> to vector<8x32xf32>
    %94 = vector.shape_cast %53 : vector<1x96xf32> to vector<1x96xf32>
    %95 = vector.broadcast %94 : vector<1x96xf32> to vector<8x96xf32>
    %96 = vector.shape_cast %54 : vector<1x96xf32> to vector<1x96xf32>
    %97 = vector.broadcast %96 : vector<1x96xf32> to vector<8x96xf32>
    %98 = vector.shape_cast %55 : vector<1x32xf32> to vector<1x32xf32>
    %99 = vector.broadcast %98 : vector<1x32xf32> to vector<8x32xf32>
    %100 = vector.shape_cast %56 : vector<1x32xf32> to vector<1x32xf32>
    %101 = vector.broadcast %100 : vector<1x32xf32> to vector<8x32xf32>
    %c0_59 = arith.constant 0 : index
    %c0_60 = arith.constant 0 : index
    %c0_61 = arith.constant 0 : index
    %102 = vector.load %arg2[%c0_59, %c0_60, %c0_61] : memref<2x4x32xf32, #tpu.memory_space<vmem>>, vector<2x4x32xf32>
    %103 = vector.shape_cast %102 : vector<2x4x32xf32> to vector<8x32xf32>
    %cst_62 = arith.constant dense<0.000000e+00> : vector<8xf32>
    %104 = vector.multi_reduction <add>, %103, %cst_62 [1] : vector<8x32xf32> to vector<8xf32>
    %105 = vector.shape_cast %104 : vector<8xf32> to vector<8x1xf32>
    %cst_63 = arith.constant 3.200000e+01 : f32
    %106 = vector.broadcast %cst_63 : f32 to vector<8x1xf32>
    %107 = arith.divf %105, %106 : vector<8x1xf32>
    %108 = vector.broadcast %107 : vector<8x1xf32> to vector<8x32xf32>
    %109 = arith.subf %103, %108 : vector<8x32xf32>
    %110 = arith.mulf %109, %109 : vector<8x32xf32>
    %cst_64 = arith.constant dense<0.000000e+00> : vector<8xf32>
    %111 = vector.multi_reduction <add>, %110, %cst_64 [1] : vector<8x32xf32> to vector<8xf32>
    %112 = vector.shape_cast %111 : vector<8xf32> to vector<8x1xf32>
    %cst_65 = arith.constant 3.200000e+01 : f32
    %113 = vector.broadcast %cst_65 : f32 to vector<8x1xf32>
    %114 = arith.divf %112, %113 : vector<8x1xf32>
    %115 = vector.broadcast %107 : vector<8x1xf32> to vector<8x32xf32>
    %116 = arith.subf %103, %115 : vector<8x32xf32>
    %cst_66 = arith.constant 9.99999974E-6 : f32
    %117 = vector.broadcast %cst_66 : f32 to vector<8x1xf32>
    %118 = arith.addf %114, %117 : vector<8x1xf32>
    %119 = math.rsqrt %118 : vector<8x1xf32>
    %120 = vector.broadcast %119 : vector<8x1xf32> to vector<8x32xf32>
    %121 = arith.mulf %116, %120 : vector<8x32xf32>
    %122 = vector.broadcast %59 : vector<1x32xf32> to vector<8x32xf32>
    %123 = arith.mulf %121, %122 : vector<8x32xf32>
    %124 = vector.broadcast %60 : vector<1x32xf32> to vector<8x32xf32>
    %125 = arith.addf %123, %124 : vector<8x32xf32>
    %cst_67 = arith.constant dense<0.000000e+00> : vector<8x32xf32>
    %126 = tpu.matmul %125, %45, %cst_67 {dimension_numbers = #tpu.dot_dimension_numbers<[1], [0], [0], [1], [0, 0, 1, 1], [], []>} : vector<8x32xf32>, vector<32x32xf32>, vector<8x32xf32> -> vector<8x32xf32>
    %127 = arith.addf %126, %93 : vector<8x32xf32>
    %128 = vector.shape_cast %127 : vector<8x32xf32> to vector<2x4x32xf32>
    "tpu.trace_start"() <{level = 10 : i32, message = "bsd,bnd->bsn"}> : () -> ()
    %cst_68 = arith.constant dense<0.000000e+00> : vector<2x4x16xf32>
    %129 = tpu.matmul %128, %89, %cst_68 {dimension_numbers = #tpu.dot_dimension_numbers<[2], [2], [1], [1], [0, 0, 0, 1, 1, 1], [0], [0]>} : vector<2x4x32xf32>, vector<2x16x32xf32>, vector<2x4x16xf32> -> vector<2x4x16xf32>
    "tpu.trace_stop"() : () -> ()
    %cst_69 = arith.constant 0.176776692 : f32
    %130 = vector.broadcast %cst_69 : f32 to vector<2x4x16xf32>
    %131 = arith.mulf %129, %130 : vector<2x4x16xf32>
    %cst_70 = arith.constant dense<0xFF800000> : vector<2x16xf32>
    %132 = vector.multi_reduction <maximumf>, %131, %cst_70 [1] : vector<2x4x16xf32> to vector<2x16xf32>
    %133 = vector.shape_cast %132 : vector<2x16xf32> to vector<2x1x16xf32>
    %134 = vector.broadcast %133 : vector<2x1x16xf32> to vector<2x4x16xf32>
    %135 = arith.subf %131, %134 : vector<2x4x16xf32>
    %136 = math.exp %135 : vector<2x4x16xf32>
    %cst_71 = arith.constant dense<0.000000e+00> : vector<2x16xf32>
    %137 = vector.multi_reduction <add>, %136, %cst_71 [1] : vector<2x4x16xf32> to vector<2x16xf32>
    %138 = vector.shape_cast %137 : vector<2x16xf32> to vector<2x1x16xf32>
    %139 = tpu.reciprocal %138 {approx = true} : vector<2x1x16xf32> -> vector<2x1x16xf32>
    %140 = vector.broadcast %139 : vector<2x1x16xf32> to vector<2x4x16xf32>
    %141 = arith.mulf %136, %140 : vector<2x4x16xf32>
    %cst_72 = arith.constant 9.99999993E-9 : f32
    %142 = vector.broadcast %cst_72 : f32 to vector<2x4x16xf32>
    %143 = arith.addf %141, %142 : vector<2x4x16xf32>
    %cst_73 = arith.constant dense<0.000000e+00> : vector<2x4xf32>
    %144 = vector.multi_reduction <add>, %143, %cst_73 [2] : vector<2x4x16xf32> to vector<2x4xf32>
    %145 = vector.shape_cast %144 : vector<2x4xf32> to vector<2x4x1xf32>
    %146 = vector.broadcast %145 : vector<2x4x1xf32> to vector<2x4x16xf32>
    %147 = arith.divf %143, %146 : vector<2x4x16xf32>
    "tpu.trace_start"() <{level = 10 : i32, message = "bsn,bnd->bsd"}> : () -> ()
    %cst_74 = arith.constant dense<0.000000e+00> : vector<2x4x32xf32>
    %148 = tpu.matmul %147, %91, %cst_74 {dimension_numbers = #tpu.dot_dimension_numbers<[2], [1], [1], [2], [0, 0, 0, 1, 1, 2], [0], [0]>} : vector<2x4x16xf32>, vector<2x16x32xf32>, vector<2x4x32xf32> -> vector<2x4x32xf32>
    "tpu.trace_stop"() : () -> ()
    %149 = vector.shape_cast %148 : vector<2x4x32xf32> to vector<8x32xf32>
    %cst_75 = arith.constant dense<0.000000e+00> : vector<8x96xf32>
    %150 = tpu.matmul %149, %47, %cst_75 {dimension_numbers = #tpu.dot_dimension_numbers<[1], [0], [0], [1], [0, 0, 1, 1], [], []>} : vector<8x32xf32>, vector<32x96xf32>, vector<8x96xf32> -> vector<8x96xf32>
    %151 = arith.addf %150, %95 : vector<8x96xf32>
    %cst_76 = arith.constant dense<0.000000e+00> : vector<8x96xf32>
    %152 = tpu.matmul %103, %48, %cst_76 {dimension_numbers = #tpu.dot_dimension_numbers<[1], [0], [0], [1], [0, 0, 1, 1], [], []>} : vector<8x32xf32>, vector<32x96xf32>, vector<8x96xf32> -> vector<8x96xf32>
    %153 = arith.addf %152, %97 : vector<8x96xf32>
    %154 = vector.extract_strided_slice %151 {offsets = [0, 0], sizes = [8, 32], strides = [1, 1]} : vector<8x96xf32> to vector<8x32xf32>
    %155 = vector.extract_strided_slice %153 {offsets = [0, 0], sizes = [8, 32], strides = [1, 1]} : vector<8x96xf32> to vector<8x32xf32>
    %156 = arith.addf %154, %155 : vector<8x32xf32>
    %157 = arith.negf %156 : vector<8x32xf32>
    %158 = math.exp %157 : vector<8x32xf32>
    %cst_77 = arith.constant 1.000000e+00 : f32
    %159 = vector.broadcast %cst_77 : f32 to vector<8x32xf32>
    %160 = arith.addf %159, %158 : vector<8x32xf32>
    %161 = arith.divf %159, %160 : vector<8x32xf32>
    %162 = vector.extract_strided_slice %151 {offsets = [0, 32], sizes = [8, 32], strides = [1, 1]} : vector<8x96xf32> to vector<8x32xf32>
    %163 = vector.extract_strided_slice %153 {offsets = [0, 32], sizes = [8, 32], strides = [1, 1]} : vector<8x96xf32> to vector<8x32xf32>
    %164 = arith.addf %162, %163 : vector<8x32xf32>
    %165 = arith.negf %164 : vector<8x32xf32>
    %166 = math.exp %165 : vector<8x32xf32>
    %cst_78 = arith.constant 1.000000e+00 : f32
    %167 = vector.broadcast %cst_78 : f32 to vector<8x32xf32>
    %168 = arith.addf %167, %166 : vector<8x32xf32>
    %169 = arith.divf %167, %168 : vector<8x32xf32>
    %170 = vector.extract_strided_slice %151 {offsets = [0, 64], sizes = [8, 32], strides = [1, 1]} : vector<8x96xf32> to vector<8x32xf32>
    %171 = vector.extract_strided_slice %153 {offsets = [0, 64], sizes = [8, 32], strides = [1, 1]} : vector<8x96xf32> to vector<8x32xf32>
    %172 = arith.mulf %161, %171 : vector<8x32xf32>
    %173 = arith.addf %170, %172 : vector<8x32xf32>
    %174 = math.tanh %173 : vector<8x32xf32>
    %cst_79 = arith.constant 1.000000e+00 : f32
    %175 = vector.broadcast %cst_79 : f32 to vector<8x32xf32>
    %176 = arith.subf %175, %169 : vector<8x32xf32>
    %177 = arith.mulf %176, %174 : vector<8x32xf32>
    %178 = arith.mulf %169, %103 : vector<8x32xf32>
    %179 = arith.addf %177, %178 : vector<8x32xf32>
    %cst_80 = arith.constant dense<0.000000e+00> : vector<8xf32>
    %180 = vector.multi_reduction <add>, %179, %cst_80 [1] : vector<8x32xf32> to vector<8xf32>
    %181 = vector.shape_cast %180 : vector<8xf32> to vector<8x1xf32>
    %cst_81 = arith.constant 3.200000e+01 : f32
    %182 = vector.broadcast %cst_81 : f32 to vector<8x1xf32>
    %183 = arith.divf %181, %182 : vector<8x1xf32>
    %184 = vector.broadcast %183 : vector<8x1xf32> to vector<8x32xf32>
    %185 = arith.subf %179, %184 : vector<8x32xf32>
    %186 = arith.mulf %185, %185 : vector<8x32xf32>
    %cst_82 = arith.constant dense<0.000000e+00> : vector<8xf32>
    %187 = vector.multi_reduction <add>, %186, %cst_82 [1] : vector<8x32xf32> to vector<8xf32>
    %188 = vector.shape_cast %187 : vector<8xf32> to vector<8x1xf32>
    %cst_83 = arith.constant 3.200000e+01 : f32
    %189 = vector.broadcast %cst_83 : f32 to vector<8x1xf32>
    %190 = arith.divf %188, %189 : vector<8x1xf32>
    %191 = vector.broadcast %183 : vector<8x1xf32> to vector<8x32xf32>
    %192 = arith.subf %179, %191 : vector<8x32xf32>
    %cst_84 = arith.constant 9.99999974E-6 : f32
    %193 = vector.broadcast %cst_84 : f32 to vector<8x1xf32>
    %194 = arith.addf %190, %193 : vector<8x1xf32>
    %195 = math.rsqrt %194 : vector<8x1xf32>
    %196 = vector.broadcast %195 : vector<8x1xf32> to vector<8x32xf32>
    %197 = arith.mulf %192, %196 : vector<8x32xf32>
    %198 = vector.broadcast %61 : vector<1x32xf32> to vector<8x32xf32>
    %199 = arith.mulf %197, %198 : vector<8x32xf32>
    %200 = vector.broadcast %62 : vector<1x32xf32> to vector<8x32xf32>
    %201 = arith.addf %199, %200 : vector<8x32xf32>
    %cst_85 = arith.constant dense<0.000000e+00> : vector<8x32xf32>
    %202 = tpu.matmul %201, %49, %cst_85 {dimension_numbers = #tpu.dot_dimension_numbers<[1], [0], [0], [1], [0, 0, 1, 1], [], []>} : vector<8x32xf32>, vector<32x32xf32>, vector<8x32xf32> -> vector<8x32xf32>
    %203 = arith.addf %202, %99 : vector<8x32xf32>
    %cst_86 = arith.constant 0.000000e+00 : f32
    %204 = vector.broadcast %cst_86 : f32 to vector<8x32xf32>
    %205 = arith.maximumf %203, %204 : vector<8x32xf32>
    %cst_87 = arith.constant dense<0.000000e+00> : vector<8x32xf32>
    %206 = tpu.matmul %205, %50, %cst_87 {dimension_numbers = #tpu.dot_dimension_numbers<[1], [0], [0], [1], [0, 0, 1, 1], [], []>} : vector<8x32xf32>, vector<32x32xf32>, vector<8x32xf32> -> vector<8x32xf32>
    %207 = arith.addf %179, %206 : vector<8x32xf32>
    %208 = arith.addf %207, %101 : vector<8x32xf32>
    %cst_88 = arith.constant dense<0.000000e+00> : vector<8xf32>
    %209 = vector.multi_reduction <add>, %208, %cst_88 [1] : vector<8x32xf32> to vector<8xf32>
    %210 = vector.shape_cast %209 : vector<8xf32> to vector<8x1xf32>
    %cst_89 = arith.constant 3.200000e+01 : f32
    %211 = vector.broadcast %cst_89 : f32 to vector<8x1xf32>
    %212 = arith.divf %210, %211 : vector<8x1xf32>
    %213 = vector.broadcast %212 : vector<8x1xf32> to vector<8x32xf32>
    %214 = arith.subf %208, %213 : vector<8x32xf32>
    %215 = arith.mulf %214, %214 : vector<8x32xf32>
    %cst_90 = arith.constant dense<0.000000e+00> : vector<8xf32>
    %216 = vector.multi_reduction <add>, %215, %cst_90 [1] : vector<8x32xf32> to vector<8xf32>
    %217 = vector.shape_cast %216 : vector<8xf32> to vector<8x1xf32>
    %cst_91 = arith.constant 3.200000e+01 : f32
    %218 = vector.broadcast %cst_91 : f32 to vector<8x1xf32>
    %219 = arith.divf %217, %218 : vector<8x1xf32>
    %220 = vector.broadcast %212 : vector<8x1xf32> to vector<8x32xf32>
    %221 = arith.subf %208, %220 : vector<8x32xf32>
    %cst_92 = arith.constant 9.99999974E-6 : f32
    %222 = vector.broadcast %cst_92 : f32 to vector<8x1xf32>
    %223 = arith.addf %219, %222 : vector<8x1xf32>
    %224 = math.rsqrt %223 : vector<8x1xf32>
    %225 = vector.broadcast %224 : vector<8x1xf32> to vector<8x32xf32>
    %226 = arith.mulf %221, %225 : vector<8x32xf32>
    %227 = vector.broadcast %59 : vector<1x32xf32> to vector<8x32xf32>
    %228 = arith.mulf %226, %227 : vector<8x32xf32>
    %229 = vector.broadcast %60 : vector<1x32xf32> to vector<8x32xf32>
    %230 = arith.addf %228, %229 : vector<8x32xf32>
    %cst_93 = arith.constant dense<0.000000e+00> : vector<8x32xf32>
    %231 = tpu.matmul %230, %45, %cst_93 {dimension_numbers = #tpu.dot_dimension_numbers<[1], [0], [0], [1], [0, 0, 1, 1], [], []>} : vector<8x32xf32>, vector<32x32xf32>, vector<8x32xf32> -> vector<8x32xf32>
    %232 = arith.addf %231, %93 : vector<8x32xf32>
    %233 = vector.shape_cast %232 : vector<8x32xf32> to vector<2x4x32xf32>
    "tpu.trace_start"() <{level = 10 : i32, message = "bsd,bnd->bsn"}> : () -> ()
    %cst_94 = arith.constant dense<0.000000e+00> : vector<2x4x16xf32>
    %234 = tpu.matmul %233, %89, %cst_94 {dimension_numbers = #tpu.dot_dimension_numbers<[2], [2], [1], [1], [0, 0, 0, 1, 1, 1], [0], [0]>} : vector<2x4x32xf32>, vector<2x16x32xf32>, vector<2x4x16xf32> -> vector<2x4x16xf32>
    "tpu.trace_stop"() : () -> ()
    %cst_95 = arith.constant 0.176776692 : f32
    %235 = vector.broadcast %cst_95 : f32 to vector<2x4x16xf32>
    %236 = arith.mulf %234, %235 : vector<2x4x16xf32>
    %cst_96 = arith.constant dense<0xFF800000> : vector<2x16xf32>
    %237 = vector.multi_reduction <maximumf>, %236, %cst_96 [1] : vector<2x4x16xf32> to vector<2x16xf32>
    %238 = vector.shape_cast %237 : vector<2x16xf32> to vector<2x1x16xf32>
    %239 = vector.broadcast %238 : vector<2x1x16xf32> to vector<2x4x16xf32>
    %240 = arith.subf %236, %239 : vector<2x4x16xf32>
    %241 = math.exp %240 : vector<2x4x16xf32>
    %cst_97 = arith.constant dense<0.000000e+00> : vector<2x16xf32>
    %242 = vector.multi_reduction <add>, %241, %cst_97 [1] : vector<2x4x16xf32> to vector<2x16xf32>
    %243 = vector.shape_cast %242 : vector<2x16xf32> to vector<2x1x16xf32>
    %244 = tpu.reciprocal %243 {approx = true} : vector<2x1x16xf32> -> vector<2x1x16xf32>
    %245 = vector.broadcast %244 : vector<2x1x16xf32> to vector<2x4x16xf32>
    %246 = arith.mulf %241, %245 : vector<2x4x16xf32>
    %cst_98 = arith.constant 9.99999993E-9 : f32
    %247 = vector.broadcast %cst_98 : f32 to vector<2x4x16xf32>
    %248 = arith.addf %246, %247 : vector<2x4x16xf32>
    %cst_99 = arith.constant dense<0.000000e+00> : vector<2x4xf32>
    %249 = vector.multi_reduction <add>, %248, %cst_99 [2] : vector<2x4x16xf32> to vector<2x4xf32>
    %250 = vector.shape_cast %249 : vector<2x4xf32> to vector<2x4x1xf32>
    %251 = vector.broadcast %250 : vector<2x4x1xf32> to vector<2x4x16xf32>
    %252 = arith.divf %248, %251 : vector<2x4x16xf32>
    "tpu.trace_start"() <{level = 10 : i32, message = "bsn,bnd->bsd"}> : () -> ()
    %cst_100 = arith.constant dense<0.000000e+00> : vector<2x4x32xf32>
    %253 = tpu.matmul %252, %91, %cst_100 {dimension_numbers = #tpu.dot_dimension_numbers<[2], [1], [1], [2], [0, 0, 0, 1, 1, 2], [0], [0]>} : vector<2x4x16xf32>, vector<2x16x32xf32>, vector<2x4x32xf32> -> vector<2x4x32xf32>
    "tpu.trace_stop"() : () -> ()
    %254 = vector.shape_cast %253 : vector<2x4x32xf32> to vector<8x32xf32>
    %cst_101 = arith.constant dense<0.000000e+00> : vector<8x96xf32>
    %255 = tpu.matmul %254, %47, %cst_101 {dimension_numbers = #tpu.dot_dimension_numbers<[1], [0], [0], [1], [0, 0, 1, 1], [], []>} : vector<8x32xf32>, vector<32x96xf32>, vector<8x96xf32> -> vector<8x96xf32>
    %256 = arith.addf %255, %95 : vector<8x96xf32>
    %cst_102 = arith.constant dense<0.000000e+00> : vector<8x96xf32>
    %257 = tpu.matmul %208, %48, %cst_102 {dimension_numbers = #tpu.dot_dimension_numbers<[1], [0], [0], [1], [0, 0, 1, 1], [], []>} : vector<8x32xf32>, vector<32x96xf32>, vector<8x96xf32> -> vector<8x96xf32>
    %258 = arith.addf %257, %97 : vector<8x96xf32>
    %259 = vector.extract_strided_slice %256 {offsets = [0, 0], sizes = [8, 32], strides = [1, 1]} : vector<8x96xf32> to vector<8x32xf32>
    %260 = vector.extract_strided_slice %258 {offsets = [0, 0], sizes = [8, 32], strides = [1, 1]} : vector<8x96xf32> to vector<8x32xf32>
    %261 = arith.addf %259, %260 : vector<8x32xf32>
    %262 = arith.negf %261 : vector<8x32xf32>
    %263 = math.exp %262 : vector<8x32xf32>
    %cst_103 = arith.constant 1.000000e+00 : f32
    %264 = vector.broadcast %cst_103 : f32 to vector<8x32xf32>
    %265 = arith.addf %264, %263 : vector<8x32xf32>
    %266 = arith.divf %264, %265 : vector<8x32xf32>
    %267 = vector.extract_strided_slice %256 {offsets = [0, 32], sizes = [8, 32], strides = [1, 1]} : vector<8x96xf32> to vector<8x32xf32>
    %268 = vector.extract_strided_slice %258 {offsets = [0, 32], sizes = [8, 32], strides = [1, 1]} : vector<8x96xf32> to vector<8x32xf32>
    %269 = arith.addf %267, %268 : vector<8x32xf32>
    %270 = arith.negf %269 : vector<8x32xf32>
    %271 = math.exp %270 : vector<8x32xf32>
    %cst_104 = arith.constant 1.000000e+00 : f32
    %272 = vector.broadcast %cst_104 : f32 to vector<8x32xf32>
    %273 = arith.addf %272, %271 : vector<8x32xf32>
    %274 = arith.divf %272, %273 : vector<8x32xf32>
    %275 = vector.extract_strided_slice %256 {offsets = [0, 64], sizes = [8, 32], strides = [1, 1]} : vector<8x96xf32> to vector<8x32xf32>
    %276 = vector.extract_strided_slice %258 {offsets = [0, 64], sizes = [8, 32], strides = [1, 1]} : vector<8x96xf32> to vector<8x32xf32>
    %277 = arith.mulf %266, %276 : vector<8x32xf32>
    %278 = arith.addf %275, %277 : vector<8x32xf32>
    %279 = math.tanh %278 : vector<8x32xf32>
    %cst_105 = arith.constant 1.000000e+00 : f32
    %280 = vector.broadcast %cst_105 : f32 to vector<8x32xf32>
    %281 = arith.subf %280, %274 : vector<8x32xf32>
    %282 = arith.mulf %281, %279 : vector<8x32xf32>
    %283 = arith.mulf %274, %208 : vector<8x32xf32>
    %284 = arith.addf %282, %283 : vector<8x32xf32>
    %cst_106 = arith.constant dense<0.000000e+00> : vector<8xf32>
    %285 = vector.multi_reduction <add>, %284, %cst_106 [1] : vector<8x32xf32> to vector<8xf32>
    %286 = vector.shape_cast %285 : vector<8xf32> to vector<8x1xf32>
    %cst_107 = arith.constant 3.200000e+01 : f32
    %287 = vector.broadcast %cst_107 : f32 to vector<8x1xf32>
    %288 = arith.divf %286, %287 : vector<8x1xf32>
    %289 = vector.broadcast %288 : vector<8x1xf32> to vector<8x32xf32>
    %290 = arith.subf %284, %289 : vector<8x32xf32>
    %291 = arith.mulf %290, %290 : vector<8x32xf32>
    %cst_108 = arith.constant dense<0.000000e+00> : vector<8xf32>
    %292 = vector.multi_reduction <add>, %291, %cst_108 [1] : vector<8x32xf32> to vector<8xf32>
    %293 = vector.shape_cast %292 : vector<8xf32> to vector<8x1xf32>
    %cst_109 = arith.constant 3.200000e+01 : f32
    %294 = vector.broadcast %cst_109 : f32 to vector<8x1xf32>
    %295 = arith.divf %293, %294 : vector<8x1xf32>
    %296 = vector.broadcast %288 : vector<8x1xf32> to vector<8x32xf32>
    %297 = arith.subf %284, %296 : vector<8x32xf32>
    %cst_110 = arith.constant 9.99999974E-6 : f32
    %298 = vector.broadcast %cst_110 : f32 to vector<8x1xf32>
    %299 = arith.addf %295, %298 : vector<8x1xf32>
    %300 = math.rsqrt %299 : vector<8x1xf32>
    %301 = vector.broadcast %300 : vector<8x1xf32> to vector<8x32xf32>
    %302 = arith.mulf %297, %301 : vector<8x32xf32>
    %303 = vector.broadcast %61 : vector<1x32xf32> to vector<8x32xf32>
    %304 = arith.mulf %302, %303 : vector<8x32xf32>
    %305 = vector.broadcast %62 : vector<1x32xf32> to vector<8x32xf32>
    %306 = arith.addf %304, %305 : vector<8x32xf32>
    %cst_111 = arith.constant dense<0.000000e+00> : vector<8x32xf32>
    %307 = tpu.matmul %306, %49, %cst_111 {dimension_numbers = #tpu.dot_dimension_numbers<[1], [0], [0], [1], [0, 0, 1, 1], [], []>} : vector<8x32xf32>, vector<32x32xf32>, vector<8x32xf32> -> vector<8x32xf32>
    %308 = arith.addf %307, %99 : vector<8x32xf32>
    %cst_112 = arith.constant 0.000000e+00 : f32
    %309 = vector.broadcast %cst_112 : f32 to vector<8x32xf32>
    %310 = arith.maximumf %308, %309 : vector<8x32xf32>
    %cst_113 = arith.constant dense<0.000000e+00> : vector<8x32xf32>
    %311 = tpu.matmul %310, %50, %cst_113 {dimension_numbers = #tpu.dot_dimension_numbers<[1], [0], [0], [1], [0, 0, 1, 1], [], []>} : vector<8x32xf32>, vector<32x32xf32>, vector<8x32xf32> -> vector<8x32xf32>
    %312 = arith.addf %284, %311 : vector<8x32xf32>
    %313 = arith.addf %312, %101 : vector<8x32xf32>
    %cst_114 = arith.constant dense<0.000000e+00> : vector<8xf32>
    %314 = vector.multi_reduction <add>, %313, %cst_114 [1] : vector<8x32xf32> to vector<8xf32>
    %315 = vector.shape_cast %314 : vector<8xf32> to vector<8x1xf32>
    %cst_115 = arith.constant 3.200000e+01 : f32
    %316 = vector.broadcast %cst_115 : f32 to vector<8x1xf32>
    %317 = arith.divf %315, %316 : vector<8x1xf32>
    %318 = vector.broadcast %317 : vector<8x1xf32> to vector<8x32xf32>
    %319 = arith.subf %313, %318 : vector<8x32xf32>
    %320 = arith.mulf %319, %319 : vector<8x32xf32>
    %cst_116 = arith.constant dense<0.000000e+00> : vector<8xf32>
    %321 = vector.multi_reduction <add>, %320, %cst_116 [1] : vector<8x32xf32> to vector<8xf32>
    %322 = vector.shape_cast %321 : vector<8xf32> to vector<8x1xf32>
    %cst_117 = arith.constant 3.200000e+01 : f32
    %323 = vector.broadcast %cst_117 : f32 to vector<8x1xf32>
    %324 = arith.divf %322, %323 : vector<8x1xf32>
    %325 = vector.broadcast %317 : vector<8x1xf32> to vector<8x32xf32>
    %326 = arith.subf %313, %325 : vector<8x32xf32>
    %cst_118 = arith.constant 9.99999974E-6 : f32
    %327 = vector.broadcast %cst_118 : f32 to vector<8x1xf32>
    %328 = arith.addf %324, %327 : vector<8x1xf32>
    %329 = math.rsqrt %328 : vector<8x1xf32>
    %330 = vector.broadcast %329 : vector<8x1xf32> to vector<8x32xf32>
    %331 = arith.mulf %326, %330 : vector<8x32xf32>
    %332 = vector.broadcast %59 : vector<1x32xf32> to vector<8x32xf32>
    %333 = arith.mulf %331, %332 : vector<8x32xf32>
    %334 = vector.broadcast %60 : vector<1x32xf32> to vector<8x32xf32>
    %335 = arith.addf %333, %334 : vector<8x32xf32>
    %cst_119 = arith.constant dense<0.000000e+00> : vector<8x32xf32>
    %336 = tpu.matmul %335, %45, %cst_119 {dimension_numbers = #tpu.dot_dimension_numbers<[1], [0], [0], [1], [0, 0, 1, 1], [], []>} : vector<8x32xf32>, vector<32x32xf32>, vector<8x32xf32> -> vector<8x32xf32>
    %337 = arith.addf %336, %93 : vector<8x32xf32>
    %338 = vector.shape_cast %337 : vector<8x32xf32> to vector<2x4x32xf32>
    "tpu.trace_start"() <{level = 10 : i32, message = "bsd,bnd->bsn"}> : () -> ()
    %cst_120 = arith.constant dense<0.000000e+00> : vector<2x4x16xf32>
    %339 = tpu.matmul %338, %89, %cst_120 {dimension_numbers = #tpu.dot_dimension_numbers<[2], [2], [1], [1], [0, 0, 0, 1, 1, 1], [0], [0]>} : vector<2x4x32xf32>, vector<2x16x32xf32>, vector<2x4x16xf32> -> vector<2x4x16xf32>
    "tpu.trace_stop"() : () -> ()
    %cst_121 = arith.constant 0.176776692 : f32
    %340 = vector.broadcast %cst_121 : f32 to vector<2x4x16xf32>
    %341 = arith.mulf %339, %340 : vector<2x4x16xf32>
    %cst_122 = arith.constant dense<0xFF800000> : vector<2x16xf32>
    %342 = vector.multi_reduction <maximumf>, %341, %cst_122 [1] : vector<2x4x16xf32> to vector<2x16xf32>
    %343 = vector.shape_cast %342 : vector<2x16xf32> to vector<2x1x16xf32>
    %344 = vector.broadcast %343 : vector<2x1x16xf32> to vector<2x4x16xf32>
    %345 = arith.subf %341, %344 : vector<2x4x16xf32>
    %346 = math.exp %345 : vector<2x4x16xf32>
    %cst_123 = arith.constant dense<0.000000e+00> : vector<2x16xf32>
    %347 = vector.multi_reduction <add>, %346, %cst_123 [1] : vector<2x4x16xf32> to vector<2x16xf32>
    %348 = vector.shape_cast %347 : vector<2x16xf32> to vector<2x1x16xf32>
    %349 = tpu.reciprocal %348 {approx = true} : vector<2x1x16xf32> -> vector<2x1x16xf32>
    %350 = vector.broadcast %349 : vector<2x1x16xf32> to vector<2x4x16xf32>
    %351 = arith.mulf %346, %350 : vector<2x4x16xf32>
    %cst_124 = arith.constant 9.99999993E-9 : f32
    %352 = vector.broadcast %cst_124 : f32 to vector<2x4x16xf32>
    %353 = arith.addf %351, %352 : vector<2x4x16xf32>
    %cst_125 = arith.constant dense<0.000000e+00> : vector<2x4xf32>
    %354 = vector.multi_reduction <add>, %353, %cst_125 [2] : vector<2x4x16xf32> to vector<2x4xf32>
    %355 = vector.shape_cast %354 : vector<2x4xf32> to vector<2x4x1xf32>
    %356 = vector.broadcast %355 : vector<2x4x1xf32> to vector<2x4x16xf32>
    %357 = arith.divf %353, %356 : vector<2x4x16xf32>
    "tpu.trace_start"() <{level = 10 : i32, message = "bsn,bnd->bsd"}> : () -> ()
    %cst_126 = arith.constant dense<0.000000e+00> : vector<2x4x32xf32>
    %358 = tpu.matmul %357, %91, %cst_126 {dimension_numbers = #tpu.dot_dimension_numbers<[2], [1], [1], [2], [0, 0, 0, 1, 1, 2], [0], [0]>} : vector<2x4x16xf32>, vector<2x16x32xf32>, vector<2x4x32xf32> -> vector<2x4x32xf32>
    "tpu.trace_stop"() : () -> ()
    %359 = vector.shape_cast %358 : vector<2x4x32xf32> to vector<8x32xf32>
    %cst_127 = arith.constant dense<0.000000e+00> : vector<8x96xf32>
    %360 = tpu.matmul %359, %47, %cst_127 {dimension_numbers = #tpu.dot_dimension_numbers<[1], [0], [0], [1], [0, 0, 1, 1], [], []>} : vector<8x32xf32>, vector<32x96xf32>, vector<8x96xf32> -> vector<8x96xf32>
    %361 = arith.addf %360, %95 : vector<8x96xf32>
    %cst_128 = arith.constant dense<0.000000e+00> : vector<8x96xf32>
    %362 = tpu.matmul %313, %48, %cst_128 {dimension_numbers = #tpu.dot_dimension_numbers<[1], [0], [0], [1], [0, 0, 1, 1], [], []>} : vector<8x32xf32>, vector<32x96xf32>, vector<8x96xf32> -> vector<8x96xf32>
    %363 = arith.addf %362, %97 : vector<8x96xf32>
    %364 = vector.extract_strided_slice %361 {offsets = [0, 0], sizes = [8, 32], strides = [1, 1]} : vector<8x96xf32> to vector<8x32xf32>
    %365 = vector.extract_strided_slice %363 {offsets = [0, 0], sizes = [8, 32], strides = [1, 1]} : vector<8x96xf32> to vector<8x32xf32>
    %366 = arith.addf %364, %365 : vector<8x32xf32>
    %367 = arith.negf %366 : vector<8x32xf32>
    %368 = math.exp %367 : vector<8x32xf32>
    %cst_129 = arith.constant 1.000000e+00 : f32
    %369 = vector.broadcast %cst_129 : f32 to vector<8x32xf32>
    %370 = arith.addf %369, %368 : vector<8x32xf32>
    %371 = arith.divf %369, %370 : vector<8x32xf32>
    %372 = vector.extract_strided_slice %361 {offsets = [0, 32], sizes = [8, 32], strides = [1, 1]} : vector<8x96xf32> to vector<8x32xf32>
    %373 = vector.extract_strided_slice %363 {offsets = [0, 32], sizes = [8, 32], strides = [1, 1]} : vector<8x96xf32> to vector<8x32xf32>
    %374 = arith.addf %372, %373 : vector<8x32xf32>
    %375 = arith.negf %374 : vector<8x32xf32>
    %376 = math.exp %375 : vector<8x32xf32>
    %cst_130 = arith.constant 1.000000e+00 : f32
    %377 = vector.broadcast %cst_130 : f32 to vector<8x32xf32>
    %378 = arith.addf %377, %376 : vector<8x32xf32>
    %379 = arith.divf %377, %378 : vector<8x32xf32>
    %380 = vector.extract_strided_slice %361 {offsets = [0, 64], sizes = [8, 32], strides = [1, 1]} : vector<8x96xf32> to vector<8x32xf32>
    %381 = vector.extract_strided_slice %363 {offsets = [0, 64], sizes = [8, 32], strides = [1, 1]} : vector<8x96xf32> to vector<8x32xf32>
    %382 = arith.mulf %371, %381 : vector<8x32xf32>
    %383 = arith.addf %380, %382 : vector<8x32xf32>
    %384 = math.tanh %383 : vector<8x32xf32>
    %cst_131 = arith.constant 1.000000e+00 : f32
    %385 = vector.broadcast %cst_131 : f32 to vector<8x32xf32>
    %386 = arith.subf %385, %379 : vector<8x32xf32>
    %387 = arith.mulf %386, %384 : vector<8x32xf32>
    %388 = arith.mulf %379, %313 : vector<8x32xf32>
    %389 = arith.addf %387, %388 : vector<8x32xf32>
    %cst_132 = arith.constant dense<0.000000e+00> : vector<8xf32>
    %390 = vector.multi_reduction <add>, %389, %cst_132 [1] : vector<8x32xf32> to vector<8xf32>
    %391 = vector.shape_cast %390 : vector<8xf32> to vector<8x1xf32>
    %cst_133 = arith.constant 3.200000e+01 : f32
    %392 = vector.broadcast %cst_133 : f32 to vector<8x1xf32>
    %393 = arith.divf %391, %392 : vector<8x1xf32>
    %394 = vector.broadcast %393 : vector<8x1xf32> to vector<8x32xf32>
    %395 = arith.subf %389, %394 : vector<8x32xf32>
    %396 = arith.mulf %395, %395 : vector<8x32xf32>
    %cst_134 = arith.constant dense<0.000000e+00> : vector<8xf32>
    %397 = vector.multi_reduction <add>, %396, %cst_134 [1] : vector<8x32xf32> to vector<8xf32>
    %398 = vector.shape_cast %397 : vector<8xf32> to vector<8x1xf32>
    %cst_135 = arith.constant 3.200000e+01 : f32
    %399 = vector.broadcast %cst_135 : f32 to vector<8x1xf32>
    %400 = arith.divf %398, %399 : vector<8x1xf32>
    %401 = vector.broadcast %393 : vector<8x1xf32> to vector<8x32xf32>
    %402 = arith.subf %389, %401 : vector<8x32xf32>
    %cst_136 = arith.constant 9.99999974E-6 : f32
    %403 = vector.broadcast %cst_136 : f32 to vector<8x1xf32>
    %404 = arith.addf %400, %403 : vector<8x1xf32>
    %405 = math.rsqrt %404 : vector<8x1xf32>
    %406 = vector.broadcast %405 : vector<8x1xf32> to vector<8x32xf32>
    %407 = arith.mulf %402, %406 : vector<8x32xf32>
    %408 = vector.broadcast %61 : vector<1x32xf32> to vector<8x32xf32>
    %409 = arith.mulf %407, %408 : vector<8x32xf32>
    %410 = vector.broadcast %62 : vector<1x32xf32> to vector<8x32xf32>
    %411 = arith.addf %409, %410 : vector<8x32xf32>
    %cst_137 = arith.constant dense<0.000000e+00> : vector<8x32xf32>
    %412 = tpu.matmul %411, %49, %cst_137 {dimension_numbers = #tpu.dot_dimension_numbers<[1], [0], [0], [1], [0, 0, 1, 1], [], []>} : vector<8x32xf32>, vector<32x32xf32>, vector<8x32xf32> -> vector<8x32xf32>
    %413 = arith.addf %412, %99 : vector<8x32xf32>
    %cst_138 = arith.constant 0.000000e+00 : f32
    %414 = vector.broadcast %cst_138 : f32 to vector<8x32xf32>
    %415 = arith.maximumf %413, %414 : vector<8x32xf32>
    %cst_139 = arith.constant dense<0.000000e+00> : vector<8x32xf32>
    %416 = tpu.matmul %415, %50, %cst_139 {dimension_numbers = #tpu.dot_dimension_numbers<[1], [0], [0], [1], [0, 0, 1, 1], [], []>} : vector<8x32xf32>, vector<32x32xf32>, vector<8x32xf32> -> vector<8x32xf32>
    %417 = arith.addf %389, %416 : vector<8x32xf32>
    %418 = arith.addf %417, %101 : vector<8x32xf32>
    %c0_140 = arith.constant 0 : index
    %c0_141 = arith.constant 0 : index
    %c0_142 = arith.constant 0 : index
    %419 = vector.load %arg11[%c0_140, %c0_141, %c0_142] : memref<2x4x16xf32, #tpu.memory_space<vmem>>, vector<2x4x16xf32>
    tpu.vector_store %arg11[%c0_140, %c0_141, %c0_142], %357 {strides = array<i32>} : memref<2x4x16xf32, #tpu.memory_space<vmem>>, vector<2x4x16xf32>,
    %420 = vector.shape_cast %418 : vector<8x32xf32> to vector<2x4x32xf32>
    %c0_143 = arith.constant 0 : index
    %c0_144 = arith.constant 0 : index
    %c0_145 = arith.constant 0 : index
    %421 = vector.load %arg12[%c0_143, %c0_144, %c0_145] : memref<2x4x32xf32, #tpu.memory_space<vmem>>, vector<2x4x32xf32>
    tpu.vector_store %arg12[%c0_143, %c0_144, %c0_145], %420 {strides = array<i32>} : memref<2x4x32xf32, #tpu.memory_space<vmem>>, vector<2x4x32xf32>,
    return
  }
  func.func @transform_0(%arg0: i32) -> (i32, i32, i32) {
    %c0_i32 = arith.constant 0 : i32
    %c0_i32_0 = arith.constant 0 : i32
    %c0_i32_1 = arith.constant 0 : i32
    return %arg0, %c0_i32, %c0_i32_0 : i32, i32, i32
  }
  func.func @transform_1(%arg0: i32) -> (i32, i32, i32) {
    %c0_i32 = arith.constant 0 : i32
    %c0_i32_0 = arith.constant 0 : i32
    %c0_i32_1 = arith.constant 0 : i32
    return %arg0, %c0_i32, %c0_i32_0 : i32, i32, i32
  }
  func.func @transform_2(%arg0: i32) -> (i32, i32) {
    %c0_i32 = arith.constant 0 : i32
    %c0_i32_0 = arith.constant 0 : i32
    %c0_i32_1 = arith.constant 0 : i32
    return %c0_i32, %c0_i32_0 : i32, i32
  }
  func.func @transform_3(%arg0: i32) -> (i32, i32) {
    %c0_i32 = arith.constant 0 : i32
    %c0_i32_0 = arith.constant 0 : i32
    %c0_i32_1 = arith.constant 0 : i32
    return %c0_i32, %c0_i32_0 : i32, i32
  }
  func.func @transform_4(%arg0: i32) -> (i32, i32) {
    %c0_i32 = arith.constant 0 : i32
    %c0_i32_0 = arith.constant 0 : i32
    %c0_i32_1 = arith.constant 0 : i32
    return %c0_i32, %c0_i32_0 : i32, i32
  }
  func.func @transform_5(%arg0: i32) -> (i32, i32) {
    %c0_i32 = arith.constant 0 : i32
    %c0_i32_0 = arith.constant 0 : i32
    %c0_i32_1 = arith.constant 0 : i32
    return %c0_i32, %c0_i32_0 : i32, i32
  }
  func.func @transform_6(%arg0: i32) -> (i32, i32) {
    %c0_i32 = arith.constant 0 : i32
    %c0_i32_0 = arith.constant 0 : i32
    %c0_i32_1 = arith.constant 0 : i32
    return %c0_i32, %c0_i32_0 : i32, i32
  }
  func.func @transform_7(%arg0: i32) -> (i32, i32) {
    %c0_i32 = arith.constant 0 : i32
    %c0_i32_0 = arith.constant 0 : i32
    %c0_i32_1 = arith.constant 0 : i32
    return %c0_i32, %c0_i32_0 : i32, i32
  }
  func.func @transform_8(%arg0: i32) -> (i32, i32) {
    %c0_i32 = arith.constant 0 : i32
    %c0_i32_0 = arith.constant 0 : i32
    %c0_i32_1 = arith.constant 0 : i32
    return %c0_i32, %c0_i32_0 : i32, i32
  }
  func.func @transform_9(%arg0: i32) -> (i32, i32, i32) {
    %c0_i32 = arith.constant 0 : i32
    %c0_i32_0 = arith.constant 0 : i32
    %c0_i32_1 = arith.constant 0 : i32
    return %arg0, %c0_i32, %c0_i32_0 : i32, i32, i32
  }
  func.func @transform_10(%arg0: i32) -> (i32, i32, i32) {
    %c0_i32 = arith.constant 0 : i32
    %c0_i32_0 = arith.constant 0 : i32
    %c0_i32_1 = arith.constant 0 : i32
    return %arg0, %c0_i32, %c0_i32_0 : i32, i32, i32
  }
  func.func @transform_11(%arg0: i32) -> (i32, i32, i32) {
    %c0_i32 = arith.constant 0 : i32
    %c0_i32_0 = arith.constant 0 : i32
    %c0_i32_1 = arith.constant 0 : i32
    return %arg0, %c0_i32, %c0_i32_0 : i32, i32, i32
  }
}

</mosaic_0001>

<llo_original>
// kernel: slot_image_forward.1
$region0: #{slot_image_forward.1}
  #allocation0 [shape = 'u32[]', space=smem, size = 0x4, offset = 0x4, fixed_abs, tag = 'smem constant byte address 0x4 - core index']
  #allocation1 [shape = 'u32[144,128]{1,0:T(1,128)}', space=vmem, size = 0x12000, scoped, tag = 'internal scratch']
  %s0 = inlined_call_operand.vmem [shape: bf16[2,16,64], index: 0, kind: input, shape index: {}]
  %s1 = inlined_call_operand.vmem [shape: f32[2,4,32], index: 1, kind: input, shape index: {}]
  %s2 = inlined_call_operand.vmem [shape: bf16[64,32], index: 2, kind: input, shape index: {}]
  %s3 = inlined_call_operand.vmem [shape: f32[1,32], index: 3, kind: input, shape index: {}]
  %s4 = inlined_call_operand.vmem [shape: f32[32,32], index: 4, kind: input, shape index: {}]
  %s5 = inlined_call_operand.vmem [shape: f32[32,32], index: 5, kind: input, shape index: {}]
  %s6 = inlined_call_operand.vmem [shape: f32[1,128], index: 6, kind: input, shape index: {}]
  %s7 = inlined_call_operand.vmem [shape: f32[32,352], index: 7, kind: input, shape index: {}]
  %s8 = inlined_call_operand.vmem [shape: f32[1,544], index: 8, kind: input, shape index: {}]
  %s9 = inlined_call_operand.hbm [shape: f32[2,16,32], index: 9, kind: output, shape index: {0}]
  %s10 = inlined_call_operand.hbm [shape: f32[2,4,16], index: 10, kind: output, shape index: {1}]
  %s11 = inlined_call_operand.hbm [shape: f32[2,4,32], index: 11, kind: output, shape index: {2}]
  %12 = xla_tuple %s9, %s10, %s11
  %s13 = sld [smem:[#allocation0]]
  $region62: #{slot_image_forward.1} parent=0
    _
  %s15 = ssub.s32 1, %s13
  %s16 = scalar_select 0, %s15, %s13
  $region1: #{slot_image_forward.1} parent=0
    #allocation2 [shape = 'u8[16384]{0}', space=vmem, size = 0x4000, scoped, tag = 'output window, operand 0, single buffered']
    #allocation3 [shape = 's32[1]{0}', space=sflag, size = 0x4, scoped, tag = 'scoped memory for slot_image_forward.1']
    #allocation4 [shape = 'u8[4096]{0}', space=vmem, size = 0x1000, scoped, tag = 'output window, operand 1, single buffered']
    #allocation5 [shape = 's32[1]{0}', space=sflag, size = 0x4, scoped, tag = 'scoped memory for slot_image_forward.1']
    #allocation6 [shape = 'u8[4096]{0}', space=vmem, size = 0x1000, scoped, tag = 'output window, operand 2, single buffered']
    %17 = vsyncpa [#allocation3], 0
    %18 = vsyncpa [#allocation5], 0
    // Predicated region
    $region2: #{slot_image_forward.1} parent=1 // pred_check
      _
    $region3: #{slot_image_forward.1} parent=1 // pred_check_branch
      %20 = sbr.rel (0) target = $region5
    $region4: #{slot_image_forward.1} parent=1 // pred_region
      _
    $region5: #{slot_image_forward.1} parent=1 // pred_fallthru
      _
    // Predicated region
    $region6: #{slot_image_forward.1} parent=1 // pred_check
      _
    $region7: #{slot_image_forward.1} parent=1 // pred_check_branch
      %22 = sbr.rel (0) target = $region9
    $region8: #{slot_image_forward.1} parent=1 // pred_region
      _
    $region9: #{slot_image_forward.1} parent=1 // pred_fallthru
      _
    // Predicated region
    $region10: #{slot_image_forward.1} parent=1 // pred_check
      _
    $region11: #{slot_image_forward.1} parent=1 // pred_check_branch
      %24 = sbr.rel (0) target = $region13
    $region12: #{slot_image_forward.1} parent=1 // pred_region
      _
    $region13: #{slot_image_forward.1} parent=1 // pred_fallthru
      _
    // Predicated region
    $region14: #{slot_image_forward.1} parent=1 // pred_check
      _
    $region15: #{slot_image_forward.1} parent=1 // pred_check_branch
      %26 = sbr.rel (0) target = $region17
    $region16: #{slot_image_forward.1} parent=1 // pred_region
      _
    $region17: #{slot_image_forward.1} parent=1 // pred_fallthru
      _
    // Predicated region
    $region18: #{slot_image_forward.1} parent=1 // pred_check
      _
    $region19: #{slot_image_forward.1} parent=1 // pred_check_branch
      %28 = sbr.rel (0) target = $region21
    $region20: #{slot_image_forward.1} parent=1 // pred_region
      _
    $region21: #{slot_image_forward.1} parent=1 // pred_fallthru
      _
    // Predicated region
    $region22: #{slot_image_forward.1} parent=1 // pred_check
      _
    $region23: #{slot_image_forward.1} parent=1 // pred_check_branch
      %30 = sbr.rel (0) target = $region25
    $region24: #{slot_image_forward.1} parent=1 // pred_region
      _
    $region25: #{slot_image_forward.1} parent=1 // pred_fallthru
      _
    // Predicated region
    $region26: #{slot_image_forward.1} parent=1 // pred_check
      _
    $region27: #{slot_image_forward.1} parent=1 // pred_check_branch
      %32 = sbr.rel (0) target = $region29
    $region28: #{slot_image_forward.1} parent=1 // pred_region
      _
    $region29: #{slot_image_forward.1} parent=1 // pred_fallthru
      _
    // Predicated region
    $region30: #{slot_image_forward.1} parent=1 // pred_check
      _
    $region31: #{slot_image_forward.1} parent=1 // pred_check_branch
      %34 = sbr.rel (0) target = $region33
    $region32: #{slot_image_forward.1} parent=1 // pred_region
      _
    $region33: #{slot_image_forward.1} parent=1 // pred_fallthru
      _
    // Predicated region
    $region34: #{slot_image_forward.1} parent=1 // pred_check
      _
    $region35: #{slot_image_forward.1} parent=1 // pred_check_branch
      %36 = sbr.rel (0) target = $region37
    $region36: #{slot_image_forward.1} parent=1 // pred_region
      _
    $region37: #{slot_image_forward.1} parent=1 // pred_fallthru
      _
    %v38 = vld [vmem:[%s0] sm:$0xf]
    %v39 = vld [vmem:[%s0 + $0x4] sm:$0xf]
    %v40 = vld [vmem:[%s0 + $0x8] sm:$0xf]
    %v41 = vld [vmem:[%s0 + $0xc] sm:$0xf]
    %v42 = vld [vmem:[%s2] sm:$0xf]
    %v43 = vld [vmem:[%s2 + $0x4] sm:$0xf]
    %v44 = vld [vmem:[%s2 + $0x8] sm:$0xf]
    %v45 = vld [vmem:[%s2 + $0xc] sm:$0xf]
    %v46 = vld [vmem:[%s2 + $0x10] sm:$0xf]
    %v47 = vld [vmem:[%s2 + $0x14] sm:$0xf]
    %v48 = vld [vmem:[%s2 + $0x18] sm:$0xf]
    %v49 = vld [vmem:[%s2 + $0x1c] sm:$0xf]
    %v50 = vld [vmem:[%s3] sm:$0x1]
    %v52 = vlaneseq
    %v53 = vshrl.u32 %v52, 7
    %v54 = vsub.s32 0, %v53
    %v55 = vrot.slane %v50, %v54
    %v61 = vunpack.c.l.b16 %v38
    %v62 = vunpack.c.l.b16 %v39
    %v63 = vunpack.c.l.b16 %v40
    %v64 = vunpack.c.l.b16 %v41
    %v65 = vpack.c.b16 %v62, %v61
    %v66 = vpack.c.b16 %v64, %v63
    %v75 = vunpack.c.l.b16 %v42
    %v76 = vunpack.c.l.b16 %v43
    %v77 = vunpack.c.l.b16 %v44
    %v78 = vunpack.c.l.b16 %v45
    %v79 = vunpack.c.l.b16 %v46
    %v80 = vunpack.c.l.b16 %v47
    %v81 = vunpack.c.l.b16 %v48
    %v82 = vunpack.c.l.b16 %v49
    %v83 = vpack.c.b16 %v76, %v75
    %v84 = vpack.c.b16 %v78, %v77
    %v85 = vpack.c.b16 %v80, %v79
    %v86 = vpack.c.b16 %v82, %v81
    %vm91 = vcmask 523264
    %v93 = vsel %vm91, %v65, 0
    %v96 = vsel %vm91, %v66, 0
    %98 = vmatprep.subr.bf16.mxu0 0
    %99 = vmatpush1.bf16.msra.mxu0 %v83
    %100 = vmatprep.subr.bf16.mxu0 0
    %101 = vmatpush1.bf16.msra.mxu0 %v84
    %102 = vmatprep.subr.bf16.mxu0 0
    %103 = vmatpush1.bf16.msra.mxu0 %v85
    %104 = vmatprep.subr.bf16.mxu0 0
    %105 = vmatpush1.bf16.msra.mxu0 %v86
    %106 = vmatprep.subr.bf16.mxu0 0
    %107 = vmatpush1.bf16.msra.mxu0 0
    %108 = vmatprep.subr.bf16.mxu0 0
    %109 = vmatpush1.bf16.msra.mxu0 0
    %110 = vmatprep.subr.bf16.mxu0 0
    %111 = vmatpush1.bf16.msra.mxu0 0
    %112 = vmatprep.subr.bf16.mxu0 0
    %113 = vmatpush1.bf16.msra.mxu0 0
    %114 = vmatprep.subr.bf16.mxu0 0
    %115 = vmatpush1.bf16.msra.mxu0 0
    %116 = vmatprep.subr.bf16.mxu0 0
    %117 = vmatpush1.bf16.msra.mxu0 0
    %118 = vmatprep.subr.bf16.mxu0 0
    %119 = vmatpush1.bf16.msra.mxu0 0
    %120 = vmatprep.subr.bf16.mxu0 0
    %121 = vmatpush1.bf16.msra.mxu0 0
    %122 = vmatprep.subr.bf16.mxu0 0
    %123 = vmatpush1.bf16.msra.mxu0 0
    %124 = vmatprep.subr.bf16.mxu0 0
    %125 = vmatpush1.bf16.msra.mxu0 0
    %126 = vmatprep.subr.bf16.mxu0 0
    %127 = vmatpush1.bf16.msra.mxu0 0
    %128 = vmatprep.subr.bf16.mxu0 0
    %129 = vmatpush1.bf16.msra.mxu0 0
    %130 = vmatprep.mubr.bf16.mxu0 0
    %131 = vmatmul.mubr.bf16.gmra.mrb[0].mxu0 %v93
    %v132 = vpop.f32.mrb[0].mxu0
    %v133 = vadd.f32 %v55, %v132
    %v134 = vpop.f32.mrb[0].mxu0
    %v135 = vpop.f32.mrb[0].mxu0
    %v136 = vadd.f32 %v55, %v135
    %v137 = vpop.f32.mrb[0].mxu0
    %138 = vmatprep.mubr.bf16.mxu0 0
    %139 = vmatmul.mubr.bf16.gmra.mrb[0].mxu0 %v96
    %v140 = vpop.f32.mrb[0].mxu0
    %v141 = vadd.f32 %v55, %v140
    %v142 = vpop.f32.mrb[0].mxu0
    %v143 = vpop.f32.mrb[0].mxu0
    %v144 = vadd.f32 %v55, %v143
    %v145 = vpop.f32.mrb[0].mxu0
    %146 = vdwg.mxu0
    %vm147 = vcmask 261120
    %148 = vst.msk [vmem:[#allocation2] sm:$0xff] %vm147, %v133
    %149 = vst.msk [vmem:[#allocation2 + $0x8] sm:$0xff] %vm147, %v136
    %150 = vst.msk [vmem:[#allocation2 + $0x10] sm:$0xff] %vm147, %v141
    %151 = vst.msk [vmem:[#allocation2 + $0x18] sm:$0xff] %vm147, %v144
    %v152 = vld [vmem:[%s6] sm:$0x1]
    %v153 = vld [vmem:[%s4] sm:$0xff]
    %v154 = vld [vmem:[%s4 + $0x8] sm:$0xff]
    %v155 = vld [vmem:[%s4 + $0x10] sm:$0xff]
    %v156 = vld [vmem:[%s4 + $0x18] sm:$0xff]
    %v158 = vlaneseq
    %v159 = vshrl.u32 %v158, 7
    %v160 = vsub.s32 0, %v159
    %v161 = vrot.slane %v152, %v160
    %v164 = vsel %vm147, %v133, 0
    %v167 = vsel %vm147, %v136, 0
    %v170 = vsel %vm147, %v141, 0
    %v173 = vsel %vm147, %v144, 0
    %175 = vmatprep.subr.mxu0 0.0
    %176 = vmatpush1.msra.mxu0 %v153
    %177 = vmatprep.subr.mxu0 0.0
    %178 = vmatpush1.msra.mxu0 %v154
    %179 = vmatprep.subr.mxu0 0.0
    %180 = vmatpush1.msra.mxu0 %v155
    %181 = vmatprep.subr.mxu0 0.0
    %182 = vmatpush1.msra.mxu0 %v156
    %183 = vmatprep.subr.mxu0 0.0
    %184 = vmatpush1.msra.mxu0 0.0
    %185 = vmatprep.subr.mxu0 0.0
    %186 = vmatpush1.msra.mxu0 0.0
    %187 = vmatprep.subr.mxu0 0.0
    %188 = vmatpush1.msra.mxu0 0.0
    %189 = vmatprep.subr.mxu0 0.0
    %190 = vmatpush1.msra.mxu0 0.0
    %191 = vmatprep.subr.mxu0 0.0
    %192 = vmatpush1.msra.mxu0 0.0
    %193 = vmatprep.subr.mxu0 0.0
    %194 = vmatpush1.msra.mxu0 0.0
    %195 = vmatprep.subr.mxu0 0.0
    %196 = vmatpush1.msra.mxu0 0.0
    %197 = vmatprep.subr.mxu0 0.0
    %198 = vmatpush1.msra.mxu0 0.0
    %199 = vmatprep.subr.mxu0 0.0
    %200 = vmatpush1.msra.mxu0 0.0
    %201 = vmatprep.subr.mxu0 0.0
    %202 = vmatpush1.msra.mxu0 0.0
    %203 = vmatprep.subr.mxu0 0.0
    %204 = vmatpush1.msra.mxu0 0.0
    %205 = vmatprep.subr.mxu0 0.0
    %206 = vmatpush1.msra.mxu0 0.0
    %207 = vmatprep.subr.mxu0 0.0
    %208 = vmatpush1.msra.mxu0 0.0
    %209 = vmatprep.subr.mxu0 0.0
    %210 = vmatpush1.msra.mxu0 0.0
    %211 = vmatprep.subr.mxu0 0.0
    %212 = vmatpush1.msra.mxu0 0.0
    %213 = vmatprep.subr.mxu0 0.0
    %214 = vmatpush1.msra.mxu0 0.0
    %215 = vmatprep.subr.mxu0 0.0
    %216 = vmatpush1.msra.mxu0 0.0
    %217 = vmatprep.subr.mxu0 0.0
    %218 = vmatpush1.msra.mxu0 0.0
    %219 = vmatprep.subr.mxu0 0.0
    %220 = vmatpush1.msra.mxu0 0.0
    %221 = vmatprep.subr.mxu0 0.0
    %222 = vmatpush1.msra.mxu0 0.0
    %223 = vmatprep.subr.mxu0 0.0
    %224 = vmatpush1.msra.mxu0 0.0
    %225 = vmatprep.subr.mxu0 0.0
    %226 = vmatpush1.msra.mxu0 0.0
    %227 = vmatprep.subr.mxu0 0.0
    %228 = vmatpush1.msra.mxu0 0.0
    %229 = vmatprep.subr.mxu0 0.0
    %230 = vmatpush1.msra.mxu0 0.0
    %231 = vmatprep.subr.mxu0 0.0
    %232 = vmatpush1.msra.mxu0 0.0
    %233 = vmatprep.subr.mxu0 0.0
    %234 = vmatpush1.msra.mxu0 0.0
    %235 = vmatprep.subr.mxu0 0.0
    %236 = vmatpush1.msra.mxu0 0.0
    %237 = vmatprep.subr.mxu0 0.0
    %238 = vmatpush1.msra.mxu0 0.0
    %239 = vmatprep.mubr.f32.mxu0 0.0
    %240 = vmatmul.mubr.f32.gmra.mrb[0].mxu0 %v164
    %v241 = vpop.f32.mrb[0].mxu0
    %v242 = vadd.f32 %v161, %v241
    %v243 = vpop.f32.mrb[0].mxu0
    %244 = vmatprep.mubr.f32.mxu0 0.0
    %245 = vmatmul.mubr.f32.gmra.mrb[0].mxu0 %v167
    %v246 = vpop.f32.mrb[0].mxu0
    %v247 = vadd.f32 %v161, %v246
    %v248 = vpop.f32.mrb[0].mxu0
    %249 = vmatprep.mubr.f32.mxu0 0.0
    %250 = vmatmul.mubr.f32.gmra.mrb[0].mxu0 %v170
    %v251 = vpop.f32.mrb[0].mxu0
    %v252 = vadd.f32 %v161, %v251
    %v253 = vpop.f32.mrb[0].mxu0
    %254 = vmatprep.mubr.f32.mxu0 0.0
    %255 = vmatmul.mubr.f32.gmra.mrb[0].mxu0 %v173
    %v256 = vpop.f32.mrb[0].mxu0
    %v257 = vadd.f32 %v161, %v256
    %v258 = vpop.f32.mrb[0].mxu0
    %259 = vdwg.mxu0
    %v260 = vmax.f32 %v242, 0.0
    %v261 = vmax.f32 %v247, 0.0
    %v262 = vmax.f32 %v252, 0.0
    %v263 = vmax.f32 %v257, 0.0
    %v264 = vld [vmem:[%s5] sm:$0xff]
    %v265 = vld [vmem:[%s5 + $0x8] sm:$0xff]
    %v266 = vld [vmem:[%s5 + $0x10] sm:$0xff]
    %v267 = vld [vmem:[%s5 + $0x18] sm:$0xff]
    %268 = vrot.lane.b32.xlu0 %v161, 96
    %v269 = vpop.permute.xlu0 %268
    %v272 = vsel %vm147, %v260, 0
    %v275 = vsel %vm147, %v261, 0
    %v278 = vsel %vm147, %v262, 0
    %v281 = vsel %vm147, %v263, 0
    %283 = vmatprep.subr.mxu0 0.0
    %284 = vmatpush1.msra.mxu0 %v264
    %285 = vmatprep.subr.mxu0 0.0
    %286 = vmatpush1.msra.mxu0 %v265
    %287 = vmatprep.subr.mxu0 0.0
    %288 = vmatpush1.msra.mxu0 %v266
    %289 = vmatprep.subr.mxu0 0.0
    %290 = vmatpush1.msra.mxu0 %v267
    %291 = vmatprep.subr.mxu0 0.0
    %292 = vmatpush1.msra.mxu0 0.0
    %293 = vmatprep.subr.mxu0 0.0
    %294 = vmatpush1.msra.mxu0 0.0
    %295 = vmatprep.subr.mxu0 0.0
    %296 = vmatpush1.msra.mxu0 0.0
    %297 = vmatprep.subr.mxu0 0.0
    %298 = vmatpush1.msra.mxu0 0.0
    %299 = vmatprep.subr.mxu0 0.0
    %300 = vmatpush1.msra.mxu0 0.0
    %301 = vmatprep.subr.mxu0 0.0
    %302 = vmatpush1.msra.mxu0 0.0
    %303 = vmatprep.subr.mxu0 0.0
    %304 = vmatpush1.msra.mxu0 0.0
    %305 = vmatprep.subr.mxu0 0.0
    %306 = vmatpush1.msra.mxu0 0.0
    %307 = vmatprep.subr.mxu0 0.0
    %308 = vmatpush1.msra.mxu0 0.0
    %309 = vmatprep.subr.mxu0 0.0
    %310 = vmatpush1.msra.mxu0 0.0
    %311 = vmatprep.subr.mxu0 0.0
    %312 = vmatpush1.msra.mxu0 0.0
    %313 = vmatprep.subr.mxu0 0.0
    %314 = vmatpush1.msra.mxu0 0.0
    %315 = vmatprep.subr.mxu0 0.0
    %316 = vmatpush1.msra.mxu0 0.0
    %317 = vmatprep.subr.mxu0 0.0
    %318 = vmatpush1.msra.mxu0 0.0
    %319 = vmatprep.subr.mxu0 0.0
    %320 = vmatpush1.msra.mxu0 0.0
    %321 = vmatprep.subr.mxu0 0.0
    %322 = vmatpush1.msra.mxu0 0.0
    %323 = vmatprep.subr.mxu0 0.0
    %324 = vmatpush1.msra.mxu0 0.0
    %325 = vmatprep.subr.mxu0 0.0
    %326 = vmatpush1.msra.mxu0 0.0
    %327 = vmatprep.subr.mxu0 0.0
    %328 = vmatpush1.msra.mxu0 0.0
    %329 = vmatprep.subr.mxu0 0.0
    %330 = vmatpush1.msra.mxu0 0.0
    %331 = vmatprep.subr.mxu0 0.0
    %332 = vmatpush1.msra.mxu0 0.0
    %333 = vmatprep.subr.mxu0 0.0
    %334 = vmatpush1.msra.mxu0 0.0
    %335 = vmatprep.subr.mxu0 0.0
    %336 = vmatpush1.msra.mxu0 0.0
    %337 = vmatprep.subr.mxu0 0.0
    %338 = vmatpush1.msra.mxu0 0.0
    %339 = vmatprep.subr.mxu0 0.0
    %340 = vmatpush1.msra.mxu0 0.0
    %341 = vmatprep.subr.mxu0 0.0
    %342 = vmatpush1.msra.mxu0 0.0
    %343 = vmatprep.subr.mxu0 0.0
    %344 = vmatpush1.msra.mxu0 0.0
    %345 = vmatprep.subr.mxu0 0.0
    %346 = vmatpush1.msra.mxu0 0.0
    %347 = vmatprep.mubr.f32.mxu0 0.0
    %348 = vmatmul.mubr.f32.gmra.mrb[0].mxu0 %v272
    %v349 = vpop.f32.mrb[0].mxu0
    %v350 = vadd.f32 %v269, %v349
    %v351 = vpop.f32.mrb[0].mxu0
    %352 = vmatprep.mubr.f32.mxu0 0.0
    %353 = vmatmul.mubr.f32.gmra.mrb[0].mxu0 %v275
    %v354 = vpop.f32.mrb[0].mxu0
    %v355 = vadd.f32 %v269, %v354
    %v356 = vpop.f32.mrb[0].mxu0
    %357 = vmatprep.mubr.f32.mxu0 0.0
    %358 = vmatmul.mubr.f32.gmra.mrb[0].mxu0 %v278
    %v359 = vpop.f32.mrb[0].mxu0
    %v360 = vadd.f32 %v269, %v359
    %v361 = vpop.f32.mrb[0].mxu0
    %362 = vmatprep.mubr.f32.mxu0 0.0
    %363 = vmatmul.mubr.f32.gmra.mrb[0].mxu0 %v281
    %v364 = vpop.f32.mrb[0].mxu0
    %v365 = vadd.f32 %v269, %v364
    %v366 = vpop.f32.mrb[0].mxu0
    %367 = vdwg.mxu0
    %v368 = vsel %vm147, %v350, 0.0
    %369 = vadd.xlane.f32.xlu0 %v368
    %v370 = vpop.xlane.xlu0 %369
    %v371 = vsel %vm147, %v355, 0.0
    %372 = vadd.xlane.f32.xlu0 %v371
    %v373 = vpop.xlane.xlu0 %372
    %v374 = vsel %vm147, %v360, 0.0
    %375 = vadd.xlane.f32.xlu0 %v374
    %v376 = vpop.xlane.xlu0 %375
    %v377 = vsel %vm147, %v365, 0.0
    %378 = vadd.xlane.f32.xlu0 %v377
    %v379 = vpop.xlane.xlu0 %378
    %v380 = vrcp.pop 32.0
    %v381 = vmul.f32 %v370, %v380
    %v382 = vmul.f32 %v373, %v380
    %v383 = vmul.f32 %v376, %v380
    %v384 = vmul.f32 %v379, %v380
    %v385 = vsub.f32 %v350, %v381
    %v386 = vsub.f32 %v355, %v382
    %v387 = vsub.f32 %v360, %v383
    %v388 = vsub.f32 %v365, %v384
    %v389 = vmul.f32 %v385, %v385
    %v390 = vmul.f32 %v386, %v386
    %v391 = vmul.f32 %v387, %v387
    %v392 = vmul.f32 %v388, %v388
    %v393 = vsel %vm147, %v389, 0.0
    %394 = vadd.xlane.f32.xlu0 %v393
    %v395 = vpop.xlane.xlu0 %394
    %v396 = vsel %vm147, %v390, 0.0
    %397 = vadd.xlane.f32.xlu0 %v396
    %v398 = vpop.xlane.xlu0 %397
    %v399 = vsel %vm147, %v391, 0.0
    %400 = vadd.xlane.f32.xlu0 %v399
    %v401 = vpop.xlane.xlu0 %400
    %v402 = vsel %vm147, %v392, 0.0
    %403 = vadd.xlane.f32.xlu0 %v402
    %v404 = vpop.xlane.xlu0 %403
    %v405 = vmul.f32 %v395, %v380
    %v406 = vmul.f32 %v398, %v380
    %v407 = vmul.f32 %v401, %v380
    %v408 = vmul.f32 %v404, %v380
    %v409 = vadd.f32 %v405, 1e-05
    %v410 = vadd.f32 %v406, 1e-05
    %v411 = vadd.f32 %v407, 1e-05
    %v412 = vadd.f32 %v408, 1e-05
    %v413 = vrsqrt.pop %v409
    %v414 = vrsqrt.pop %v410
    %v415 = vrsqrt.pop %v411
    %v416 = vrsqrt.pop %v412
    %v417 = vmul.f32 %v385, %v413
    %v418 = vmul.f32 %v386, %v414
    %v419 = vmul.f32 %v387, %v415
    %v420 = vmul.f32 %v388, %v416
    %421 = vrot.lane.b32.xlu0 %v161, 64
    %v422 = vpop.permute.xlu0 %421
    %v424 = vmul.f32 %v417, %v422
    %v425 = vmul.f32 %v418, %v422
    %v426 = vmul.f32 %v419, %v422
    %v427 = vmul.f32 %v420, %v422
    %428 = vrot.lane.b32.xlu0 %v161, 32
    %v429 = vpop.permute.xlu0 %428
    %v431 = vadd.f32 %v424, %v429
    %v432 = vadd.f32 %v425, %v429
    %v433 = vadd.f32 %v426, %v429
    %v434 = vadd.f32 %v427, %v429
    %v435 = vld [vmem:[%s7] sm:$0xff]
    %v436 = vld [vmem:[%s7 + $0x18] sm:$0xff]
    %v437 = vld [vmem:[%s7 + $0x30] sm:$0xff]
    %v438 = vld [vmem:[%s7 + $0x48] sm:$0xff]
    %v439 = vld [vmem:[%s7 + $0x8] sm:$0xff]
    %v440 = vld [vmem:[%s7 + $0x20] sm:$0xff]
    %v441 = vld [vmem:[%s7 + $0x38] sm:$0xff]
    %v442 = vld [vmem:[%s7 + $0x50] sm:$0xff]
    %v443 = vld [vmem:[%s7 + $0x10] sm:$0xff]
    %v444 = vld [vmem:[%s7 + $0x28] sm:$0xff]
    %v445 = vld [vmem:[%s7 + $0x40] sm:$0xff]
    %v446 = vld [vmem:[%s7 + $0x58] sm:$0xff]
    %v447 = vld [vmem:[%s8] sm:$0x1]
    %v448 = vld [vmem:[%s8] sm:$0x3]
    %v449 = vld [vmem:[%s8 + $0x1] sm:$0x3]
    %v450 = vld [vmem:[%s8 + $0x2] sm:$0x1]
    %v451 = vld [vmem:[%s8 + $0x3] sm:$0x1]
    %v452 = vld [vmem:[%s8 + $0x4] sm:$0x1]
    %v453 = vsel %vm147, %v431, 0.0
    %454 = vadd.xlane.f32.xlu0 %v453
    %v455 = vpop.xlane.xlu0 %454
    %v456 = vsel %vm147, %v432, 0.0
    %457 = vadd.xlane.f32.xlu0 %v456
    %v458 = vpop.xlane.xlu0 %457
    %v459 = vsel %vm147, %v433, 0.0
    %460 = vadd.xlane.f32.xlu0 %v459
    %v461 = vpop.xlane.xlu0 %460
    %v462 = vsel %vm147, %v434, 0.0
    %463 = vadd.xlane.f32.xlu0 %v462
    %v464 = vpop.xlane.xlu0 %463
    %v465 = vmul.f32 %v455, %v380
    %v466 = vmul.f32 %v458, %v380
    %v467 = vmul.f32 %v461, %v380
    %v468 = vmul.f32 %v464, %v380
    %v469 = vsub.f32 %v431, %v465
    %v470 = vsub.f32 %v432, %v466
    %v471 = vsub.f32 %v433, %v467
    %v472 = vsub.f32 %v434, %v468
    %v473 = vmul.f32 %v469, %v469
    %v474 = vmul.f32 %v470, %v470
    %v475 = vmul.f32 %v471, %v471
    %v476 = vmul.f32 %v472, %v472
    %v477 = vsel %vm147, %v473, 0.0
    %478 = vadd.xlane.f32.xlu0 %v477
    %v479 = vpop.xlane.xlu0 %478
    %v480 = vsel %vm147, %v474, 0.0
    %481 = vadd.xlane.f32.xlu0 %v480
    %v482 = vpop.xlane.xlu0 %481
    %v483 = vsel %vm147, %v475, 0.0
    %484 = vadd.xlane.f32.xlu0 %v483
    %v485 = vpop.xlane.xlu0 %484
    %v486 = vsel %vm147, %v476, 0.0
    %487 = vadd.xlane.f32.xlu0 %v486
    %v488 = vpop.xlane.xlu0 %487
    %v489 = vmul.f32 %v479, %v380
    %v490 = vmul.f32 %v482, %v380
    %v491 = vmul.f32 %v485, %v380
    %v492 = vmul.f32 %v488, %v380
    %v493 = vadd.f32 %v489, 1e-05
    %v494 = vadd.f32 %v490, 1e-05
    %v495 = vadd.f32 %v491, 1e-05
    %v496 = vadd.f32 %v492, 1e-05
    %v497 = vrsqrt.pop %v493
    %v498 = vrsqrt.pop %v494
    %v499 = vrsqrt.pop %v495
    %v500 = vrsqrt.pop %v496
    %v501 = vmul.f32 %v469, %v497
    %v502 = vmul.f32 %v470, %v498
    %v503 = vmul.f32 %v471, %v499
    %v504 = vmul.f32 %v472, %v500
    %v506 = vlaneseq
    %v507 = vshrl.u32 %v506, 7
    %v508 = vsub.s32 0, %v507
    %v509 = vrot.slane %v450, %v508
    %510 = vrot.lane.b32.xlu0 %v509, 32
    %v511 = vpop.permute.xlu0 %510
    %v513 = vmul.f32 %v501, %v511
    %v514 = vmul.f32 %v502, %v511
    %v515 = vmul.f32 %v503, %v511
    %v516 = vmul.f32 %v504, %v511
    %v518 = vlaneseq
    %v519 = vshrl.u32 %v518, 7
    %v520 = vsub.s32 0, %v519
    %v521 = vrot.slane %v451, %v520
    %v523 = vadd.f32 %v513, %v521
    %v524 = vadd.f32 %v514, %v521
    %v525 = vadd.f32 %v515, %v521
    %v526 = vadd.f32 %v516, %v521
    %v528 = vlaneseq
    %v529 = vshrl.u32 %v528, 7
    %v530 = vsub.s32 0, %v529
    %v531 = vrot.slane %v447, %v530
    %536 = vrot.lane.b32.xlu0 %v435, 96
    %v537 = vpop.permute.xlu0 %536
    %538 = vrot.lane.b32.xlu0 %v436, 96
    %v539 = vpop.permute.xlu0 %538
    %540 = vrot.lane.b32.xlu0 %v437, 96
    %v541 = vpop.permute.xlu0 %540
    %542 = vrot.lane.b32.xlu0 %v438, 96
    %v543 = vpop.permute.xlu0 %542
    %548 = vrot.lane.b32.xlu0 %v531, 96
    %v549 = vpop.permute.xlu0 %548
    %v552 = vsel %vm147, %v523, 0
    %v555 = vsel %vm147, %v524, 0
    %v558 = vsel %vm147, %v525, 0
    %v561 = vsel %vm147, %v526, 0
    %563 = vmatprep.subr.mxu0 0.0
    %564 = vmatpush1.msra.mxu0 %v537
    %565 = vmatprep.subr.mxu0 0.0
    %566 = vmatpush1.msra.mxu0 %v539
    %567 = vmatprep.subr.mxu0 0.0
    %568 = vmatpush1.msra.mxu0 %v541
    %569 = vmatprep.subr.mxu0 0.0
    %570 = vmatpush1.msra.mxu0 %v543
    %571 = vmatprep.subr.mxu0 0.0
    %572 = vmatpush1.msra.mxu0 0.0
    %573 = vmatprep.subr.mxu0 0.0
    %574 = vmatpush1.msra.mxu0 0.0
    %575 = vmatprep.subr.mxu0 0.0
    %576 = vmatpush1.msra.mxu0 0.0
    %577 = vmatprep.subr.mxu0 0.0
    %578 = vmatpush1.msra.mxu0 0.0
    %579 = vmatprep.subr.mxu0 0.0
    %580 = vmatpush1.msra.mxu0 0.0
    %581 = vmatprep.subr.mxu0 0.0
    %582 = vmatpush1.msra.mxu0 0.0
    %583 = vmatprep.subr.mxu0 0.0
    %584 = vmatpush1.msra.mxu0 0.0
    %585 = vmatprep.subr.mxu0 0.0
    %586 = vmatpush1.msra.mxu0 0.0
    %587 = vmatprep.subr.mxu0 0.0
    %588 = vmatpush1.msra.mxu0 0.0
    %589 = vmatprep.subr.mxu0 0.0
    %590 = vmatpush1.msra.mxu0 0.0
    %591 = vmatprep.subr.mxu0 0.0
    %592 = vmatpush1.msra.mxu0 0.0
    %593 = vmatprep.subr.mxu0 0.0
    %594 = vmatpush1.msra.mxu0 0.0
    %595 = vmatprep.subr.mxu0 0.0
    %596 = vmatpush1.msra.mxu0 0.0
    %597 = vmatprep.subr.mxu0 0.0
    %598 = vmatpush1.msra.mxu0 0.0
    %599 = vmatprep.subr.mxu0 0.0
    %600 = vmatpush1.msra.mxu0 0.0
    %601 = vmatprep.subr.mxu0 0.0
    %602 = vmatpush1.msra.mxu0 0.0
    %603 = vmatprep.subr.mxu0 0.0
    %604 = vmatpush1.msra.mxu0 0.0
    %605 = vmatprep.subr.mxu0 0.0
    %606 = vmatpush1.msra.mxu0 0.0
    %607 = vmatprep.subr.mxu0 0.0
    %608 = vmatpush1.msra.mxu0 0.0
    %609 = vmatprep.subr.mxu0 0.0
    %610 = vmatpush1.msra.mxu0 0.0
    %611 = vmatprep.subr.mxu0 0.0
    %612 = vmatpush1.msra.mxu0 0.0
    %613 = vmatprep.subr.mxu0 0.0
    %614 = vmatpush1.msra.mxu0 0.0
    %615 = vmatprep.subr.mxu0 0.0
    %616 = vmatpush1.msra.mxu0 0.0
    %617 = vmatprep.subr.mxu0 0.0
    %618 = vmatpush1.msra.mxu0 0.0
    %619 = vmatprep.subr.mxu0 0.0
    %620 = vmatpush1.msra.mxu0 0.0
    %621 = vmatprep.subr.mxu0 0.0
    %622 = vmatpush1.msra.mxu0 0.0
    %623 = vmatprep.subr.mxu0 0.0
    %624 = vmatpush1.msra.mxu0 0.0
    %625 = vmatprep.subr.mxu0 0.0
    %626 = vmatpush1.msra.mxu0 0.0
    %627 = vmatprep.mubr.f32.mxu0 0.0
    %628 = vmatmul.mubr.f32.gmra.mrb[0].mxu0 %v552
    %v629 = vpop.f32.mrb[0].mxu0
    %v630 = vadd.f32 %v549, %v629
    %v631 = vpop.f32.mrb[0].mxu0
    %632 = vmatprep.mubr.f32.mxu0 0.0
    %633 = vmatmul.mubr.f32.gmra.mrb[0].mxu0 %v555
    %v634 = vpop.f32.mrb[0].mxu0
    %v635 = vadd.f32 %v549, %v634
    %v636 = vpop.f32.mrb[0].mxu0
    %637 = vmatprep.mubr.f32.mxu0 0.0
    %638 = vmatmul.mubr.f32.gmra.mrb[0].mxu0 %v558
    %v639 = vpop.f32.mrb[0].mxu0
    %v640 = vadd.f32 %v549, %v639
    %v641 = vpop.f32.mrb[0].mxu0
    %642 = vmatprep.mubr.f32.mxu0 0.0
    %643 = vmatmul.mubr.f32.gmra.mrb[0].mxu0 %v561
    %v644 = vpop.f32.mrb[0].mxu0
    %v645 = vadd.f32 %v549, %v644
    %v646 = vpop.f32.mrb[0].mxu0
    %647 = vdwg.mxu0
    %v650 = vlaneseq
    %v651 = vshrl.u32 %v650, 7
    %v652 = vsub.s32 0, %v651
    %v653 = vrot.slane %v448, %v652
    %v654 = vlaneseq
    %v655 = vshrl.u32 %v654, 7
    %v656 = vsub.s32 1, %v655
    %v657 = vrot.slane %v448, %v656
    %v659 = vlaneseq
    %v660 = vshrl.u32 %v659, 7
    %v661 = vsub.s32 0, %v660
    %v662 = vrot.slane %v449, %v661
    %v663 = vlaneseq
    %v664 = vshrl.u32 %v663, 7
    %v665 = vsub.s32 1, %v664
    %v666 = vrot.slane %v449, %v665
    %v667 = vld [vmem:[%s1] sm:$0xf]
    %v668 = vld [vmem:[%s1 + $0x4] sm:$0xf]
    %v671 = vcombine.low %v667, %v668
    %v673 = vsel %vm147, %v671, 0.0
    %674 = vadd.xlane.f32.xlu0 %v673
    %v675 = vpop.xlane.xlu0 %674
    %v676 = vmul.f32 %v675, %v380
    %v679 = vunpack.c.l.s4 839922192
    %v680 = vunpack.c.0.s8 %v679
    %v681 = vlaneseq
    %v682 = vshrl.u32 %v681, 7
    %v683 = vsub.s32 %v680, %v682
    %v684 = vrot.slane %v676, %v683
    %v686 = vunpack.c.l.s4 1985246804
    %v687 = vunpack.c.0.s8 %v686
    %v688 = vlaneseq
    %v689 = vshrl.u32 %v688, 7
    %v690 = vsub.s32 %v687, %v689
    %v691 = vrot.slane %v676, %v690
    %v694 = vsub.f32 %v667, %v684
    %v695 = vsub.f32 %v668, %v691
    %v696 = vmul.f32 %v694, %v694
    %v697 = vmul.f32 %v695, %v695
    %v700 = vcombine.low %v696, %v697
    %v702 = vsel %vm147, %v700, 0.0
    %703 = vadd.xlane.f32.xlu0 %v702
    %v704 = vpop.xlane.xlu0 %703
    %v705 = vmul.f32 %v704, %v380
    %v706 = vadd.f32 %v705, 1e-05
    %v707 = vrsqrt.pop %v706
    %v710 = vunpack.c.l.s4 839922192
    %v711 = vunpack.c.0.s8 %v710
    %v712 = vlaneseq
    %v713 = vshrl.u32 %v712, 7
    %v714 = vsub.s32 %v711, %v713
    %v715 = vrot.slane %v707, %v714
    %v717 = vunpack.c.l.s4 1985246804
    %v718 = vunpack.c.0.s8 %v717
    %v719 = vlaneseq
    %v720 = vshrl.u32 %v719, 7
    %v721 = vsub.s32 %v718, %v720
    %v722 = vrot.slane %v707, %v721
    %v725 = vmul.f32 %v694, %v715
    %v726 = vmul.f32 %v695, %v722
    %v727 = vcombine.high %v521, %v521
    %728 = vrot.lane.b32.xlu0 %v521, 96
    %v729 = vpop.permute.xlu0 %728
    %730 = vrot.lane.b32.xlu0 %v727, 96
    %v731 = vpop.permute.xlu0 %730
    %v734 = vmul.f32 %v725, %v729
    %v735 = vmul.f32 %v726, %v731
    %736 = vrot.lane.b32.xlu0 %v521, 64
    %v737 = vpop.permute.xlu0 %736
    %738 = vrot.lane.b32.xlu0 %v727, 64
    %v739 = vpop.permute.xlu0 %738
    %v742 = vadd.f32 %v734, %v737
    %v743 = vadd.f32 %v735, %v739
    %v746 = vcombine.low %v742, %v743
    %v747 = vsel %vm147, %v746, 0
    %749 = vmatprep.subr.mxu0 0.0
    %750 = vmatpush1.msra.mxu0 %v435
    %751 = vmatprep.subr.mxu0 0.0
    %752 = vmatpush1.msra.mxu0 %v436
    %753 = vmatprep.subr.mxu0 0.0
    %754 = vmatpush1.msra.mxu0 %v437
    %755 = vmatprep.subr.mxu0 0.0
    %756 = vmatpush1.msra.mxu0 %v438
    %757 = vmatprep.subr.mxu0 0.0
    %758 = vmatpush1.msra.mxu0 0.0
    %759 = vmatprep.subr.mxu0 0.0
    %760 = vmatpush1.msra.mxu0 0.0
    %761 = vmatprep.subr.mxu0 0.0
    %762 = vmatpush1.msra.mxu0 0.0
    %763 = vmatprep.subr.mxu0 0.0
    %764 = vmatpush1.msra.mxu0 0.0
    %765 = vmatprep.subr.mxu0 0.0
    %766 = vmatpush1.msra.mxu0 0.0
    %767 = vmatprep.subr.mxu0 0.0
    %768 = vmatpush1.msra.mxu0 0.0
    %769 = vmatprep.subr.mxu0 0.0
    %770 = vmatpush1.msra.mxu0 0.0
    %771 = vmatprep.subr.mxu0 0.0
    %772 = vmatpush1.msra.mxu0 0.0
    %773 = vmatprep.subr.mxu0 0.0
    %774 = vmatpush1.msra.mxu0 0.0
    %775 = vmatprep.subr.mxu0 0.0
    %776 = vmatpush1.msra.mxu0 0.0
    %777 = vmatprep.subr.mxu0 0.0
    %778 = vmatpush1.msra.mxu0 0.0
    %779 = vmatprep.subr.mxu0 0.0
    %780 = vmatpush1.msra.mxu0 0.0
    %781 = vmatprep.subr.mxu0 0.0
    %782 = vmatpush1.msra.mxu0 0.0
    %783 = vmatprep.subr.mxu0 0.0
    %784 = vmatpush1.msra.mxu0 0.0
    %785 = vmatprep.subr.mxu0 0.0
    %786 = vmatpush1.msra.mxu0 0.0
    %787 = vmatprep.subr.mxu0 0.0
    %788 = vmatpush1.msra.mxu0 0.0
    %789 = vmatprep.subr.mxu0 0.0
    %790 = vmatpush1.msra.mxu0 0.0
    %791 = vmatprep.subr.mxu0 0.0
    %792 = vmatpush1.msra.mxu0 0.0
    %793 = vmatprep.subr.mxu0 0.0
    %794 = vmatpush1.msra.mxu0 0.0
    %795 = vmatprep.subr.mxu0 0.0
    %796 = vmatpush1.msra.mxu0 0.0
    %797 = vmatprep.subr.mxu0 0.0
    %798 = vmatpush1.msra.mxu0 0.0
    %799 = vmatprep.subr.mxu0 0.0
    %800 = vmatpush1.msra.mxu0 0.0
    %801 = vmatprep.subr.mxu0 0.0
    %802 = vmatpush1.msra.mxu0 0.0
    %803 = vmatprep.subr.mxu0 0.0
    %804 = vmatpush1.msra.mxu0 0.0
    %805 = vmatprep.subr.mxu0 0.0
    %806 = vmatpush1.msra.mxu0 0.0
    %807 = vmatprep.subr.mxu0 0.0
    %808 = vmatpush1.msra.mxu0 0.0
    %809 = vmatprep.subr.mxu0 0.0
    %810 = vmatpush1.msra.mxu0 0.0
    %811 = vmatprep.subr.mxu0 0.0
    %812 = vmatpush1.msra.mxu0 0.0
    %813 = vmatprep.mubr.f32.mxu0 0.0
    %814 = vmatmul.mubr.f32.gmra.mrb[0].mxu0 %v747
    %v815 = vpop.f32.mrb[0].mxu0
    %v816 = vadd.f32 %v531, %v815
    %v817 = vpop.f32.mrb[0].mxu0
    %818 = vdwg.mxu0
    %v820 = vcombine.high %v816, %v816
    %v821 = vsel %vm147, %v816, 0
    %v824 = vsel %vm147, %v630, 0
    %v827 = vsel %vm147, %v635, 0
    %829 = vmatprep.subr.mxu0 0.0
    %830 = vmatpush1.xpose.msra.mxu0 %v824
    %831 = vmatprep.subr.mxu0 0.0
    %832 = vmatpush1.xpose.msra.mxu0 %v827
    %833 = vmatprep.subr.mxu0 0.0
    %834 = vmatpush1.xpose.msra.mxu0 0.0
    %835 = vmatprep.subr.mxu0 0.0
    %836 = vmatpush1.xpose.msra.mxu0 0.0
    %837 = vmatprep.subr.mxu0 0.0
    %838 = vmatpush1.xpose.msra.mxu0 0.0
    %839 = vmatprep.subr.mxu0 0.0
    %840 = vmatpush1.xpose.msra.mxu0 0.0
    %841 = vmatprep.subr.mxu0 0.0
    %842 = vmatpush1.xpose.msra.mxu0 0.0
    %843 = vmatprep.subr.mxu0 0.0
    %844 = vmatpush1.xpose.msra.mxu0 0.0
    %845 = vmatprep.subr.mxu0 0.0
    %846 = vmatpush1.xpose.msra.mxu0 0.0
    %847 = vmatprep.subr.mxu0 0.0
    %848 = vmatpush1.xpose.msra.mxu0 0.0
    %849 = vmatprep.subr.mxu0 0.0
    %850 = vmatpush1.xpose.msra.mxu0 0.0
    %851 = vmatprep.subr.mxu0 0.0
    %852 = vmatpush1.xpose.msra.mxu0 0.0
    %853 = vmatprep.subr.mxu0 0.0
    %854 = vmatpush1.xpose.msra.mxu0 0.0
    %855 = vmatprep.subr.mxu0 0.0
    %856 = vmatpush1.xpose.msra.mxu0 0.0
    %857 = vmatprep.subr.mxu0 0.0
    %858 = vmatpush1.xpose.msra.mxu0 0.0
    %859 = vmatprep.subr.mxu0 0.0
    %860 = vmatpush1.xpose.msra.mxu0 0.0
    %861 = vmatprep.subr.mxu0 0.0
    %862 = vmatpush1.xpose.msra.mxu0 0.0
    %863 = vmatprep.subr.mxu0 0.0
    %864 = vmatpush1.xpose.msra.mxu0 0.0
    %865 = vmatprep.subr.mxu0 0.0
    %866 = vmatpush1.xpose.msra.mxu0 0.0
    %867 = vmatprep.subr.mxu0 0.0
    %868 = vmatpush1.xpose.msra.mxu0 0.0
    %869 = vmatprep.subr.mxu0 0.0
    %870 = vmatpush1.xpose.msra.mxu0 0.0
    %871 = vmatprep.subr.mxu0 0.0
    %872 = vmatpush1.xpose.msra.mxu0 0.0
    %873 = vmatprep.subr.mxu0 0.0
    %874 = vmatpush1.xpose.msra.mxu0 0.0
    %875 = vmatprep.subr.mxu0 0.0
    %876 = vmatpush1.xpose.msra.mxu0 0.0
    %877 = vmatprep.subr.mxu0 0.0
    %878 = vmatpush1.xpose.msra.mxu0 0.0
    %879 = vmatprep.subr.mxu0 0.0
    %880 = vmatpush1.xpose.msra.mxu0 0.0
    %881 = vmatprep.subr.mxu0 0.0
    %882 = vmatpush1.xpose.msra.mxu0 0.0
    %883 = vmatprep.subr.mxu0 0.0
    %884 = vmatpush1.xpose.msra.mxu0 0.0
    %885 = vmatprep.subr.mxu0 0.0
    %886 = vmatpush1.xpose.msra.mxu0 0.0
    %887 = vmatprep.subr.mxu0 0.0
    %888 = vmatpush1.xpose.msra.mxu0 0.0
    %889 = vmatprep.subr.mxu0 0.0
    %890 = vmatpush1.xpose.msra.mxu0 0.0
    %891 = vmatprep.subr.mxu0 0.0
    %892 = vmatpush1.xpose.msra.mxu0 0.0
    %893 = vmatprep.mubr.f32.mxu0 0.0
    %894 = vmatmul.mubr.f32.gmra.mrb[0].mxu0 %v821
    %v895 = vpop.f32.mrb[0].mxu0
    %v896 = vadd.f32 0.0, %v895
    %v897 = vpop.f32.mrb[0].mxu0
    %898 = vdwg.mxu0
    %v899 = vsel %vm147, %v820, 0
    %v902 = vsel %vm147, %v640, 0
    %v905 = vsel %vm147, %v645, 0
    %907 = vmatprep.subr.mxu0 0.0
    %908 = vmatpush1.xpose.msra.mxu0 %v902
    %909 = vmatprep.subr.mxu0 0.0
    %910 = vmatpush1.xpose.msra.mxu0 %v905
    %911 = vmatprep.subr.mxu0 0.0
    %912 = vmatpush1.xpose.msra.mxu0 0.0
    %913 = vmatprep.subr.mxu0 0.0
    %914 = vmatpush1.xpose.msra.mxu0 0.0
    %915 = vmatprep.subr.mxu0 0.0
    %916 = vmatpush1.xpose.msra.mxu0 0.0
    %917 = vmatprep.subr.mxu0 0.0
    %918 = vmatpush1.xpose.msra.mxu0 0.0
    %919 = vmatprep.subr.mxu0 0.0
    %920 = vmatpush1.xpose.msra.mxu0 0.0
    %921 = vmatprep.subr.mxu0 0.0
    %922 = vmatpush1.xpose.msra.mxu0 0.0
    %923 = vmatprep.subr.mxu0 0.0
    %924 = vmatpush1.xpose.msra.mxu0 0.0
    %925 = vmatprep.subr.mxu0 0.0
    %926 = vmatpush1.xpose.msra.mxu0 0.0
    %927 = vmatprep.subr.mxu0 0.0
    %928 = vmatpush1.xpose.msra.mxu0 0.0
    %929 = vmatprep.subr.mxu0 0.0
    %930 = vmatpush1.xpose.msra.mxu0 0.0
    %931 = vmatprep.subr.mxu0 0.0
    %932 = vmatpush1.xpose.msra.mxu0 0.0
    %933 = vmatprep.subr.mxu0 0.0
    %934 = vmatpush1.xpose.msra.mxu0 0.0
    %935 = vmatprep.subr.mxu0 0.0
    %936 = vmatpush1.xpose.msra.mxu0 0.0
    %937 = vmatprep.subr.mxu0 0.0
    %938 = vmatpush1.xpose.msra.mxu0 0.0
    %939 = vmatprep.subr.mxu0 0.0
    %940 = vmatpush1.xpose.msra.mxu0 0.0
    %941 = vmatprep.subr.mxu0 0.0
    %942 = vmatpush1.xpose.msra.mxu0 0.0
    %943 = vmatprep.subr.mxu0 0.0
    %944 = vmatpush1.xpose.msra.mxu0 0.0
    %945 = vmatprep.subr.mxu0 0.0
    %946 = vmatpush1.xpose.msra.mxu0 0.0
    %947 = vmatprep.subr.mxu0 0.0
    %948 = vmatpush1.xpose.msra.mxu0 0.0
    %949 = vmatprep.subr.mxu0 0.0
    %950 = vmatpush1.xpose.msra.mxu0 0.0
    %951 = vmatprep.subr.mxu0 0.0
    %952 = vmatpush1.xpose.msra.mxu0 0.0
    %953 = vmatprep.subr.mxu0 0.0
    %954 = vmatpush1.xpose.msra.mxu0 0.0
    %955 = vmatprep.subr.mxu0 0.0
    %956 = vmatpush1.xpose.msra.mxu0 0.0
    %957 = vmatprep.subr.mxu0 0.0
    %958 = vmatpush1.xpose.msra.mxu0 0.0
    %959 = vmatprep.subr.mxu0 0.0
    %960 = vmatpush1.xpose.msra.mxu0 0.0
    %961 = vmatprep.subr.mxu0 0.0
    %962 = vmatpush1.xpose.msra.mxu0 0.0
    %963 = vmatprep.subr.mxu0 0.0
    %964 = vmatpush1.xpose.msra.mxu0 0.0
    %965 = vmatprep.subr.mxu0 0.0
    %966 = vmatpush1.xpose.msra.mxu0 0.0
    %967 = vmatprep.subr.mxu0 0.0
    %968 = vmatpush1.xpose.msra.mxu0 0.0
    %969 = vmatprep.subr.mxu0 0.0
    %970 = vmatpush1.xpose.msra.mxu0 0.0
    %971 = vmatprep.mubr.f32.mxu0 0.0
    %972 = vmatmul.mubr.f32.gmra.mrb[0].mxu0 %v899
    %v973 = vpop.f32.mrb[0].mxu0
    %v974 = vadd.f32 0.0, %v973
    %v975 = vpop.f32.mrb[0].mxu0
    %976 = vdwg.mxu0
    %v977 = vmul.f32 %v896, 0.17677669
    %v978 = vmul.f32 %v974, 0.17677669
    %vm979 = vcmask 125952
    %v980 = vsel %vm979, %v977, -inf
    %v981 = vrot.slane %v980, 4
    %v982 = vmax.f32 %v980, %v981
    %v983 = vrot.slane %v982, 2
    %v984 = vmax.f32 %v982, %v983
    %v985 = vrot.slane %v984, 1
    %v986 = vmax.f32 %v984, %v985
    %v987 = vsel %vm979, %v978, -inf
    %v988 = vrot.slane %v987, 4
    %v989 = vmax.f32 %v987, %v988
    %v990 = vrot.slane %v989, 2
    %v991 = vmax.f32 %v989, %v990
    %v992 = vrot.slane %v991, 1
    %v993 = vmax.f32 %v991, %v992
    %v994 = vsub.f32 %v977, %v986
    %v995 = vsub.f32 %v978, %v993
    %v996 = vmul.f32 %v994, 1.442695
    %v997 = vpow.pop %v996
    %v998 = vmul.f32 %v995, 1.442695
    %v999 = vpow.pop %v998
    %v1000 = vsel %vm979, %v997, 0.0
    %v1001 = vrot.slane %v1000, 4
    %v1002 = vadd.f32 %v1000, %v1001
    %v1003 = vrot.slane %v1002, 2
    %v1004 = vadd.f32 %v1002, %v1003
    %v1005 = vrot.slane %v1004, 1
    %v1006 = vadd.f32 %v1004, %v1005
    %v1007 = vsel %vm979, %v999, 0.0
    %v1008 = vrot.slane %v1007, 4
    %v1009 = vadd.f32 %v1007, %v1008
    %v1010 = vrot.slane %v1009, 2
    %v1011 = vadd.f32 %v1009, %v1010
    %v1012 = vrot.slane %v1011, 1
    %v1013 = vadd.f32 %v1011, %v1012
    %v1014 = vrcp.pop %v1006
    %v1015 = vrcp.pop %v1013
    %v1016 = vmul.f32 %v997, %v1014
    %v1017 = vmul.f32 %v999, %v1015
    %v1018 = vadd.f32 %v1016, 1e-08
    %v1019 = vadd.f32 %v1017, 1e-08
    %v1020 = vsel %vm979, %v1018, 0.0
    %1021 = vadd.xlane.f32.xlu0 %v1020
    %v1022 = vpop.xlane.xlu0 %1021
    %v1023 = vsel %vm979, %v1019, 0.0
    %1024 = vadd.xlane.f32.xlu0 %v1023
    %v1025 = vpop.xlane.xlu0 %1024
    %v1026 = vrcp.pop %v1022
    %v1027 = vmul.f32 %v1018, %v1026
    %v1028 = vrcp.pop %v1025
    %v1029 = vmul.f32 %v1019, %v1028
    %1030 = vrot.lane.b32.xlu0 %v630, 96
    %v1031 = vpop.permute.xlu0 %1030
    %1032 = vrot.lane.b32.xlu0 %v635, 96
    %v1033 = vpop.permute.xlu0 %1032
    %vm1036 = vcmask 130048
    %v1038 = vsel %vm1036, %v1027, 0
    %1040 = vmatprep.subr.mxu0 0.0
    %1041 = vmatpush1.msra.mxu0 %v1031
    %1042 = vmatprep.subr.mxu0 0.0
    %1043 = vmatpush1.msra.mxu0 %v1033
    %1044 = vmatprep.subr.mxu0 0.0
    %1045 = vmatpush1.msra.mxu0 0.0
    %1046 = vmatprep.subr.mxu0 0.0
    %1047 = vmatpush1.msra.mxu0 0.0
    %1048 = vmatprep.subr.mxu0 0.0
    %1049 = vmatpush1.msra.mxu0 0.0
    %1050 = vmatprep.subr.mxu0 0.0
    %1051 = vmatpush1.msra.mxu0 0.0
    %1052 = vmatprep.subr.mxu0 0.0
    %1053 = vmatpush1.msra.mxu0 0.0
    %1054 = vmatprep.subr.mxu0 0.0
    %1055 = vmatpush1.msra.mxu0 0.0
    %1056 = vmatprep.subr.mxu0 0.0
    %1057 = vmatpush1.msra.mxu0 0.0
    %1058 = vmatprep.subr.mxu0 0.0
    %1059 = vmatpush1.msra.mxu0 0.0
    %1060 = vmatprep.subr.mxu0 0.0
    %1061 = vmatpush1.msra.mxu0 0.0
    %1062 = vmatprep.subr.mxu0 0.0
    %1063 = vmatpush1.msra.mxu0 0.0
    %1064 = vmatprep.subr.mxu0 0.0
    %1065 = vmatpush1.msra.mxu0 0.0
    %1066 = vmatprep.subr.mxu0 0.0
    %1067 = vmatpush1.msra.mxu0 0.0
    %1068 = vmatprep.subr.mxu0 0.0
    %1069 = vmatpush1.msra.mxu0 0.0
    %1070 = vmatprep.subr.mxu0 0.0
    %1071 = vmatpush1.msra.mxu0 0.0
    %1072 = vmatprep.subr.mxu0 0.0
    %1073 = vmatpush1.msra.mxu0 0.0
    %1074 = vmatprep.subr.mxu0 0.0
    %1075 = vmatpush1.msra.mxu0 0.0
    %1076 = vmatprep.subr.mxu0 0.0
    %1077 = vmatpush1.msra.mxu0 0.0
    %1078 = vmatprep.subr.mxu0 0.0
    %1079 = vmatpush1.msra.mxu0 0.0
    %1080 = vmatprep.subr.mxu0 0.0
    %1081 = vmatpush1.msra.mxu0 0.0
    %1082 = vmatprep.subr.mxu0 0.0
    %1083 = vmatpush1.msra.mxu0 0.0
    %1084 = vmatprep.subr.mxu0 0.0
    %1085 = vmatpush1.msra.mxu0 0.0
    %1086 = vmatprep.subr.mxu0 0.0
    %1087 = vmatpush1.msra.mxu0 0.0
    %1088 = vmatprep.subr.mxu0 0.0
    %1089 = vmatpush1.msra.mxu0 0.0
    %1090 = vmatprep.subr.mxu0 0.0
    %1091 = vmatpush1.msra.mxu0 0.0
    %1092 = vmatprep.subr.mxu0 0.0
    %1093 = vmatpush1.msra.mxu0 0.0
    %1094 = vmatprep.subr.mxu0 0.0
    %1095 = vmatpush1.msra.mxu0 0.0
    %1096 = vmatprep.subr.mxu0 0.0
    %1097 = vmatpush1.msra.mxu0 0.0
    %1098 = vmatprep.subr.mxu0 0.0
    %1099 = vmatpush1.msra.mxu0 0.0
    %1100 = vmatprep.subr.mxu0 0.0
    %1101 = vmatpush1.msra.mxu0 0.0
    %1102 = vmatprep.subr.mxu0 0.0
    %1103 = vmatpush1.msra.mxu0 0.0
    %1104 = vmatprep.mubr.f32.mxu0 0.0
    %1105 = vmatmul.mubr.f32.gmra.mrb[0].mxu0 %v1038
    %v1106 = vpop.f32.mrb[0].mxu0
    %v1107 = vadd.f32 0.0, %v1106
    %v1108 = vpop.f32.mrb[0].mxu0
    %1109 = vdwg.mxu0
    %1110 = vrot.lane.b32.xlu0 %v640, 96
    %v1111 = vpop.permute.xlu0 %1110
    %1112 = vrot.lane.b32.xlu0 %v645, 96
    %v1113 = vpop.permute.xlu0 %1112
    %v1117 = vsel %vm1036, %v1029, 0
    %1119 = vmatprep.subr.mxu0 0.0
    %1120 = vmatpush1.msra.mxu0 %v1111
    %1121 = vmatprep.subr.mxu0 0.0
    %1122 = vmatpush1.msra.mxu0 %v1113
    %1123 = vmatprep.subr.mxu0 0.0
    %1124 = vmatpush1.msra.mxu0 0.0
    %1125 = vmatprep.subr.mxu0 0.0
    %1126 = vmatpush1.msra.mxu0 0.0
    %1127 = vmatprep.subr.mxu0 0.0
    %1128 = vmatpush1.msra.mxu0 0.0
    %1129 = vmatprep.subr.mxu0 0.0
    %1130 = vmatpush1.msra.mxu0 0.0
    %1131 = vmatprep.subr.mxu0 0.0
    %1132 = vmatpush1.msra.mxu0 0.0
    %1133 = vmatprep.subr.mxu0 0.0
    %1134 = vmatpush1.msra.mxu0 0.0
    %1135 = vmatprep.subr.mxu0 0.0
    %1136 = vmatpush1.msra.mxu0 0.0
    %1137 = vmatprep.subr.mxu0 0.0
    %1138 = vmatpush1.msra.mxu0 0.0
    %1139 = vmatprep.subr.mxu0 0.0
    %1140 = vmatpush1.msra.mxu0 0.0
    %1141 = vmatprep.subr.mxu0 0.0
    %1142 = vmatpush1.msra.mxu0 0.0
    %1143 = vmatprep.subr.mxu0 0.0
    %1144 = vmatpush1.msra.mxu0 0.0
    %1145 = vmatprep.subr.mxu0 0.0
    %1146 = vmatpush1.msra.mxu0 0.0
    %1147 = vmatprep.subr.mxu0 0.0
    %1148 = vmatpush1.msra.mxu0 0.0
    %1149 = vmatprep.subr.mxu0 0.0
    %1150 = vmatpush1.msra.mxu0 0.0
    %1151 = vmatprep.subr.mxu0 0.0
    %1152 = vmatpush1.msra.mxu0 0.0
    %1153 = vmatprep.subr.mxu0 0.0
    %1154 = vmatpush1.msra.mxu0 0.0
    %1155 = vmatprep.subr.mxu0 0.0
    %1156 = vmatpush1.msra.mxu0 0.0
    %1157 = vmatprep.subr.mxu0 0.0
    %1158 = vmatpush1.msra.mxu0 0.0
    %1159 = vmatprep.subr.mxu0 0.0
    %1160 = vmatpush1.msra.mxu0 0.0
    %1161 = vmatprep.subr.mxu0 0.0
    %1162 = vmatpush1.msra.mxu0 0.0
    %1163 = vmatprep.subr.mxu0 0.0
    %1164 = vmatpush1.msra.mxu0 0.0
    %1165 = vmatprep.subr.mxu0 0.0
    %1166 = vmatpush1.msra.mxu0 0.0
    %1167 = vmatprep.subr.mxu0 0.0
    %1168 = vmatpush1.msra.mxu0 0.0
    %1169 = vmatprep.subr.mxu0 0.0
    %1170 = vmatpush1.msra.mxu0 0.0
    %1171 = vmatprep.subr.mxu0 0.0
    %1172 = vmatpush1.msra.mxu0 0.0
    %1173 = vmatprep.subr.mxu0 0.0
    %1174 = vmatpush1.msra.mxu0 0.0
    %1175 = vmatprep.subr.mxu0 0.0
    %1176 = vmatpush1.msra.mxu0 0.0
    %1177 = vmatprep.subr.mxu0 0.0
    %1178 = vmatpush1.msra.mxu0 0.0
    %1179 = vmatprep.subr.mxu0 0.0
    %1180 = vmatpush1.msra.mxu0 0.0
    %1181 = vmatprep.subr.mxu0 0.0
    %1182 = vmatpush1.msra.mxu0 0.0
    %1183 = vmatprep.mubr.f32.mxu0 0.0
    %1184 = vmatmul.mubr.f32.gmra.mrb[0].mxu0 %v1117
    %v1185 = vpop.f32.mrb[0].mxu0
    %v1186 = vadd.f32 0.0, %v1185
    %v1187 = vpop.f32.mrb[0].mxu0
    %1188 = vdwg.mxu0
    %v1191 = vcombine.low %v1107, %v1186
    %1196 = vrot.lane.b32.xlu0 %v435, 32
    %v1197 = vpop.permute.xlu0 %1196
    %1198 = vrot.lane.b32.xlu0 %v439, 32
    %v1199 = vpop.permute.xlu0 %1198
    %1200 = vrot.lane.b32.xlu0 %v436, 32
    %v1201 = vpop.permute.xlu0 %1200
    %1202 = vrot.lane.b32.xlu0 %v440, 32
    %v1203 = vpop.permute.xlu0 %1202
    %1204 = vrot.lane.b32.xlu0 %v437, 32
    %v1205 = vpop.permute.xlu0 %1204
    %1206 = vrot.lane.b32.xlu0 %v441, 32
    %v1207 = vpop.permute.xlu0 %1206
    %1208 = vrot.lane.b32.xlu0 %v438, 32
    %v1209 = vpop.permute.xlu0 %1208
    %1210 = vrot.lane.b32.xlu0 %v442, 32
    %v1211 = vpop.permute.xlu0 %1210
    %v1212 = vsel %vm147, %v1197, %v1199
    %v1213 = vsel %vm147, %v1201, %v1203
    %v1214 = vsel %vm147, %v1205, %v1207
    %v1215 = vsel %vm147, %v1209, %v1211
    %1220 = vrot.lane.b32.xlu0 %v653, 32
    %v1221 = vpop.permute.xlu0 %1220
    %1222 = vrot.lane.b32.xlu0 %v657, 32
    %v1223 = vpop.permute.xlu0 %1222
    %v1224 = vsel %vm147, %v1221, %v1223
    %v1226 = vsel %vm147, %v1191, 0
    %1228 = vmatprep.subr.mxu0 0.0
    %1229 = vmatpush1.msra.mxu0 %v1212
    %1230 = vmatprep.subr.mxu0 0.0
    %1231 = vmatpush1.msra.mxu0 %v1213
    %1232 = vmatprep.subr.mxu0 0.0
    %1233 = vmatpush1.msra.mxu0 %v1214
    %1234 = vmatprep.subr.mxu0 0.0
    %1235 = vmatpush1.msra.mxu0 %v1215
    %1236 = vmatprep.subr.mxu0 0.0
    %1237 = vmatpush1.msra.mxu0 0.0
    %1238 = vmatprep.subr.mxu0 0.0
    %1239 = vmatpush1.msra.mxu0 0.0
    %1240 = vmatprep.subr.mxu0 0.0
    %1241 = vmatpush1.msra.mxu0 0.0
    %1242 = vmatprep.subr.mxu0 0.0
    %1243 = vmatpush1.msra.mxu0 0.0
    %1244 = vmatprep.subr.mxu0 0.0
    %1245 = vmatpush1.msra.mxu0 0.0
    %1246 = vmatprep.subr.mxu0 0.0
    %1247 = vmatpush1.msra.mxu0 0.0
    %1248 = vmatprep.subr.mxu0 0.0
    %1249 = vmatpush1.msra.mxu0 0.0
    %1250 = vmatprep.subr.mxu0 0.0
    %1251 = vmatpush1.msra.mxu0 0.0
    %1252 = vmatprep.subr.mxu0 0.0
    %1253 = vmatpush1.msra.mxu0 0.0
    %1254 = vmatprep.subr.mxu0 0.0
    %1255 = vmatpush1.msra.mxu0 0.0
    %1256 = vmatprep.subr.mxu0 0.0
    %1257 = vmatpush1.msra.mxu0 0.0
    %1258 = vmatprep.subr.mxu0 0.0
    %1259 = vmatpush1.msra.mxu0 0.0
    %1260 = vmatprep.subr.mxu0 0.0
    %1261 = vmatpush1.msra.mxu0 0.0
    %1262 = vmatprep.subr.mxu0 0.0
    %1263 = vmatpush1.msra.mxu0 0.0
    %1264 = vmatprep.subr.mxu0 0.0
    %1265 = vmatpush1.msra.mxu0 0.0
    %1266 = vmatprep.subr.mxu0 0.0
    %1267 = vmatpush1.msra.mxu0 0.0
    %1268 = vmatprep.subr.mxu0 0.0
    %1269 = vmatpush1.msra.mxu0 0.0
    %1270 = vmatprep.subr.mxu0 0.0
    %1271 = vmatpush1.msra.mxu0 0.0
    %1272 = vmatprep.subr.mxu0 0.0
    %1273 = vmatpush1.msra.mxu0 0.0
    %1274 = vmatprep.subr.mxu0 0.0
    %1275 = vmatpush1.msra.mxu0 0.0
    %1276 = vmatprep.subr.mxu0 0.0
    %1277 = vmatpush1.msra.mxu0 0.0
    %1278 = vmatprep.subr.mxu0 0.0
    %1279 = vmatpush1.msra.mxu0 0.0
    %1280 = vmatprep.subr.mxu0 0.0
    %1281 = vmatpush1.msra.mxu0 0.0
    %1282 = vmatprep.subr.mxu0 0.0
    %1283 = vmatpush1.msra.mxu0 0.0
    %1284 = vmatprep.subr.mxu0 0.0
    %1285 = vmatpush1.msra.mxu0 0.0
    %1286 = vmatprep.subr.mxu0 0.0
    %1287 = vmatpush1.msra.mxu0 0.0
    %1288 = vmatprep.subr.mxu0 0.0
    %1289 = vmatpush1.msra.mxu0 0.0
    %1290 = vmatprep.subr.mxu0 0.0
    %1291 = vmatpush1.msra.mxu0 0.0
    %1292 = vmatprep.mubr.f32.mxu0 0.0
    %1293 = vmatmul.mubr.f32.gmra.mrb[0].mxu0 %v1226
    %v1294 = vpop.f32.mrb[0].mxu0
    %v1295 = vadd.f32 %v1224, %v1294
    %v1296 = vpop.f32.mrb[0].mxu0
    %1297 = vdwg.mxu0
    %1302 = vrot.lane.b32.xlu0 %v439, 64
    %v1303 = vpop.permute.xlu0 %1302
    %1304 = vrot.lane.b32.xlu0 %v443, 64
    %v1305 = vpop.permute.xlu0 %1304
    %1306 = vrot.lane.b32.xlu0 %v440, 64
    %v1307 = vpop.permute.xlu0 %1306
    %1308 = vrot.lane.b32.xlu0 %v444, 64
    %v1309 = vpop.permute.xlu0 %1308
    %1310 = vrot.lane.b32.xlu0 %v441, 64
    %v1311 = vpop.permute.xlu0 %1310
    %1312 = vrot.lane.b32.xlu0 %v445, 64
    %v1313 = vpop.permute.xlu0 %1312
    %1314 = vrot.lane.b32.xlu0 %v442, 64
    %v1315 = vpop.permute.xlu0 %1314
    %1316 = vrot.lane.b32.xlu0 %v446, 64
    %v1317 = vpop.permute.xlu0 %1316
    %v1318 = vsel %vm91, %v1303, %v1305
    %v1319 = vsel %vm91, %v1307, %v1309
    %v1320 = vsel %vm91, %v1311, %v1313
    %v1321 = vsel %vm91, %v1315, %v1317
    %1326 = vrot.lane.b32.xlu0 %v662, 64
    %v1327 = vpop.permute.xlu0 %1326
    %1328 = vrot.lane.b32.xlu0 %v666, 64
    %v1329 = vpop.permute.xlu0 %1328
    %v1330 = vsel %vm91, %v1327, %v1329
    %v1332 = vsel %vm147, %v671, 0
    %1334 = vmatprep.subr.mxu0 0.0
    %1335 = vmatpush1.msra.mxu0 %v1318
    %1336 = vmatprep.subr.mxu0 0.0
    %1337 = vmatpush1.msra.mxu0 %v1319
    %1338 = vmatprep.subr.mxu0 0.0
    %1339 = vmatpush1.msra.mxu0 %v1320
    %1340 = vmatprep.subr.mxu0 0.0
    %1341 = vmatpush1.msra.mxu0 %v1321
    %1342 = vmatprep.subr.mxu0 0.0
    %1343 = vmatpush1.msra.mxu0 0.0
    %1344 = vmatprep.subr.mxu0 0.0
    %1345 = vmatpush1.msra.mxu0 0.0
    %1346 = vmatprep.subr.mxu0 0.0
    %1347 = vmatpush1.msra.mxu0 0.0
    %1348 = vmatprep.subr.mxu0 0.0
    %1349 = vmatpush1.msra.mxu0 0.0
    %1350 = vmatprep.subr.mxu0 0.0
    %1351 = vmatpush1.msra.mxu0 0.0
    %1352 = vmatprep.subr.mxu0 0.0
    %1353 = vmatpush1.msra.mxu0 0.0
    %1354 = vmatprep.subr.mxu0 0.0
    %1355 = vmatpush1.msra.mxu0 0.0
    %1356 = vmatprep.subr.mxu0 0.0
    %1357 = vmatpush1.msra.mxu0 0.0
    %1358 = vmatprep.subr.mxu0 0.0
    %1359 = vmatpush1.msra.mxu0 0.0
    %1360 = vmatprep.subr.mxu0 0.0
    %1361 = vmatpush1.msra.mxu0 0.0
    %1362 = vmatprep.subr.mxu0 0.0
    %1363 = vmatpush1.msra.mxu0 0.0
    %1364 = vmatprep.subr.mxu0 0.0
    %1365 = vmatpush1.msra.mxu0 0.0
    %1366 = vmatprep.subr.mxu0 0.0
    %1367 = vmatpush1.msra.mxu0 0.0
    %1368 = vmatprep.subr.mxu0 0.0
    %1369 = vmatpush1.msra.mxu0 0.0
    %1370 = vmatprep.subr.mxu0 0.0
    %1371 = vmatpush1.msra.mxu0 0.0
    %1372 = vmatprep.subr.mxu0 0.0
    %1373 = vmatpush1.msra.mxu0 0.0
    %1374 = vmatprep.subr.mxu0 0.0
    %1375 = vmatpush1.msra.mxu0 0.0
    %1376 = vmatprep.subr.mxu0 0.0
    %1377 = vmatpush1.msra.mxu0 0.0
    %1378 = vmatprep.subr.mxu0 0.0
    %1379 = vmatpush1.msra.mxu0 0.0
    %1380 = vmatprep.subr.mxu0 0.0
    %1381 = vmatpush1.msra.mxu0 0.0
    %1382 = vmatprep.subr.mxu0 0.0
    %1383 = vmatpush1.msra.mxu0 0.0
    %1384 = vmatprep.subr.mxu0 0.0
    %1385 = vmatpush1.msra.mxu0 0.0
    %1386 = vmatprep.subr.mxu0 0.0
    %1387 = vmatpush1.msra.mxu0 0.0
    %1388 = vmatprep.subr.mxu0 0.0
    %1389 = vmatpush1.msra.mxu0 0.0
    %1390 = vmatprep.subr.mxu0 0.0
    %1391 = vmatpush1.msra.mxu0 0.0
    %1392 = vmatprep.subr.mxu0 0.0
    %1393 = vmatpush1.msra.mxu0 0.0
    %1394 = vmatprep.subr.mxu0 0.0
    %1395 = vmatpush1.msra.mxu0 0.0
    %1396 = vmatprep.subr.mxu0 0.0
    %1397 = vmatpush1.msra.mxu0 0.0
    %1398 = vmatprep.mubr.f32.mxu0 0.0
    %1399 = vmatmul.mubr.f32.gmra.mrb[0].mxu0 %v1332
    %v1400 = vpop.f32.mrb[0].mxu0
    %v1401 = vadd.f32 %v1330, %v1400
    %v1402 = vpop.f32.mrb[0].mxu0
    %1403 = vdwg.mxu0
    %v1404 = vadd.f32 %v1295, %v1401
    %v1405 = vxor.u32 %v1404, 2147483648
    %v1406 = vmul.f32 %v1405, 1.442695
    %v1407 = vpow.pop %v1406
    %v1408 = vadd.f32 %v1407, 1.0
    %v1409 = vrcp.pop %v1408
    %v1410 = vmul.f32 1.0, %v1409
    %1412 = vrot.lane.b32.xlu0 %v1401, 64
    %v1413 = vpop.permute.xlu0 %1412
    %v1415 = vmul.f32 %v1410, %v1413
    %1417 = vrot.lane.b32.xlu0 %v1415, 64
    %v1418 = vpop.permute.xlu0 %1417
    %v1420 = vadd.f32 %v1295, %v1418
    %v1421 = vtanh.pop %v1420
    %v1422 = vsub.f32 1.0, %v1410
    %1424 = vrot.lane.b32.xlu0 %v1421, 96
    %v1425 = vpop.permute.xlu0 %1424
    %v1427 = vmul.f32 %v1422, %v1425
    %1428 = vrot.lane.b32.xlu0 %v671, 32
    %v1429 = vpop.permute.xlu0 %1428
    %v1431 = vmul.f32 %v1410, %v1429
    %v1432 = vadd.f32 %v1427, %v1431
    %1434 = vrot.lane.b32.xlu0 %v1432, 96
    %v1435 = vpop.permute.xlu0 %1434
    %v1437 = vsel %vm147, %v1435, 0.0
    %1438 = vadd.xlane.f32.xlu0 %v1437
    %v1439 = vpop.xlane.xlu0 %1438
    %v1440 = vmul.f32 %v1439, %v380
    %v1441 = vsub.f32 %v1432, %v1440
    %v1442 = vmul.f32 %v1441, %v1441
    %1444 = vrot.lane.b32.xlu0 %v1442, 96
    %v1445 = vpop.permute.xlu0 %1444
    %v1447 = vsel %vm147, %v1445, 0.0
    %1448 = vadd.xlane.f32.xlu0 %v1447
    %v1449 = vpop.xlane.xlu0 %1448
    %v1450 = vmul.f32 %v1449, %v380
    %v1451 = vadd.f32 %v1450, 1e-05
    %v1452 = vrsqrt.pop %v1451
    %v1453 = vmul.f32 %v1441, %v1452
    %v1454 = vmul.f32 %v1453, %v737
    %v1456 = vlaneseq
    %v1457 = vshrl.u32 %v1456, 7
    %v1458 = vsub.s32 0, %v1457
    %v1459 = vrot.slane %v452, %v1458
    %1460 = vrot.lane.b32.xlu0 %v1459, 32
    %v1461 = vpop.permute.xlu0 %1460
    %v1463 = vadd.f32 %v1454, %v1461
    %1465 = vrot.lane.b32.xlu0 %v1463, 96
    %v1466 = vpop.permute.xlu0 %1465
    %1467 = vrot.lane.b32.xlu0 %v443, 96
    %v1468 = vpop.permute.xlu0 %1467
    %1469 = vrot.lane.b32.xlu0 %v444, 96
    %v1470 = vpop.permute.xlu0 %1469
    %1471 = vrot.lane.b32.xlu0 %v445, 96
    %v1472 = vpop.permute.xlu0 %1471
    %1473 = vrot.lane.b32.xlu0 %v446, 96
    %v1474 = vpop.permute.xlu0 %1473
    %1479 = vrot.lane.b32.xlu0 %v509, 96
    %v1480 = vpop.permute.xlu0 %1479
    %v1482 = vsel %vm147, %v1466, 0
    %1484 = vmatprep.subr.mxu0 0.0
    %1485 = vmatpush1.msra.mxu0 %v1468
    %1486 = vmatprep.subr.mxu0 0.0
    %1487 = vmatpush1.msra.mxu0 %v1470
    %1488 = vmatprep.subr.mxu0 0.0
    %1489 = vmatpush1.msra.mxu0 %v1472
    %1490 = vmatprep.subr.mxu0 0.0
    %1491 = vmatpush1.msra.mxu0 %v1474
    %1492 = vmatprep.subr.mxu0 0.0
    %1493 = vmatpush1.msra.mxu0 0.0
    %1494 = vmatprep.subr.mxu0 0.0
    %1495 = vmatpush1.msra.mxu0 0.0
    %1496 = vmatprep.subr.mxu0 0.0
    %1497 = vmatpush1.msra.mxu0 0.0
    %1498 = vmatprep.subr.mxu0 0.0
    %1499 = vmatpush1.msra.mxu0 0.0
    %1500 = vmatprep.subr.mxu0 0.0
    %1501 = vmatpush1.msra.mxu0 0.0
    %1502 = vmatprep.subr.mxu0 0.0
    %1503 = vmatpush1.msra.mxu0 0.0
    %1504 = vmatprep.subr.mxu0 0.0
    %1505 = vmatpush1.msra.mxu0 0.0
    %1506 = vmatprep.subr.mxu0 0.0
    %1507 = vmatpush1.msra.mxu0 0.0
    %1508 = vmatprep.subr.mxu0 0.0
    %1509 = vmatpush1.msra.mxu0 0.0
    %1510 = vmatprep.subr.mxu0 0.0
    %1511 = vmatpush1.msra.mxu0 0.0
    %1512 = vmatprep.subr.mxu0 0.0
    %1513 = vmatpush1.msra.mxu0 0.0
    %1514 = vmatprep.subr.mxu0 0.0
    %1515 = vmatpush1.msra.mxu0 0.0
    %1516 = vmatprep.subr.mxu0 0.0
    %1517 = vmatpush1.msra.mxu0 0.0
    %1518 = vmatprep.subr.mxu0 0.0
    %1519 = vmatpush1.msra.mxu0 0.0
    %1520 = vmatprep.subr.mxu0 0.0
    %1521 = vmatpush1.msra.mxu0 0.0
    %1522 = vmatprep.subr.mxu0 0.0
    %1523 = vmatpush1.msra.mxu0 0.0
    %1524 = vmatprep.subr.mxu0 0.0
    %1525 = vmatpush1.msra.mxu0 0.0
    %1526 = vmatprep.subr.mxu0 0.0
    %1527 = vmatpush1.msra.mxu0 0.0
    %1528 = vmatprep.subr.mxu0 0.0
    %1529 = vmatpush1.msra.mxu0 0.0
    %1530 = vmatprep.subr.mxu0 0.0
    %1531 = vmatpush1.msra.mxu0 0.0
    %1532 = vmatprep.subr.mxu0 0.0
    %1533 = vmatpush1.msra.mxu0 0.0
    %1534 = vmatprep.subr.mxu0 0.0
    %1535 = vmatpush1.msra.mxu0 0.0
    %1536 = vmatprep.subr.mxu0 0.0
    %1537 = vmatpush1.msra.mxu0 0.0
    %1538 = vmatprep.subr.mxu0 0.0
    %1539 = vmatpush1.msra.mxu0 0.0
    %1540 = vmatprep.subr.mxu0 0.0
    %1541 = vmatpush1.msra.mxu0 0.0
    %1542 = vmatprep.subr.mxu0 0.0
    %1543 = vmatpush1.msra.mxu0 0.0
    %1544 = vmatprep.subr.mxu0 0.0
    %1545 = vmatpush1.msra.mxu0 0.0
    %1546 = vmatprep.subr.mxu0 0.0
    %1547 = vmatpush1.msra.mxu0 0.0
    %1548 = vmatprep.mubr.f32.mxu0 0.0
    %1549 = vmatmul.mubr.f32.gmra.mrb[0].mxu0 %v1482
    %v1550 = vpop.f32.mrb[0].mxu0
    %v1551 = vadd.f32 %v1480, %v1550
    %v1552 = vpop.f32.mrb[0].mxu0
    %1553 = vdwg.mxu0
    %v1554 = vmax.f32 %v1551, 0.0
    %v1560 = vsel %vm147, %v1554, 0
    %1562 = vmatprep.subr.mxu0 0.0
    %1563 = vmatpush1.msra.mxu0 %v1305
    %1564 = vmatprep.subr.mxu0 0.0
    %1565 = vmatpush1.msra.mxu0 %v1309
    %1566 = vmatprep.subr.mxu0 0.0
    %1567 = vmatpush1.msra.mxu0 %v1313
    %1568 = vmatprep.subr.mxu0 0.0
    %1569 = vmatpush1.msra.mxu0 %v1317
    %1570 = vmatprep.subr.mxu0 0.0
    %1571 = vmatpush1.msra.mxu0 0.0
    %1572 = vmatprep.subr.mxu0 0.0
    %1573 = vmatpush1.msra.mxu0 0.0
    %1574 = vmatprep.subr.mxu0 0.0
    %1575 = vmatpush1.msra.mxu0 0.0
    %1576 = vmatprep.subr.mxu0 0.0
    %1577 = vmatpush1.msra.mxu0 0.0
    %1578 = vmatprep.subr.mxu0 0.0
    %1579 = vmatpush1.msra.mxu0 0.0
    %1580 = vmatprep.subr.mxu0 0.0
    %1581 = vmatpush1.msra.mxu0 0.0
    %1582 = vmatprep.subr.mxu0 0.0
    %1583 = vmatpush1.msra.mxu0 0.0
    %1584 = vmatprep.subr.mxu0 0.0
    %1585 = vmatpush1.msra.mxu0 0.0
    %1586 = vmatprep.subr.mxu0 0.0
    %1587 = vmatpush1.msra.mxu0 0.0
    %1588 = vmatprep.subr.mxu0 0.0
    %1589 = vmatpush1.msra.mxu0 0.0
    %1590 = vmatprep.subr.mxu0 0.0
    %1591 = vmatpush1.msra.mxu0 0.0
    %1592 = vmatprep.subr.mxu0 0.0
    %1593 = vmatpush1.msra.mxu0 0.0
    %1594 = vmatprep.subr.mxu0 0.0
    %1595 = vmatpush1.msra.mxu0 0.0
    %1596 = vmatprep.subr.mxu0 0.0
    %1597 = vmatpush1.msra.mxu0 0.0
    %1598 = vmatprep.subr.mxu0 0.0
    %1599 = vmatpush1.msra.mxu0 0.0
    %1600 = vmatprep.subr.mxu0 0.0
    %1601 = vmatpush1.msra.mxu0 0.0
    %1602 = vmatprep.subr.mxu0 0.0
    %1603 = vmatpush1.msra.mxu0 0.0
    %1604 = vmatprep.subr.mxu0 0.0
    %1605 = vmatpush1.msra.mxu0 0.0
    %1606 = vmatprep.subr.mxu0 0.0
    %1607 = vmatpush1.msra.mxu0 0.0
    %1608 = vmatprep.subr.mxu0 0.0
    %1609 = vmatpush1.msra.mxu0 0.0
    %1610 = vmatprep.subr.mxu0 0.0
    %1611 = vmatpush1.msra.mxu0 0.0
    %1612 = vmatprep.subr.mxu0 0.0
    %1613 = vmatpush1.msra.mxu0 0.0
    %1614 = vmatprep.subr.mxu0 0.0
    %1615 = vmatpush1.msra.mxu0 0.0
    %1616 = vmatprep.subr.mxu0 0.0
    %1617 = vmatpush1.msra.mxu0 0.0
    %1618 = vmatprep.subr.mxu0 0.0
    %1619 = vmatpush1.msra.mxu0 0.0
    %1620 = vmatprep.subr.mxu0 0.0
    %1621 = vmatpush1.msra.mxu0 0.0
    %1622 = vmatprep.subr.mxu0 0.0
    %1623 = vmatpush1.msra.mxu0 0.0
    %1624 = vmatprep.subr.mxu0 0.0
    %1625 = vmatpush1.msra.mxu0 0.0
    %1626 = vmatprep.mubr.f32.mxu0 0.0
    %1627 = vmatmul.mubr.f32.gmra.mrb[0].mxu0 %v1560
    %v1628 = vpop.f32.mrb[0].mxu0
    %v1629 = vadd.f32 0.0, %v1628
    %v1630 = vpop.f32.mrb[0].mxu0
    %1631 = vdwg.mxu0
    %1633 = vrot.lane.b32.xlu0 %v1629, 32
    %v1634 = vpop.permute.xlu0 %1633
    %v1636 = vadd.f32 %v1432, %v1634
    %v1637 = vadd.f32 %v1636, %v1480
    %1639 = vrot.lane.b32.xlu0 %v1637, 96
    %v1640 = vpop.permute.xlu0 %1639
    %v1642 = vsel %vm147, %v1640, 0.0
    %1643 = vadd.xlane.f32.xlu0 %v1642
    %v1644 = vpop.xlane.xlu0 %1643
    %v1645 = vmul.f32 %v1644, %v380
    %v1646 = vsub.f32 %v1637, %v1645
    %v1647 = vmul.f32 %v1646, %v1646
    %1649 = vrot.lane.b32.xlu0 %v1647, 96
    %v1650 = vpop.permute.xlu0 %1649
    %v1652 = vsel %vm147, %v1650, 0.0
    %1653 = vadd.xlane.f32.xlu0 %v1652
    %v1654 = vpop.xlane.xlu0 %1653
    %v1655 = vmul.f32 %v1654, %v380
    %v1656 = vadd.f32 %v1655, 1e-05
    %v1657 = vrsqrt.pop %v1656
    %v1658 = vmul.f32 %v1646, %v1657
    %v1659 = vmul.f32 %v1658, %v521
    %v1660 = vadd.f32 %v1659, %v729
    %1662 = vrot.lane.b32.xlu0 %v1660, 96
    %v1663 = vpop.permute.xlu0 %1662
    %v1664 = vsel %vm147, %v1663, 0
    %1666 = vmatprep.subr.mxu0 0.0
    %1667 = vmatpush1.msra.mxu0 %v435
    %1668 = vmatprep.subr.mxu0 0.0
    %1669 = vmatpush1.msra.mxu0 %v436
    %1670 = vmatprep.subr.mxu0 0.0
    %1671 = vmatpush1.msra.mxu0 %v437
    %1672 = vmatprep.subr.mxu0 0.0
    %1673 = vmatpush1.msra.mxu0 %v438
    %1674 = vmatprep.subr.mxu0 0.0
    %1675 = vmatpush1.msra.mxu0 0.0
    %1676 = vmatprep.subr.mxu0 0.0
    %1677 = vmatpush1.msra.mxu0 0.0
    %1678 = vmatprep.subr.mxu0 0.0
    %1679 = vmatpush1.msra.mxu0 0.0
    %1680 = vmatprep.subr.mxu0 0.0
    %1681 = vmatpush1.msra.mxu0 0.0
    %1682 = vmatprep.subr.mxu0 0.0
    %1683 = vmatpush1.msra.mxu0 0.0
    %1684 = vmatprep.subr.mxu0 0.0
    %1685 = vmatpush1.msra.mxu0 0.0
    %1686 = vmatprep.subr.mxu0 0.0
    %1687 = vmatpush1.msra.mxu0 0.0
    %1688 = vmatprep.subr.mxu0 0.0
    %1689 = vmatpush1.msra.mxu0 0.0
    %1690 = vmatprep.subr.mxu0 0.0
    %1691 = vmatpush1.msra.mxu0 0.0
    %1692 = vmatprep.subr.mxu0 0.0
    %1693 = vmatpush1.msra.mxu0 0.0
    %1694 = vmatprep.subr.mxu0 0.0
    %1695 = vmatpush1.msra.mxu0 0.0
    %1696 = vmatprep.subr.mxu0 0.0
    %1697 = vmatpush1.msra.mxu0 0.0
    %1698 = vmatprep.subr.mxu0 0.0
    %1699 = vmatpush1.msra.mxu0 0.0
    %1700 = vmatprep.subr.mxu0 0.0
    %1701 = vmatpush1.msra.mxu0 0.0
    %1702 = vmatprep.subr.mxu0 0.0
    %1703 = vmatpush1.msra.mxu0 0.0
    %1704 = vmatprep.subr.mxu0 0.0
    %1705 = vmatpush1.msra.mxu0 0.0
    %1706 = vmatprep.subr.mxu0 0.0
    %1707 = vmatpush1.msra.mxu0 0.0
    %1708 = vmatprep.subr.mxu0 0.0
    %1709 = vmatpush1.msra.mxu0 0.0
    %1710 = vmatprep.subr.mxu0 0.0
    %1711 = vmatpush1.msra.mxu0 0.0
    %1712 = vmatprep.subr.mxu0 0.0
    %1713 = vmatpush1.msra.mxu0 0.0
    %1714 = vmatprep.subr.mxu0 0.0
    %1715 = vmatpush1.msra.mxu0 0.0
    %1716 = vmatprep.subr.mxu0 0.0
    %1717 = vmatpush1.msra.mxu0 0.0
    %1718 = vmatprep.subr.mxu0 0.0
    %1719 = vmatpush1.msra.mxu0 0.0
    %1720 = vmatprep.subr.mxu0 0.0
    %1721 = vmatpush1.msra.mxu0 0.0
    %1722 = vmatprep.subr.mxu0 0.0
    %1723 = vmatpush1.msra.mxu0 0.0
    %1724 = vmatprep.subr.mxu0 0.0
    %1725 = vmatpush1.msra.mxu0 0.0
    %1726 = vmatprep.subr.mxu0 0.0
    %1727 = vmatpush1.msra.mxu0 0.0
    %1728 = vmatprep.subr.mxu0 0.0
    %1729 = vmatpush1.msra.mxu0 0.0
    %1730 = vmatprep.mubr.f32.mxu0 0.0
    %1731 = vmatmul.mubr.f32.gmra.mrb[0].mxu0 %v1664
    %v1732 = vpop.f32.mrb[0].mxu0
    %v1733 = vadd.f32 %v531, %v1732
    %v1734 = vpop.f32.mrb[0].mxu0
    %1735 = vdwg.mxu0
    %v1737 = vcombine.high %v1733, %v1733
    %v1738 = vsel %vm147, %v1733, 0
    %1740 = vmatprep.subr.mxu0 0.0
    %1741 = vmatpush1.xpose.msra.mxu0 %v824
    %1742 = vmatprep.subr.mxu0 0.0
    %1743 = vmatpush1.xpose.msra.mxu0 %v827
    %1744 = vmatprep.subr.mxu0 0.0
    %1745 = vmatpush1.xpose.msra.mxu0 0.0
    %1746 = vmatprep.subr.mxu0 0.0
    %1747 = vmatpush1.xpose.msra.mxu0 0.0
    %1748 = vmatprep.subr.mxu0 0.0
    %1749 = vmatpush1.xpose.msra.mxu0 0.0
    %1750 = vmatprep.subr.mxu0 0.0
    %1751 = vmatpush1.xpose.msra.mxu0 0.0
    %1752 = vmatprep.subr.mxu0 0.0
    %1753 = vmatpush1.xpose.msra.mxu0 0.0
    %1754 = vmatprep.subr.mxu0 0.0
    %1755 = vmatpush1.xpose.msra.mxu0 0.0
    %1756 = vmatprep.subr.mxu0 0.0
    %1757 = vmatpush1.xpose.msra.mxu0 0.0
    %1758 = vmatprep.subr.mxu0 0.0
    %1759 = vmatpush1.xpose.msra.mxu0 0.0
    %1760 = vmatprep.subr.mxu0 0.0
    %1761 = vmatpush1.xpose.msra.mxu0 0.0
    %1762 = vmatprep.subr.mxu0 0.0
    %1763 = vmatpush1.xpose.msra.mxu0 0.0
    %1764 = vmatprep.subr.mxu0 0.0
    %1765 = vmatpush1.xpose.msra.mxu0 0.0
    %1766 = vmatprep.subr.mxu0 0.0
    %1767 = vmatpush1.xpose.msra.mxu0 0.0
    %1768 = vmatprep.subr.mxu0 0.0
    %1769 = vmatpush1.xpose.msra.mxu0 0.0
    %1770 = vmatprep.subr.mxu0 0.0
    %1771 = vmatpush1.xpose.msra.mxu0 0.0
    %1772 = vmatprep.subr.mxu0 0.0
    %1773 = vmatpush1.xpose.msra.mxu0 0.0
    %1774 = vmatprep.subr.mxu0 0.0
    %1775 = vmatpush1.xpose.msra.mxu0 0.0
    %1776 = vmatprep.subr.mxu0 0.0
    %1777 = vmatpush1.xpose.msra.mxu0 0.0
    %1778 = vmatprep.subr.mxu0 0.0
    %1779 = vmatpush1.xpose.msra.mxu0 0.0
    %1780 = vmatprep.subr.mxu0 0.0
    %1781 = vmatpush1.xpose.msra.mxu0 0.0
    %1782 = vmatprep.subr.mxu0 0.0
    %1783 = vmatpush1.xpose.msra.mxu0 0.0
    %1784 = vmatprep.subr.mxu0 0.0
    %1785 = vmatpush1.xpose.msra.mxu0 0.0
    %1786 = vmatprep.subr.mxu0 0.0
    %1787 = vmatpush1.xpose.msra.mxu0 0.0
    %1788 = vmatprep.subr.mxu0 0.0
    %1789 = vmatpush1.xpose.msra.mxu0 0.0
    %1790 = vmatprep.subr.mxu0 0.0
    %1791 = vmatpush1.xpose.msra.mxu0 0.0
    %1792 = vmatprep.subr.mxu0 0.0
    %1793 = vmatpush1.xpose.msra.mxu0 0.0
    %1794 = vmatprep.subr.mxu0 0.0
    %1795 = vmatpush1.xpose.msra.mxu0 0.0
    %1796 = vmatprep.subr.mxu0 0.0
    %1797 = vmatpush1.xpose.msra.mxu0 0.0
    %1798 = vmatprep.subr.mxu0 0.0
    %1799 = vmatpush1.xpose.msra.mxu0 0.0
    %1800 = vmatprep.subr.mxu0 0.0
    %1801 = vmatpush1.xpose.msra.mxu0 0.0
    %1802 = vmatprep.subr.mxu0 0.0
    %1803 = vmatpush1.xpose.msra.mxu0 0.0
    %1804 = vmatprep.mubr.f32.mxu0 0.0
    %1805 = vmatmul.mubr.f32.gmra.mrb[0].mxu0 %v1738
    %v1806 = vpop.f32.mrb[0].mxu0
    %v1807 = vadd.f32 0.0, %v1806
    %v1808 = vpop.f32.mrb[0].mxu0
    %1809 = vdwg.mxu0
    %v1810 = vsel %vm147, %v1737, 0
    %1812 = vmatprep.subr.mxu0 0.0
    %1813 = vmatpush1.xpose.msra.mxu0 %v902
    %1814 = vmatprep.subr.mxu0 0.0
    %1815 = vmatpush1.xpose.msra.mxu0 %v905
    %1816 = vmatprep.subr.mxu0 0.0
    %1817 = vmatpush1.xpose.msra.mxu0 0.0
    %1818 = vmatprep.subr.mxu0 0.0
    %1819 = vmatpush1.xpose.msra.mxu0 0.0
    %1820 = vmatprep.subr.mxu0 0.0
    %1821 = vmatpush1.xpose.msra.mxu0 0.0
    %1822 = vmatprep.subr.mxu0 0.0
    %1823 = vmatpush1.xpose.msra.mxu0 0.0
    %1824 = vmatprep.subr.mxu0 0.0
    %1825 = vmatpush1.xpose.msra.mxu0 0.0
    %1826 = vmatprep.subr.mxu0 0.0
    %1827 = vmatpush1.xpose.msra.mxu0 0.0
    %1828 = vmatprep.subr.mxu0 0.0
    %1829 = vmatpush1.xpose.msra.mxu0 0.0
    %1830 = vmatprep.subr.mxu0 0.0
    %1831 = vmatpush1.xpose.msra.mxu0 0.0
    %1832 = vmatprep.subr.mxu0 0.0
    %1833 = vmatpush1.xpose.msra.mxu0 0.0
    %1834 = vmatprep.subr.mxu0 0.0
    %1835 = vmatpush1.xpose.msra.mxu0 0.0
    %1836 = vmatprep.subr.mxu0 0.0
    %1837 = vmatpush1.xpose.msra.mxu0 0.0
    %1838 = vmatprep.subr.mxu0 0.0
    %1839 = vmatpush1.xpose.msra.mxu0 0.0
    %1840 = vmatprep.subr.mxu0 0.0
    %1841 = vmatpush1.xpose.msra.mxu0 0.0
    %1842 = vmatprep.subr.mxu0 0.0
    %1843 = vmatpush1.xpose.msra.mxu0 0.0
    %1844 = vmatprep.subr.mxu0 0.0
    %1845 = vmatpush1.xpose.msra.mxu0 0.0
    %1846 = vmatprep.subr.mxu0 0.0
    %1847 = vmatpush1.xpose.msra.mxu0 0.0
    %1848 = vmatprep.subr.mxu0 0.0
    %1849 = vmatpush1.xpose.msra.mxu0 0.0
    %1850 = vmatprep.subr.mxu0 0.0
    %1851 = vmatpush1.xpose.msra.mxu0 0.0
    %1852 = vmatprep.subr.mxu0 0.0
    %1853 = vmatpush1.xpose.msra.mxu0 0.0
    %1854 = vmatprep.subr.mxu0 0.0
    %1855 = vmatpush1.xpose.msra.mxu0 0.0
    %1856 = vmatprep.subr.mxu0 0.0
    %1857 = vmatpush1.xpose.msra.mxu0 0.0
    %1858 = vmatprep.subr.mxu0 0.0
    %1859 = vmatpush1.xpose.msra.mxu0 0.0
    %1860 = vmatprep.subr.mxu0 0.0
    %1861 = vmatpush1.xpose.msra.mxu0 0.0
    %1862 = vmatprep.subr.mxu0 0.0
    %1863 = vmatpush1.xpose.msra.mxu0 0.0
    %1864 = vmatprep.subr.mxu0 0.0
    %1865 = vmatpush1.xpose.msra.mxu0 0.0
    %1866 = vmatprep.subr.mxu0 0.0
    %1867 = vmatpush1.xpose.msra.mxu0 0.0
    %1868 = vmatprep.subr.mxu0 0.0
    %1869 = vmatpush1.xpose.msra.mxu0 0.0
    %1870 = vmatprep.subr.mxu0 0.0
    %1871 = vmatpush1.xpose.msra.mxu0 0.0
    %1872 = vmatprep.subr.mxu0 0.0
    %1873 = vmatpush1.xpose.msra.mxu0 0.0
    %1874 = vmatprep.subr.mxu0 0.0
    %1875 = vmatpush1.xpose.msra.mxu0 0.0
    %1876 = vmatprep.mubr.f32.mxu0 0.0
    %1877 = vmatmul.mubr.f32.gmra.mrb[0].mxu0 %v1810
    %v1878 = vpop.f32.mrb[0].mxu0
    %v1879 = vadd.f32 0.0, %v1878
    %v1880 = vpop.f32.mrb[0].mxu0
    %1881 = vdwg.mxu0
    %v1882 = vmul.f32 %v1807, 0.17677669
    %v1883 = vmul.f32 %v1879, 0.17677669
    %v1884 = vsel %vm979, %v1882, -inf
    %v1885 = vrot.slane %v1884, 4
    %v1886 = vmax.f32 %v1884, %v1885
    %v1887 = vrot.slane %v1886, 2
    %v1888 = vmax.f32 %v1886, %v1887
    %v1889 = vrot.slane %v1888, 1
    %v1890 = vmax.f32 %v1888, %v1889
    %v1891 = vsel %vm979, %v1883, -inf
    %v1892 = vrot.slane %v1891, 4
    %v1893 = vmax.f32 %v1891, %v1892
    %v1894 = vrot.slane %v1893, 2
    %v1895 = vmax.f32 %v1893, %v1894
    %v1896 = vrot.slane %v1895, 1
    %v1897 = vmax.f32 %v1895, %v1896
    %v1898 = vsub.f32 %v1882, %v1890
    %v1899 = vsub.f32 %v1883, %v1897
    %v1900 = vmul.f32 %v1898, 1.442695
    %v1901 = vpow.pop %v1900
    %v1902 = vmul.f32 %v1899, 1.442695
    %v1903 = vpow.pop %v1902
    %v1904 = vsel %vm979, %v1901, 0.0
    %v1905 = vrot.slane %v1904, 4
    %v1906 = vadd.f32 %v1904, %v1905
    %v1907 = vrot.slane %v1906, 2
    %v1908 = vadd.f32 %v1906, %v1907
    %v1909 = vrot.slane %v1908, 1
    %v1910 = vadd.f32 %v1908, %v1909
    %v1911 = vsel %vm979, %v1903, 0.0
    %v1912 = vrot.slane %v1911, 4
    %v1913 = vadd.f32 %v1911, %v1912
    %v1914 = vrot.slane %v1913, 2
    %v1915 = vadd.f32 %v1913, %v1914
    %v1916 = vrot.slane %v1915, 1
    %v1917 = vadd.f32 %v1915, %v1916
    %v1918 = vrcp.pop %v1910
    %v1919 = vrcp.pop %v1917
    %v1920 = vmul.f32 %v1901, %v1918
    %v1921 = vmul.f32 %v1903, %v1919
    %v1922 = vadd.f32 %v1920, 1e-08
    %v1923 = vadd.f32 %v1921, 1e-08
    %v1924 = vsel %vm979, %v1922, 0.0
    %1925 = vadd.xlane.f32.xlu0 %v1924
    %v1926 = vpop.xlane.xlu0 %1925
    %v1927 = vsel %vm979, %v1923, 0.0
    %1928 = vadd.xlane.f32.xlu0 %v1927
    %v1929 = vpop.xlane.xlu0 %1928
    %v1930 = vrcp.pop %v1926
    %v1931 = vmul.f32 %v1922, %v1930
    %v1932 = vrcp.pop %v1929
    %v1933 = vmul.f32 %v1923, %v1932
    %v1935 = vsel %vm1036, %v1931, 0
    %1937 = vmatprep.subr.mxu0 0.0
    %1938 = vmatpush1.msra.mxu0 %v1031
    %1939 = vmatprep.subr.mxu0 0.0
    %1940 = vmatpush1.msra.mxu0 %v1033
    %1941 = vmatprep.subr.mxu0 0.0
    %1942 = vmatpush1.msra.mxu0 0.0
    %1943 = vmatprep.subr.mxu0 0.0
    %1944 = vmatpush1.msra.mxu0 0.0
    %1945 = vmatprep.subr.mxu0 0.0
    %1946 = vmatpush1.msra.mxu0 0.0
    %1947 = vmatprep.subr.mxu0 0.0
    %1948 = vmatpush1.msra.mxu0 0.0
    %1949 = vmatprep.subr.mxu0 0.0
    %1950 = vmatpush1.msra.mxu0 0.0
    %1951 = vmatprep.subr.mxu0 0.0
    %1952 = vmatpush1.msra.mxu0 0.0
    %1953 = vmatprep.subr.mxu0 0.0
    %1954 = vmatpush1.msra.mxu0 0.0
    %1955 = vmatprep.subr.mxu0 0.0
    %1956 = vmatpush1.msra.mxu0 0.0
    %1957 = vmatprep.subr.mxu0 0.0
    %1958 = vmatpush1.msra.mxu0 0.0
    %1959 = vmatprep.subr.mxu0 0.0
    %1960 = vmatpush1.msra.mxu0 0.0
    %1961 = vmatprep.subr.mxu0 0.0
    %1962 = vmatpush1.msra.mxu0 0.0
    %1963 = vmatprep.subr.mxu0 0.0
    %1964 = vmatpush1.msra.mxu0 0.0
    %1965 = vmatprep.subr.mxu0 0.0
    %1966 = vmatpush1.msra.mxu0 0.0
    %1967 = vmatprep.subr.mxu0 0.0
    %1968 = vmatpush1.msra.mxu0 0.0
    %1969 = vmatprep.subr.mxu0 0.0
    %1970 = vmatpush1.msra.mxu0 0.0
    %1971 = vmatprep.subr.mxu0 0.0
    %1972 = vmatpush1.msra.mxu0 0.0
    %1973 = vmatprep.subr.mxu0 0.0
    %1974 = vmatpush1.msra.mxu0 0.0
    %1975 = vmatprep.subr.mxu0 0.0
    %1976 = vmatpush1.msra.mxu0 0.0
    %1977 = vmatprep.subr.mxu0 0.0
    %1978 = vmatpush1.msra.mxu0 0.0
    %1979 = vmatprep.subr.mxu0 0.0
    %1980 = vmatpush1.msra.mxu0 0.0
    %1981 = vmatprep.subr.mxu0 0.0
    %1982 = vmatpush1.msra.mxu0 0.0
    %1983 = vmatprep.subr.mxu0 0.0
    %1984 = vmatpush1.msra.mxu0 0.0
    %1985 = vmatprep.subr.mxu0 0.0
    %1986 = vmatpush1.msra.mxu0 0.0
    %1987 = vmatprep.subr.mxu0 0.0
    %1988 = vmatpush1.msra.mxu0 0.0
    %1989 = vmatprep.subr.mxu0 0.0
    %1990 = vmatpush1.msra.mxu0 0.0
    %1991 = vmatprep.subr.mxu0 0.0
    %1992 = vmatpush1.msra.mxu0 0.0
    %1993 = vmatprep.subr.mxu0 0.0
    %1994 = vmatpush1.msra.mxu0 0.0
    %1995 = vmatprep.subr.mxu0 0.0
    %1996 = vmatpush1.msra.mxu0 0.0
    %1997 = vmatprep.subr.mxu0 0.0
    %1998 = vmatpush1.msra.mxu0 0.0
    %1999 = vmatprep.subr.mxu0 0.0
    %2000 = vmatpush1.msra.mxu0 0.0
    %2001 = vmatprep.mubr.f32.mxu0 0.0
    %2002 = vmatmul.mubr.f32.gmra.mrb[0].mxu0 %v1935
    %v2003 = vpop.f32.mrb[0].mxu0
    %v2004 = vadd.f32 0.0, %v2003
    %v2005 = vpop.f32.mrb[0].mxu0
    %2006 = vdwg.mxu0
    %v2008 = vsel %vm1036, %v1933, 0
    %2010 = vmatprep.subr.mxu0 0.0
    %2011 = vmatpush1.msra.mxu0 %v1111
    %2012 = vmatprep.subr.mxu0 0.0
    %2013 = vmatpush1.msra.mxu0 %v1113
    %2014 = vmatprep.subr.mxu0 0.0
    %2015 = vmatpush1.msra.mxu0 0.0
    %2016 = vmatprep.subr.mxu0 0.0
    %2017 = vmatpush1.msra.mxu0 0.0
    %2018 = vmatprep.subr.mxu0 0.0
    %2019 = vmatpush1.msra.mxu0 0.0
    %2020 = vmatprep.subr.mxu0 0.0
    %2021 = vmatpush1.msra.mxu0 0.0
    %2022 = vmatprep.subr.mxu0 0.0
    %2023 = vmatpush1.msra.mxu0 0.0
    %2024 = vmatprep.subr.mxu0 0.0
    %2025 = vmatpush1.msra.mxu0 0.0
    %2026 = vmatprep.subr.mxu0 0.0
    %2027 = vmatpush1.msra.mxu0 0.0
    %2028 = vmatprep.subr.mxu0 0.0
    %2029 = vmatpush1.msra.mxu0 0.0
    %2030 = vmatprep.subr.mxu0 0.0
    %2031 = vmatpush1.msra.mxu0 0.0
    %2032 = vmatprep.subr.mxu0 0.0
    %2033 = vmatpush1.msra.mxu0 0.0
    %2034 = vmatprep.subr.mxu0 0.0
    %2035 = vmatpush1.msra.mxu0 0.0
    %2036 = vmatprep.subr.mxu0 0.0
    %2037 = vmatpush1.msra.mxu0 0.0
    %2038 = vmatprep.subr.mxu0 0.0
    %2039 = vmatpush1.msra.mxu0 0.0
    %2040 = vmatprep.subr.mxu0 0.0
    %2041 = vmatpush1.msra.mxu0 0.0
    %2042 = vmatprep.subr.mxu0 0.0
    %2043 = vmatpush1.msra.mxu0 0.0
    %2044 = vmatprep.subr.mxu0 0.0
    %2045 = vmatpush1.msra.mxu0 0.0
    %2046 = vmatprep.subr.mxu0 0.0
    %2047 = vmatpush1.msra.mxu0 0.0
    %2048 = vmatprep.subr.mxu0 0.0
    %2049 = vmatpush1.msra.mxu0 0.0
    %2050 = vmatprep.subr.mxu0 0.0
    %2051 = vmatpush1.msra.mxu0 0.0
    %2052 = vmatprep.subr.mxu0 0.0
    %2053 = vmatpush1.msra.mxu0 0.0
    %2054 = vmatprep.subr.mxu0 0.0
    %2055 = vmatpush1.msra.mxu0 0.0
    %2056 = vmatprep.subr.mxu0 0.0
    %2057 = vmatpush1.msra.mxu0 0.0
    %2058 = vmatprep.subr.mxu0 0.0
    %2059 = vmatpush1.msra.mxu0 0.0
    %2060 = vmatprep.subr.mxu0 0.0
    %2061 = vmatpush1.msra.mxu0 0.0
    %2062 = vmatprep.subr.mxu0 0.0
    %2063 = vmatpush1.msra.mxu0 0.0
    %2064 = vmatprep.subr.mxu0 0.0
    %2065 = vmatpush1.msra.mxu0 0.0
    %2066 = vmatprep.subr.mxu0 0.0
    %2067 = vmatpush1.msra.mxu0 0.0
    %2068 = vmatprep.subr.mxu0 0.0
    %2069 = vmatpush1.msra.mxu0 0.0
    %2070 = vmatprep.subr.mxu0 0.0
    %2071 = vmatpush1.msra.mxu0 0.0
    %2072 = vmatprep.subr.mxu0 0.0
    %2073 = vmatpush1.msra.mxu0 0.0
    %2074 = vmatprep.mubr.f32.mxu0 0.0
    %2075 = vmatmul.mubr.f32.gmra.mrb[0].mxu0 %v2008
    %v2076 = vpop.f32.mrb[0].mxu0
    %v2077 = vadd.f32 0.0, %v2076
    %v2078 = vpop.f32.mrb[0].mxu0
    %2079 = vdwg.mxu0
    %v2082 = vcombine.low %v2004, %v2077
    %v2083 = vsel %vm147, %v2082, 0
    %2085 = vmatprep.subr.mxu0 0.0
    %2086 = vmatpush1.msra.mxu0 %v1212
    %2087 = vmatprep.subr.mxu0 0.0
    %2088 = vmatpush1.msra.mxu0 %v1213
    %2089 = vmatprep.subr.mxu0 0.0
    %2090 = vmatpush1.msra.mxu0 %v1214
    %2091 = vmatprep.subr.mxu0 0.0
    %2092 = vmatpush1.msra.mxu0 %v1215
    %2093 = vmatprep.subr.mxu0 0.0
    %2094 = vmatpush1.msra.mxu0 0.0
    %2095 = vmatprep.subr.mxu0 0.0
    %2096 = vmatpush1.msra.mxu0 0.0
    %2097 = vmatprep.subr.mxu0 0.0
    %2098 = vmatpush1.msra.mxu0 0.0
    %2099 = vmatprep.subr.mxu0 0.0
    %2100 = vmatpush1.msra.mxu0 0.0
    %2101 = vmatprep.subr.mxu0 0.0
    %2102 = vmatpush1.msra.mxu0 0.0
    %2103 = vmatprep.subr.mxu0 0.0
    %2104 = vmatpush1.msra.mxu0 0.0
    %2105 = vmatprep.subr.mxu0 0.0
    %2106 = vmatpush1.msra.mxu0 0.0
    %2107 = vmatprep.subr.mxu0 0.0
    %2108 = vmatpush1.msra.mxu0 0.0
    %2109 = vmatprep.subr.mxu0 0.0
    %2110 = vmatpush1.msra.mxu0 0.0
    %2111 = vmatprep.subr.mxu0 0.0
    %2112 = vmatpush1.msra.mxu0 0.0
    %2113 = vmatprep.subr.mxu0 0.0
    %2114 = vmatpush1.msra.mxu0 0.0
    %2115 = vmatprep.subr.mxu0 0.0
    %2116 = vmatpush1.msra.mxu0 0.0
    %2117 = vmatprep.subr.mxu0 0.0
    %2118 = vmatpush1.msra.mxu0 0.0
    %2119 = vmatprep.subr.mxu0 0.0
    %2120 = vmatpush1.msra.mxu0 0.0
    %2121 = vmatprep.subr.mxu0 0.0
    %2122 = vmatpush1.msra.mxu0 0.0
    %2123 = vmatprep.subr.mxu0 0.0
    %2124 = vmatpush1.msra.mxu0 0.0
    %2125 = vmatprep.subr.mxu0 0.0
    %2126 = vmatpush1.msra.mxu0 0.0
    %2127 = vmatprep.subr.mxu0 0.0
    %2128 = vmatpush1.msra.mxu0 0.0
    %2129 = vmatprep.subr.mxu0 0.0
    %2130 = vmatpush1.msra.mxu0 0.0
    %2131 = vmatprep.subr.mxu0 0.0
    %2132 = vmatpush1.msra.mxu0 0.0
    %2133 = vmatprep.subr.mxu0 0.0
    %2134 = vmatpush1.msra.mxu0 0.0
    %2135 = vmatprep.subr.mxu0 0.0
    %2136 = vmatpush1.msra.mxu0 0.0
    %2137 = vmatprep.subr.mxu0 0.0
    %2138 = vmatpush1.msra.mxu0 0.0
    %2139 = vmatprep.subr.mxu0 0.0
    %2140 = vmatpush1.msra.mxu0 0.0
    %2141 = vmatprep.subr.mxu0 0.0
    %2142 = vmatpush1.msra.mxu0 0.0
    %2143 = vmatprep.subr.mxu0 0.0
    %2144 = vmatpush1.msra.mxu0 0.0
    %2145 = vmatprep.subr.mxu0 0.0
    %2146 = vmatpush1.msra.mxu0 0.0
    %2147 = vmatprep.subr.mxu0 0.0
    %2148 = vmatpush1.msra.mxu0 0.0
    %2149 = vmatprep.mubr.f32.mxu0 0.0
    %2150 = vmatmul.mubr.f32.gmra.mrb[0].mxu0 %v2083
    %v2151 = vpop.f32.mrb[0].mxu0
    %v2152 = vadd.f32 %v1224, %v2151
    %v2153 = vpop.f32.mrb[0].mxu0
    %2154 = vdwg.mxu0
    %v2155 = vsel %vm147, %v1640, 0
    %2157 = vmatprep.subr.mxu0 0.0
    %2158 = vmatpush1.msra.mxu0 %v1318
    %2159 = vmatprep.subr.mxu0 0.0
    %2160 = vmatpush1.msra.mxu0 %v1319
    %2161 = vmatprep.subr.mxu0 0.0
    %2162 = vmatpush1.msra.mxu0 %v1320
    %2163 = vmatprep.subr.mxu0 0.0
    %2164 = vmatpush1.msra.mxu0 %v1321
    %2165 = vmatprep.subr.mxu0 0.0
    %2166 = vmatpush1.msra.mxu0 0.0
    %2167 = vmatprep.subr.mxu0 0.0
    %2168 = vmatpush1.msra.mxu0 0.0
    %2169 = vmatprep.subr.mxu0 0.0
    %2170 = vmatpush1.msra.mxu0 0.0
    %2171 = vmatprep.subr.mxu0 0.0
    %2172 = vmatpush1.msra.mxu0 0.0
    %2173 = vmatprep.subr.mxu0 0.0
    %2174 = vmatpush1.msra.mxu0 0.0
    %2175 = vmatprep.subr.mxu0 0.0
    %2176 = vmatpush1.msra.mxu0 0.0
    %2177 = vmatprep.subr.mxu0 0.0
    %2178 = vmatpush1.msra.mxu0 0.0
    %2179 = vmatprep.subr.mxu0 0.0
    %2180 = vmatpush1.msra.mxu0 0.0
    %2181 = vmatprep.subr.mxu0 0.0
    %2182 = vmatpush1.msra.mxu0 0.0
    %2183 = vmatprep.subr.mxu0 0.0
    %2184 = vmatpush1.msra.mxu0 0.0
    %2185 = vmatprep.subr.mxu0 0.0
    %2186 = vmatpush1.msra.mxu0 0.0
    %2187 = vmatprep.subr.mxu0 0.0
    %2188 = vmatpush1.msra.mxu0 0.0
    %2189 = vmatprep.subr.mxu0 0.0
    %2190 = vmatpush1.msra.mxu0 0.0
    %2191 = vmatprep.subr.mxu0 0.0
    %2192 = vmatpush1.msra.mxu0 0.0
    %2193 = vmatprep.subr.mxu0 0.0
    %2194 = vmatpush1.msra.mxu0 0.0
    %2195 = vmatprep.subr.mxu0 0.0
    %2196 = vmatpush1.msra.mxu0 0.0
    %2197 = vmatprep.subr.mxu0 0.0
    %2198 = vmatpush1.msra.mxu0 0.0
    %2199 = vmatprep.subr.mxu0 0.0
    %2200 = vmatpush1.msra.mxu0 0.0
    %2201 = vmatprep.subr.mxu0 0.0
    %2202 = vmatpush1.msra.mxu0 0.0
    %2203 = vmatprep.subr.mxu0 0.0
    %2204 = vmatpush1.msra.mxu0 0.0
    %2205 = vmatprep.subr.mxu0 0.0
    %2206 = vmatpush1.msra.mxu0 0.0
    %2207 = vmatprep.subr.mxu0 0.0
    %2208 = vmatpush1.msra.mxu0 0.0
    %2209 = vmatprep.subr.mxu0 0.0
    %2210 = vmatpush1.msra.mxu0 0.0
    %2211 = vmatprep.subr.mxu0 0.0
    %2212 = vmatpush1.msra.mxu0 0.0
    %2213 = vmatprep.subr.mxu0 0.0
    %2214 = vmatpush1.msra.mxu0 0.0
    %2215 = vmatprep.subr.mxu0 0.0
    %2216 = vmatpush1.msra.mxu0 0.0
    %2217 = vmatprep.subr.mxu0 0.0
    %2218 = vmatpush1.msra.mxu0 0.0
    %2219 = vmatprep.subr.mxu0 0.0
    %2220 = vmatpush1.msra.mxu0 0.0
    %2221 = vmatprep.mubr.f32.mxu0 0.0
    %2222 = vmatmul.mubr.f32.gmra.mrb[0].mxu0 %v2155
    %v2223 = vpop.f32.mrb[0].mxu0
    %v2224 = vadd.f32 %v1330, %v2223
    %v2225 = vpop.f32.mrb[0].mxu0
    %2226 = vdwg.mxu0
    %v2227 = vadd.f32 %v2152, %v2224
    %v2228 = vxor.u32 %v2227, 2147483648
    %v2229 = vmul.f32 %v2228, 1.442695
    %v2230 = vpow.pop %v2229
    %v2231 = vadd.f32 %v2230, 1.0
    %v2232 = vrcp.pop %v2231
    %v2233 = vmul.f32 1.0, %v2232
    %2235 = vrot.lane.b32.xlu0 %v2224, 64
    %v2236 = vpop.permute.xlu0 %2235
    %v2238 = vmul.f32 %v2233, %v2236
    %2240 = vrot.lane.b32.xlu0 %v2238, 64
    %v2241 = vpop.permute.xlu0 %2240
    %v2243 = vadd.f32 %v2152, %v2241
    %v2244 = vtanh.pop %v2243
    %v2245 = vsub.f32 1.0, %v2233
    %2247 = vrot.lane.b32.xlu0 %v2244, 96
    %v2248 = vpop.permute.xlu0 %2247
    %v2250 = vmul.f32 %v2245, %v2248
    %v2251 = vmul.f32 %v2233, %v1637
    %v2252 = vadd.f32 %v2250, %v2251
    %2254 = vrot.lane.b32.xlu0 %v2252, 96
    %v2255 = vpop.permute.xlu0 %2254
    %v2257 = vsel %vm147, %v2255, 0.0
    %2258 = vadd.xlane.f32.xlu0 %v2257
    %v2259 = vpop.xlane.xlu0 %2258
    %v2260 = vmul.f32 %v2259, %v380
    %v2261 = vsub.f32 %v2252, %v2260
    %v2262 = vmul.f32 %v2261, %v2261
    %2264 = vrot.lane.b32.xlu0 %v2262, 96
    %v2265 = vpop.permute.xlu0 %2264
    %v2267 = vsel %vm147, %v2265, 0.0
    %2268 = vadd.xlane.f32.xlu0 %v2267
    %v2269 = vpop.xlane.xlu0 %2268
    %v2270 = vmul.f32 %v2269, %v380
    %v2271 = vadd.f32 %v2270, 1e-05
    %v2272 = vrsqrt.pop %v2271
    %v2273 = vmul.f32 %v2261, %v2272
    %v2274 = vmul.f32 %v2273, %v737
    %v2275 = vadd.f32 %v2274, %v1461
    %2277 = vrot.lane.b32.xlu0 %v2275, 96
    %v2278 = vpop.permute.xlu0 %2277
    %v2279 = vsel %vm147, %v2278, 0
    %2281 = vmatprep.subr.mxu0 0.0
    %2282 = vmatpush1.msra.mxu0 %v1468
    %2283 = vmatprep.subr.mxu0 0.0
    %2284 = vmatpush1.msra.mxu0 %v1470
    %2285 = vmatprep.subr.mxu0 0.0
    %2286 = vmatpush1.msra.mxu0 %v1472
    %2287 = vmatprep.subr.mxu0 0.0
    %2288 = vmatpush1.msra.mxu0 %v1474
    %2289 = vmatprep.subr.mxu0 0.0
    %2290 = vmatpush1.msra.mxu0 0.0
    %2291 = vmatprep.subr.mxu0 0.0
    %2292 = vmatpush1.msra.mxu0 0.0
    %2293 = vmatprep.subr.mxu0 0.0
    %2294 = vmatpush1.msra.mxu0 0.0
    %2295 = vmatprep.subr.mxu0 0.0
    %2296 = vmatpush1.msra.mxu0 0.0
    %2297 = vmatprep.subr.mxu0 0.0
    %2298 = vmatpush1.msra.mxu0 0.0
    %2299 = vmatprep.subr.mxu0 0.0
    %2300 = vmatpush1.msra.mxu0 0.0
    %2301 = vmatprep.subr.mxu0 0.0
    %2302 = vmatpush1.msra.mxu0 0.0
    %2303 = vmatprep.subr.mxu0 0.0
    %2304 = vmatpush1.msra.mxu0 0.0
    %2305 = vmatprep.subr.mxu0 0.0
    %2306 = vmatpush1.msra.mxu0 0.0
    %2307 = vmatprep.subr.mxu0 0.0
    %2308 = vmatpush1.msra.mxu0 0.0
    %2309 = vmatprep.subr.mxu0 0.0
    %2310 = vmatpush1.msra.mxu0 0.0
    %2311 = vmatprep.subr.mxu0 0.0
    %2312 = vmatpush1.msra.mxu0 0.0
    %2313 = vmatprep.subr.mxu0 0.0
    %2314 = vmatpush1.msra.mxu0 0.0
    %2315 = vmatprep.subr.mxu0 0.0
    %2316 = vmatpush1.msra.mxu0 0.0
    %2317 = vmatprep.subr.mxu0 0.0
    %2318 = vmatpush1.msra.mxu0 0.0
    %2319 = vmatprep.subr.mxu0 0.0
    %2320 = vmatpush1.msra.mxu0 0.0
    %2321 = vmatprep.subr.mxu0 0.0
    %2322 = vmatpush1.msra.mxu0 0.0
    %2323 = vmatprep.subr.mxu0 0.0
    %2324 = vmatpush1.msra.mxu0 0.0
    %2325 = vmatprep.subr.mxu0 0.0
    %2326 = vmatpush1.msra.mxu0 0.0
    %2327 = vmatprep.subr.mxu0 0.0
    %2328 = vmatpush1.msra.mxu0 0.0
    %2329 = vmatprep.subr.mxu0 0.0
    %2330 = vmatpush1.msra.mxu0 0.0
    %2331 = vmatprep.subr.mxu0 0.0
    %2332 = vmatpush1.msra.mxu0 0.0
    %2333 = vmatprep.subr.mxu0 0.0
    %2334 = vmatpush1.msra.mxu0 0.0
    %2335 = vmatprep.subr.mxu0 0.0
    %2336 = vmatpush1.msra.mxu0 0.0
    %2337 = vmatprep.subr.mxu0 0.0
    %2338 = vmatpush1.msra.mxu0 0.0
    %2339 = vmatprep.subr.mxu0 0.0
    %2340 = vmatpush1.msra.mxu0 0.0
    %2341 = vmatprep.subr.mxu0 0.0
    %2342 = vmatpush1.msra.mxu0 0.0
    %2343 = vmatprep.subr.mxu0 0.0
    %2344 = vmatpush1.msra.mxu0 0.0
    %2345 = vmatprep.mubr.f32.mxu0 0.0
    %2346 = vmatmul.mubr.f32.gmra.mrb[0].mxu0 %v2279
    %v2347 = vpop.f32.mrb[0].mxu0
    %v2348 = vadd.f32 %v1480, %v2347
    %v2349 = vpop.f32.mrb[0].mxu0
    %2350 = vdwg.mxu0
    %v2351 = vmax.f32 %v2348, 0.0
    %v2353 = vsel %vm147, %v2351, 0
    %2355 = vmatprep.subr.mxu0 0.0
    %2356 = vmatpush1.msra.mxu0 %v1305
    %2357 = vmatprep.subr.mxu0 0.0
    %2358 = vmatpush1.msra.mxu0 %v1309
    %2359 = vmatprep.subr.mxu0 0.0
    %2360 = vmatpush1.msra.mxu0 %v1313
    %2361 = vmatprep.subr.mxu0 0.0
    %2362 = vmatpush1.msra.mxu0 %v1317
    %2363 = vmatprep.subr.mxu0 0.0
    %2364 = vmatpush1.msra.mxu0 0.0
    %2365 = vmatprep.subr.mxu0 0.0
    %2366 = vmatpush1.msra.mxu0 0.0
    %2367 = vmatprep.subr.mxu0 0.0
    %2368 = vmatpush1.msra.mxu0 0.0
    %2369 = vmatprep.subr.mxu0 0.0
    %2370 = vmatpush1.msra.mxu0 0.0
    %2371 = vmatprep.subr.mxu0 0.0
    %2372 = vmatpush1.msra.mxu0 0.0
    %2373 = vmatprep.subr.mxu0 0.0
    %2374 = vmatpush1.msra.mxu0 0.0
    %2375 = vmatprep.subr.mxu0 0.0
    %2376 = vmatpush1.msra.mxu0 0.0
    %2377 = vmatprep.subr.mxu0 0.0
    %2378 = vmatpush1.msra.mxu0 0.0
    %2379 = vmatprep.subr.mxu0 0.0
    %2380 = vmatpush1.msra.mxu0 0.0
    %2381 = vmatprep.subr.mxu0 0.0
    %2382 = vmatpush1.msra.mxu0 0.0
    %2383 = vmatprep.subr.mxu0 0.0
    %2384 = vmatpush1.msra.mxu0 0.0
    %2385 = vmatprep.subr.mxu0 0.0
    %2386 = vmatpush1.msra.mxu0 0.0
    %2387 = vmatprep.subr.mxu0 0.0
    %2388 = vmatpush1.msra.mxu0 0.0
    %2389 = vmatprep.subr.mxu0 0.0
    %2390 = vmatpush1.msra.mxu0 0.0
    %2391 = vmatprep.subr.mxu0 0.0
    %2392 = vmatpush1.msra.mxu0 0.0
    %2393 = vmatprep.subr.mxu0 0.0
    %2394 = vmatpush1.msra.mxu0 0.0
    %2395 = vmatprep.subr.mxu0 0.0
    %2396 = vmatpush1.msra.mxu0 0.0
    %2397 = vmatprep.subr.mxu0 0.0
    %2398 = vmatpush1.msra.mxu0 0.0
    %2399 = vmatprep.subr.mxu0 0.0
    %2400 = vmatpush1.msra.mxu0 0.0
    %2401 = vmatprep.subr.mxu0 0.0
    %2402 = vmatpush1.msra.mxu0 0.0
    %2403 = vmatprep.subr.mxu0 0.0
    %2404 = vmatpush1.msra.mxu0 0.0
    %2405 = vmatprep.subr.mxu0 0.0
    %2406 = vmatpush1.msra.mxu0 0.0
    %2407 = vmatprep.subr.mxu0 0.0
    %2408 = vmatpush1.msra.mxu0 0.0
    %2409 = vmatprep.subr.mxu0 0.0
    %2410 = vmatpush1.msra.mxu0 0.0
    %2411 = vmatprep.subr.mxu0 0.0
    %2412 = vmatpush1.msra.mxu0 0.0
    %2413 = vmatprep.subr.mxu0 0.0
    %2414 = vmatpush1.msra.mxu0 0.0
    %2415 = vmatprep.subr.mxu0 0.0
    %2416 = vmatpush1.msra.mxu0 0.0
    %2417 = vmatprep.subr.mxu0 0.0
    %2418 = vmatpush1.msra.mxu0 0.0
    %2419 = vmatprep.mubr.f32.mxu0 0.0
    %2420 = vmatmul.mubr.f32.gmra.mrb[0].mxu0 %v2353
    %v2421 = vpop.f32.mrb[0].mxu0
    %v2422 = vadd.f32 0.0, %v2421
    %v2423 = vpop.f32.mrb[0].mxu0
    %2424 = vdwg.mxu0
    %2426 = vrot.lane.b32.xlu0 %v2422, 32
    %v2427 = vpop.permute.xlu0 %2426
    %v2429 = vadd.f32 %v2252, %v2427
    %v2430 = vadd.f32 %v2429, %v1480
    %2432 = vrot.lane.b32.xlu0 %v2430, 96
    %v2433 = vpop.permute.xlu0 %2432
    %v2435 = vsel %vm147, %v2433, 0.0
    %2436 = vadd.xlane.f32.xlu0 %v2435
    %v2437 = vpop.xlane.xlu0 %2436
    %v2438 = vmul.f32 %v2437, %v380
    %v2439 = vsub.f32 %v2430, %v2438
    %v2440 = vmul.f32 %v2439, %v2439
    %2442 = vrot.lane.b32.xlu0 %v2440, 96
    %v2443 = vpop.permute.xlu0 %2442
    %v2445 = vsel %vm147, %v2443, 0.0
    %2446 = vadd.xlane.f32.xlu0 %v2445
    %v2447 = vpop.xlane.xlu0 %2446
    %v2448 = vmul.f32 %v2447, %v380
    %v2449 = vadd.f32 %v2448, 1e-05
    %v2450 = vrsqrt.pop %v2449
    %v2451 = vmul.f32 %v2439, %v2450
    %v2452 = vmul.f32 %v2451, %v521
    %v2453 = vadd.f32 %v2452, %v729
    %2455 = vrot.lane.b32.xlu0 %v2453, 96
    %v2456 = vpop.permute.xlu0 %2455
    %v2457 = vsel %vm147, %v2456, 0
    %2459 = vmatprep.subr.mxu0 0.0
    %2460 = vmatpush1.msra.mxu0 %v435
    %2461 = vmatprep.subr.mxu0 0.0
    %2462 = vmatpush1.msra.mxu0 %v436
    %2463 = vmatprep.subr.mxu0 0.0
    %2464 = vmatpush1.msra.mxu0 %v437
    %2465 = vmatprep.subr.mxu0 0.0
    %2466 = vmatpush1.msra.mxu0 %v438
    %2467 = vmatprep.subr.mxu0 0.0
    %2468 = vmatpush1.msra.mxu0 0.0
    %2469 = vmatprep.subr.mxu0 0.0
    %2470 = vmatpush1.msra.mxu0 0.0
    %2471 = vmatprep.subr.mxu0 0.0
    %2472 = vmatpush1.msra.mxu0 0.0
    %2473 = vmatprep.subr.mxu0 0.0
    %2474 = vmatpush1.msra.mxu0 0.0
    %2475 = vmatprep.subr.mxu0 0.0
    %2476 = vmatpush1.msra.mxu0 0.0
    %2477 = vmatprep.subr.mxu0 0.0
    %2478 = vmatpush1.msra.mxu0 0.0
    %2479 = vmatprep.subr.mxu0 0.0
    %2480 = vmatpush1.msra.mxu0 0.0
    %2481 = vmatprep.subr.mxu0 0.0
    %2482 = vmatpush1.msra.mxu0 0.0
    %2483 = vmatprep.subr.mxu0 0.0
    %2484 = vmatpush1.msra.mxu0 0.0
    %2485 = vmatprep.subr.mxu0 0.0
    %2486 = vmatpush1.msra.mxu0 0.0
    %2487 = vmatprep.subr.mxu0 0.0
    %2488 = vmatpush1.msra.mxu0 0.0
    %2489 = vmatprep.subr.mxu0 0.0
    %2490 = vmatpush1.msra.mxu0 0.0
    %2491 = vmatprep.subr.mxu0 0.0
    %2492 = vmatpush1.msra.mxu0 0.0
    %2493 = vmatprep.subr.mxu0 0.0
    %2494 = vmatpush1.msra.mxu0 0.0
    %2495 = vmatprep.subr.mxu0 0.0
    %2496 = vmatpush1.msra.mxu0 0.0
    %2497 = vmatprep.subr.mxu0 0.0
    %2498 = vmatpush1.msra.mxu0 0.0
    %2499 = vmatprep.subr.mxu0 0.0
    %2500 = vmatpush1.msra.mxu0 0.0
    %2501 = vmatprep.subr.mxu0 0.0
    %2502 = vmatpush1.msra.mxu0 0.0
    %2503 = vmatprep.subr.mxu0 0.0
    %2504 = vmatpush1.msra.mxu0 0.0
    %2505 = vmatprep.subr.mxu0 0.0
    %2506 = vmatpush1.msra.mxu0 0.0
    %2507 = vmatprep.subr.mxu0 0.0
    %2508 = vmatpush1.msra.mxu0 0.0
    %2509 = vmatprep.subr.mxu0 0.0
    %2510 = vmatpush1.msra.mxu0 0.0
    %2511 = vmatprep.subr.mxu0 0.0
    %2512 = vmatpush1.msra.mxu0 0.0
    %2513 = vmatprep.subr.mxu0 0.0
    %2514 = vmatpush1.msra.mxu0 0.0
    %2515 = vmatprep.subr.mxu0 0.0
    %2516 = vmatpush1.msra.mxu0 0.0
    %2517 = vmatprep.subr.mxu0 0.0
    %2518 = vmatpush1.msra.mxu0 0.0
    %2519 = vmatprep.subr.mxu0 0.0
    %2520 = vmatpush1.msra.mxu0 0.0
    %2521 = vmatprep.subr.mxu0 0.0
    %2522 = vmatpush1.msra.mxu0 0.0
    %2523 = vmatprep.mubr.f32.mxu0 0.0
    %2524 = vmatmul.mubr.f32.gmra.mrb[0].mxu0 %v2457
    %v2525 = vpop.f32.mrb[0].mxu0
    %v2526 = vadd.f32 %v531, %v2525
    %v2527 = vpop.f32.mrb[0].mxu0
    %2528 = vdwg.mxu0
    %v2530 = vcombine.high %v2526, %v2526
    %v2531 = vsel %vm147, %v2526, 0
    %2533 = vmatprep.subr.mxu0 0.0
    %2534 = vmatpush1.xpose.msra.mxu0 %v824
    %2535 = vmatprep.subr.mxu0 0.0
    %2536 = vmatpush1.xpose.msra.mxu0 %v827
    %2537 = vmatprep.subr.mxu0 0.0
    %2538 = vmatpush1.xpose.msra.mxu0 0.0
    %2539 = vmatprep.subr.mxu0 0.0
    %2540 = vmatpush1.xpose.msra.mxu0 0.0
    %2541 = vmatprep.subr.mxu0 0.0
    %2542 = vmatpush1.xpose.msra.mxu0 0.0
    %2543 = vmatprep.subr.mxu0 0.0
    %2544 = vmatpush1.xpose.msra.mxu0 0.0
    %2545 = vmatprep.subr.mxu0 0.0
    %2546 = vmatpush1.xpose.msra.mxu0 0.0
    %2547 = vmatprep.subr.mxu0 0.0
    %2548 = vmatpush1.xpose.msra.mxu0 0.0
    %2549 = vmatprep.subr.mxu0 0.0
    %2550 = vmatpush1.xpose.msra.mxu0 0.0
    %2551 = vmatprep.subr.mxu0 0.0
    %2552 = vmatpush1.xpose.msra.mxu0 0.0
    %2553 = vmatprep.subr.mxu0 0.0
    %2554 = vmatpush1.xpose.msra.mxu0 0.0
    %2555 = vmatprep.subr.mxu0 0.0
    %2556 = vmatpush1.xpose.msra.mxu0 0.0
    %2557 = vmatprep.subr.mxu0 0.0
    %2558 = vmatpush1.xpose.msra.mxu0 0.0
    %2559 = vmatprep.subr.mxu0 0.0
    %2560 = vmatpush1.xpose.msra.mxu0 0.0
    %2561 = vmatprep.subr.mxu0 0.0
    %2562 = vmatpush1.xpose.msra.mxu0 0.0
    %2563 = vmatprep.subr.mxu0 0.0
    %2564 = vmatpush1.xpose.msra.mxu0 0.0
    %2565 = vmatprep.subr.mxu0 0.0
    %2566 = vmatpush1.xpose.msra.mxu0 0.0
    %2567 = vmatprep.subr.mxu0 0.0
    %2568 = vmatpush1.xpose.msra.mxu0 0.0
    %2569 = vmatprep.subr.mxu0 0.0
    %2570 = vmatpush1.xpose.msra.mxu0 0.0
    %2571 = vmatprep.subr.mxu0 0.0
    %2572 = vmatpush1.xpose.msra.mxu0 0.0
    %2573 = vmatprep.subr.mxu0 0.0
    %2574 = vmatpush1.xpose.msra.mxu0 0.0
    %2575 = vmatprep.subr.mxu0 0.0
    %2576 = vmatpush1.xpose.msra.mxu0 0.0
    %2577 = vmatprep.subr.mxu0 0.0
    %2578 = vmatpush1.xpose.msra.mxu0 0.0
    %2579 = vmatprep.subr.mxu0 0.0
    %2580 = vmatpush1.xpose.msra.mxu0 0.0
    %2581 = vmatprep.subr.mxu0 0.0
    %2582 = vmatpush1.xpose.msra.mxu0 0.0
    %2583 = vmatprep.subr.mxu0 0.0
    %2584 = vmatpush1.xpose.msra.mxu0 0.0
    %2585 = vmatprep.subr.mxu0 0.0
    %2586 = vmatpush1.xpose.msra.mxu0 0.0
    %2587 = vmatprep.subr.mxu0 0.0
    %2588 = vmatpush1.xpose.msra.mxu0 0.0
    %2589 = vmatprep.subr.mxu0 0.0
    %2590 = vmatpush1.xpose.msra.mxu0 0.0
    %2591 = vmatprep.subr.mxu0 0.0
    %2592 = vmatpush1.xpose.msra.mxu0 0.0
    %2593 = vmatprep.subr.mxu0 0.0
    %2594 = vmatpush1.xpose.msra.mxu0 0.0
    %2595 = vmatprep.subr.mxu0 0.0
    %2596 = vmatpush1.xpose.msra.mxu0 0.0
    %2597 = vmatprep.mubr.f32.mxu0 0.0
    %2598 = vmatmul.mubr.f32.gmra.mrb[0].mxu0 %v2531
    %v2599 = vpop.f32.mrb[0].mxu0
    %v2600 = vadd.f32 0.0, %v2599
    %v2601 = vpop.f32.mrb[0].mxu0
    %2602 = vdwg.mxu0
    %v2603 = vsel %vm147, %v2530, 0
    %2605 = vmatprep.subr.mxu0 0.0
    %2606 = vmatpush1.xpose.msra.mxu0 %v902
    %2607 = vmatprep.subr.mxu0 0.0
    %2608 = vmatpush1.xpose.msra.mxu0 %v905
    %2609 = vmatprep.subr.mxu0 0.0
    %2610 = vmatpush1.xpose.msra.mxu0 0.0
    %2611 = vmatprep.subr.mxu0 0.0
    %2612 = vmatpush1.xpose.msra.mxu0 0.0
    %2613 = vmatprep.subr.mxu0 0.0
    %2614 = vmatpush1.xpose.msra.mxu0 0.0
    %2615 = vmatprep.subr.mxu0 0.0
    %2616 = vmatpush1.xpose.msra.mxu0 0.0
    %2617 = vmatprep.subr.mxu0 0.0
    %2618 = vmatpush1.xpose.msra.mxu0 0.0
    %2619 = vmatprep.subr.mxu0 0.0
    %2620 = vmatpush1.xpose.msra.mxu0 0.0
    %2621 = vmatprep.subr.mxu0 0.0
    %2622 = vmatpush1.xpose.msra.mxu0 0.0
    %2623 = vmatprep.subr.mxu0 0.0
    %2624 = vmatpush1.xpose.msra.mxu0 0.0
    %2625 = vmatprep.subr.mxu0 0.0
    %2626 = vmatpush1.xpose.msra.mxu0 0.0
    %2627 = vmatprep.subr.mxu0 0.0
    %2628 = vmatpush1.xpose.msra.mxu0 0.0
    %2629 = vmatprep.subr.mxu0 0.0
    %2630 = vmatpush1.xpose.msra.mxu0 0.0
    %2631 = vmatprep.subr.mxu0 0.0
    %2632 = vmatpush1.xpose.msra.mxu0 0.0
    %2633 = vmatprep.subr.mxu0 0.0
    %2634 = vmatpush1.xpose.msra.mxu0 0.0
    %2635 = vmatprep.subr.mxu0 0.0
    %2636 = vmatpush1.xpose.msra.mxu0 0.0
    %2637 = vmatprep.subr.mxu0 0.0
    %2638 = vmatpush1.xpose.msra.mxu0 0.0
    %2639 = vmatprep.subr.mxu0 0.0
    %2640 = vmatpush1.xpose.msra.mxu0 0.0
    %2641 = vmatprep.subr.mxu0 0.0
    %2642 = vmatpush1.xpose.msra.mxu0 0.0
    %2643 = vmatprep.subr.mxu0 0.0
    %2644 = vmatpush1.xpose.msra.mxu0 0.0
    %2645 = vmatprep.subr.mxu0 0.0
    %2646 = vmatpush1.xpose.msra.mxu0 0.0
    %2647 = vmatprep.subr.mxu0 0.0
    %2648 = vmatpush1.xpose.msra.mxu0 0.0
    %2649 = vmatprep.subr.mxu0 0.0
    %2650 = vmatpush1.xpose.msra.mxu0 0.0
    %2651 = vmatprep.subr.mxu0 0.0
    %2652 = vmatpush1.xpose.msra.mxu0 0.0
    %2653 = vmatprep.subr.mxu0 0.0
    %2654 = vmatpush1.xpose.msra.mxu0 0.0
    %2655 = vmatprep.subr.mxu0 0.0
    %2656 = vmatpush1.xpose.msra.mxu0 0.0
    %2657 = vmatprep.subr.mxu0 0.0
    %2658 = vmatpush1.xpose.msra.mxu0 0.0
    %2659 = vmatprep.subr.mxu0 0.0
    %2660 = vmatpush1.xpose.msra.mxu0 0.0
    %2661 = vmatprep.subr.mxu0 0.0
    %2662 = vmatpush1.xpose.msra.mxu0 0.0
    %2663 = vmatprep.subr.mxu0 0.0
    %2664 = vmatpush1.xpose.msra.mxu0 0.0
    %2665 = vmatprep.subr.mxu0 0.0
    %2666 = vmatpush1.xpose.msra.mxu0 0.0
    %2667 = vmatprep.subr.mxu0 0.0
    %2668 = vmatpush1.xpose.msra.mxu0 0.0
    %2669 = vmatprep.mubr.f32.mxu0 0.0
    %2670 = vmatmul.mubr.f32.gmra.mrb[0].mxu0 %v2603
    %v2671 = vpop.f32.mrb[0].mxu0
    %v2672 = vadd.f32 0.0, %v2671
    %v2673 = vpop.f32.mrb[0].mxu0
    %2674 = vdwg.mxu0
    %v2675 = vmul.f32 %v2600, 0.17677669
    %v2676 = vmul.f32 %v2672, 0.17677669
    %v2677 = vsel %vm979, %v2675, -inf
    %v2678 = vrot.slane %v2677, 4
    %v2679 = vmax.f32 %v2677, %v2678
    %v2680 = vrot.slane %v2679, 2
    %v2681 = vmax.f32 %v2679, %v2680
    %v2682 = vrot.slane %v2681, 1
    %v2683 = vmax.f32 %v2681, %v2682
    %v2684 = vsel %vm979, %v2676, -inf
    %v2685 = vrot.slane %v2684, 4
    %v2686 = vmax.f32 %v2684, %v2685
    %v2687 = vrot.slane %v2686, 2
    %v2688 = vmax.f32 %v2686, %v2687
    %v2689 = vrot.slane %v2688, 1
    %v2690 = vmax.f32 %v2688, %v2689
    %v2691 = vsub.f32 %v2675, %v2683
    %v2692 = vsub.f32 %v2676, %v2690
    %v2693 = vmul.f32 %v2691, 1.442695
    %v2694 = vpow.pop %v2693
    %v2695 = vmul.f32 %v2692, 1.442695
    %v2696 = vpow.pop %v2695
    %v2697 = vsel %vm979, %v2694, 0.0
    %v2698 = vrot.slane %v2697, 4
    %v2699 = vadd.f32 %v2697, %v2698
    %v2700 = vrot.slane %v2699, 2
    %v2701 = vadd.f32 %v2699, %v2700
    %v2702 = vrot.slane %v2701, 1
    %v2703 = vadd.f32 %v2701, %v2702
    %v2704 = vsel %vm979, %v2696, 0.0
    %v2705 = vrot.slane %v2704, 4
    %v2706 = vadd.f32 %v2704, %v2705
    %v2707 = vrot.slane %v2706, 2
    %v2708 = vadd.f32 %v2706, %v2707
    %v2709 = vrot.slane %v2708, 1
    %v2710 = vadd.f32 %v2708, %v2709
    %v2711 = vrcp.pop %v2703
    %v2712 = vrcp.pop %v2710
    %v2713 = vmul.f32 %v2694, %v2711
    %v2714 = vmul.f32 %v2696, %v2712
    %v2715 = vadd.f32 %v2713, 1e-08
    %v2716 = vadd.f32 %v2714, 1e-08
    %v2717 = vsel %vm979, %v2715, 0.0
    %2718 = vadd.xlane.f32.xlu0 %v2717
    %v2719 = vpop.xlane.xlu0 %2718
    %v2720 = vsel %vm979, %v2716, 0.0
    %2721 = vadd.xlane.f32.xlu0 %v2720
    %v2722 = vpop.xlane.xlu0 %2721
    %v2723 = vrcp.pop %v2719
    %v2724 = vmul.f32 %v2715, %v2723
    %v2725 = vrcp.pop %v2722
    %v2726 = vmul.f32 %v2716, %v2725
    %v2728 = vsel %vm1036, %v2724, 0
    %2730 = vmatprep.subr.mxu0 0.0
    %2731 = vmatpush1.msra.mxu0 %v1031
    %2732 = vmatprep.subr.mxu0 0.0
    %2733 = vmatpush1.msra.mxu0 %v1033
    %2734 = vmatprep.subr.mxu0 0.0
    %2735 = vmatpush1.msra.mxu0 0.0
    %2736 = vmatprep.subr.mxu0 0.0
    %2737 = vmatpush1.msra.mxu0 0.0
    %2738 = vmatprep.subr.mxu0 0.0
    %2739 = vmatpush1.msra.mxu0 0.0
    %2740 = vmatprep.subr.mxu0 0.0
    %2741 = vmatpush1.msra.mxu0 0.0
    %2742 = vmatprep.subr.mxu0 0.0
    %2743 = vmatpush1.msra.mxu0 0.0
    %2744 = vmatprep.subr.mxu0 0.0
    %2745 = vmatpush1.msra.mxu0 0.0
    %2746 = vmatprep.subr.mxu0 0.0
    %2747 = vmatpush1.msra.mxu0 0.0
    %2748 = vmatprep.subr.mxu0 0.0
    %2749 = vmatpush1.msra.mxu0 0.0
    %2750 = vmatprep.subr.mxu0 0.0
    %2751 = vmatpush1.msra.mxu0 0.0
    %2752 = vmatprep.subr.mxu0 0.0
    %2753 = vmatpush1.msra.mxu0 0.0
    %2754 = vmatprep.subr.mxu0 0.0
    %2755 = vmatpush1.msra.mxu0 0.0
    %2756 = vmatprep.subr.mxu0 0.0
    %2757 = vmatpush1.msra.mxu0 0.0
    %2758 = vmatprep.subr.mxu0 0.0
    %2759 = vmatpush1.msra.mxu0 0.0
    %2760 = vmatprep.subr.mxu0 0.0
    %2761 = vmatpush1.msra.mxu0 0.0
    %2762 = vmatprep.subr.mxu0 0.0
    %2763 = vmatpush1.msra.mxu0 0.0
    %2764 = vmatprep.subr.mxu0 0.0
    %2765 = vmatpush1.msra.mxu0 0.0
    %2766 = vmatprep.subr.mxu0 0.0
    %2767 = vmatpush1.msra.mxu0 0.0
    %2768 = vmatprep.subr.mxu0 0.0
    %2769 = vmatpush1.msra.mxu0 0.0
    %2770 = vmatprep.subr.mxu0 0.0
    %2771 = vmatpush1.msra.mxu0 0.0
    %2772 = vmatprep.subr.mxu0 0.0
    %2773 = vmatpush1.msra.mxu0 0.0
    %2774 = vmatprep.subr.mxu0 0.0
    %2775 = vmatpush1.msra.mxu0 0.0
    %2776 = vmatprep.subr.mxu0 0.0
    %2777 = vmatpush1.msra.mxu0 0.0
    %2778 = vmatprep.subr.mxu0 0.0
    %2779 = vmatpush1.msra.mxu0 0.0
    %2780 = vmatprep.subr.mxu0 0.0
    %2781 = vmatpush1.msra.mxu0 0.0
    %2782 = vmatprep.subr.mxu0 0.0
    %2783 = vmatpush1.msra.mxu0 0.0
    %2784 = vmatprep.subr.mxu0 0.0
    %2785 = vmatpush1.msra.mxu0 0.0
    %2786 = vmatprep.subr.mxu0 0.0
    %2787 = vmatpush1.msra.mxu0 0.0
    %2788 = vmatprep.subr.mxu0 0.0
    %2789 = vmatpush1.msra.mxu0 0.0
    %2790 = vmatprep.subr.mxu0 0.0
    %2791 = vmatpush1.msra.mxu0 0.0
    %2792 = vmatprep.subr.mxu0 0.0
    %2793 = vmatpush1.msra.mxu0 0.0
    %2794 = vmatprep.mubr.f32.mxu0 0.0
    %2795 = vmatmul.mubr.f32.gmra.mrb[0].mxu0 %v2728
    %v2796 = vpop.f32.mrb[0].mxu0
    %v2797 = vadd.f32 0.0, %v2796
    %v2798 = vpop.f32.mrb[0].mxu0
    %2799 = vdwg.mxu0
    %v2801 = vsel %vm1036, %v2726, 0
    %2803 = vmatprep.subr.mxu0 0.0
    %2804 = vmatpush1.msra.mxu0 %v1111
    %2805 = vmatprep.subr.mxu0 0.0
    %2806 = vmatpush1.msra.mxu0 %v1113
    %2807 = vmatprep.subr.mxu0 0.0
    %2808 = vmatpush1.msra.mxu0 0.0
    %2809 = vmatprep.subr.mxu0 0.0
    %2810 = vmatpush1.msra.mxu0 0.0
    %2811 = vmatprep.subr.mxu0 0.0
    %2812 = vmatpush1.msra.mxu0 0.0
    %2813 = vmatprep.subr.mxu0 0.0
    %2814 = vmatpush1.msra.mxu0 0.0
    %2815 = vmatprep.subr.mxu0 0.0
    %2816 = vmatpush1.msra.mxu0 0.0
    %2817 = vmatprep.subr.mxu0 0.0
    %2818 = vmatpush1.msra.mxu0 0.0
    %2819 = vmatprep.subr.mxu0 0.0
    %2820 = vmatpush1.msra.mxu0 0.0
    %2821 = vmatprep.subr.mxu0 0.0
    %2822 = vmatpush1.msra.mxu0 0.0
    %2823 = vmatprep.subr.mxu0 0.0
    %2824 = vmatpush1.msra.mxu0 0.0
    %2825 = vmatprep.subr.mxu0 0.0
    %2826 = vmatpush1.msra.mxu0 0.0
    %2827 = vmatprep.subr.mxu0 0.0
    %2828 = vmatpush1.msra.mxu0 0.0
    %2829 = vmatprep.subr.mxu0 0.0
    %2830 = vmatpush1.msra.mxu0 0.0
    %2831 = vmatprep.subr.mxu0 0.0
    %2832 = vmatpush1.msra.mxu0 0.0
    %2833 = vmatprep.subr.mxu0 0.0
    %2834 = vmatpush1.msra.mxu0 0.0
    %2835 = vmatprep.subr.mxu0 0.0
    %2836 = vmatpush1.msra.mxu0 0.0
    %2837 = vmatprep.subr.mxu0 0.0
    %2838 = vmatpush1.msra.mxu0 0.0
    %2839 = vmatprep.subr.mxu0 0.0
    %2840 = vmatpush1.msra.mxu0 0.0
    %2841 = vmatprep.subr.mxu0 0.0
    %2842 = vmatpush1.msra.mxu0 0.0
    %2843 = vmatprep.subr.mxu0 0.0
    %2844 = vmatpush1.msra.mxu0 0.0
    %2845 = vmatprep.subr.mxu0 0.0
    %2846 = vmatpush1.msra.mxu0 0.0
    %2847 = vmatprep.subr.mxu0 0.0
    %2848 = vmatpush1.msra.mxu0 0.0
    %2849 = vmatprep.subr.mxu0 0.0
    %2850 = vmatpush1.msra.mxu0 0.0
    %2851 = vmatprep.subr.mxu0 0.0
    %2852 = vmatpush1.msra.mxu0 0.0
    %2853 = vmatprep.subr.mxu0 0.0
    %2854 = vmatpush1.msra.mxu0 0.0
    %2855 = vmatprep.subr.mxu0 0.0
    %2856 = vmatpush1.msra.mxu0 0.0
    %2857 = vmatprep.subr.mxu0 0.0
    %2858 = vmatpush1.msra.mxu0 0.0
    %2859 = vmatprep.subr.mxu0 0.0
    %2860 = vmatpush1.msra.mxu0 0.0
    %2861 = vmatprep.subr.mxu0 0.0
    %2862 = vmatpush1.msra.mxu0 0.0
    %2863 = vmatprep.subr.mxu0 0.0
    %2864 = vmatpush1.msra.mxu0 0.0
    %2865 = vmatprep.subr.mxu0 0.0
    %2866 = vmatpush1.msra.mxu0 0.0
    %2867 = vmatprep.mubr.f32.mxu0 0.0
    %2868 = vmatmul.mubr.f32.gmra.mrb[0].mxu0 %v2801
    %v2869 = vpop.f32.mrb[0].mxu0
    %v2870 = vadd.f32 0.0, %v2869
    %v2871 = vpop.f32.mrb[0].mxu0
    %2872 = vdwg.mxu0
    %v2875 = vcombine.low %v2797, %v2870
    %v2876 = vsel %vm147, %v2875, 0
    %2878 = vmatprep.subr.mxu0 0.0
    %2879 = vmatpush1.msra.mxu0 %v1212
    %2880 = vmatprep.subr.mxu0 0.0
    %2881 = vmatpush1.msra.mxu0 %v1213
    %2882 = vmatprep.subr.mxu0 0.0
    %2883 = vmatpush1.msra.mxu0 %v1214
    %2884 = vmatprep.subr.mxu0 0.0
    %2885 = vmatpush1.msra.mxu0 %v1215
    %2886 = vmatprep.subr.mxu0 0.0
    %2887 = vmatpush1.msra.mxu0 0.0
    %2888 = vmatprep.subr.mxu0 0.0
    %2889 = vmatpush1.msra.mxu0 0.0
    %2890 = vmatprep.subr.mxu0 0.0
    %2891 = vmatpush1.msra.mxu0 0.0
    %2892 = vmatprep.subr.mxu0 0.0
    %2893 = vmatpush1.msra.mxu0 0.0
    %2894 = vmatprep.subr.mxu0 0.0
    %2895 = vmatpush1.msra.mxu0 0.0
    %2896 = vmatprep.subr.mxu0 0.0
    %2897 = vmatpush1.msra.mxu0 0.0
    %2898 = vmatprep.subr.mxu0 0.0
    %2899 = vmatpush1.msra.mxu0 0.0
    %2900 = vmatprep.subr.mxu0 0.0
    %2901 = vmatpush1.msra.mxu0 0.0
    %2902 = vmatprep.subr.mxu0 0.0
    %2903 = vmatpush1.msra.mxu0 0.0
    %2904 = vmatprep.subr.mxu0 0.0
    %2905 = vmatpush1.msra.mxu0 0.0
    %2906 = vmatprep.subr.mxu0 0.0
    %2907 = vmatpush1.msra.mxu0 0.0
    %2908 = vmatprep.subr.mxu0 0.0
    %2909 = vmatpush1.msra.mxu0 0.0
    %2910 = vmatprep.subr.mxu0 0.0
    %2911 = vmatpush1.msra.mxu0 0.0
    %2912 = vmatprep.subr.mxu0 0.0
    %2913 = vmatpush1.msra.mxu0 0.0
    %2914 = vmatprep.subr.mxu0 0.0
    %2915 = vmatpush1.msra.mxu0 0.0
    %2916 = vmatprep.subr.mxu0 0.0
    %2917 = vmatpush1.msra.mxu0 0.0
    %2918 = vmatprep.subr.mxu0 0.0
    %2919 = vmatpush1.msra.mxu0 0.0
    %2920 = vmatprep.subr.mxu0 0.0
    %2921 = vmatpush1.msra.mxu0 0.0
    %2922 = vmatprep.subr.mxu0 0.0
    %2923 = vmatpush1.msra.mxu0 0.0
    %2924 = vmatprep.subr.mxu0 0.0
    %2925 = vmatpush1.msra.mxu0 0.0
    %2926 = vmatprep.subr.mxu0 0.0
    %2927 = vmatpush1.msra.mxu0 0.0
    %2928 = vmatprep.subr.mxu0 0.0
    %2929 = vmatpush1.msra.mxu0 0.0
    %2930 = vmatprep.subr.mxu0 0.0
    %2931 = vmatpush1.msra.mxu0 0.0
    %2932 = vmatprep.subr.mxu0 0.0
    %2933 = vmatpush1.msra.mxu0 0.0
    %2934 = vmatprep.subr.mxu0 0.0
    %2935 = vmatpush1.msra.mxu0 0.0
    %2936 = vmatprep.subr.mxu0 0.0
    %2937 = vmatpush1.msra.mxu0 0.0
    %2938 = vmatprep.subr.mxu0 0.0
    %2939 = vmatpush1.msra.mxu0 0.0
    %2940 = vmatprep.subr.mxu0 0.0
    %2941 = vmatpush1.msra.mxu0 0.0
    %2942 = vmatprep.mubr.f32.mxu0 0.0
    %2943 = vmatmul.mubr.f32.gmra.mrb[0].mxu0 %v2876
    %v2944 = vpop.f32.mrb[0].mxu0
    %v2945 = vadd.f32 %v1224, %v2944
    %v2946 = vpop.f32.mrb[0].mxu0
    %2947 = vdwg.mxu0
    %v2948 = vsel %vm147, %v2433, 0
    %2950 = vmatprep.subr.mxu0 0.0
    %2951 = vmatpush1.msra.mxu0 %v1318
    %2952 = vmatprep.subr.mxu0 0.0
    %2953 = vmatpush1.msra.mxu0 %v1319
    %2954 = vmatprep.subr.mxu0 0.0
    %2955 = vmatpush1.msra.mxu0 %v1320
    %2956 = vmatprep.subr.mxu0 0.0
    %2957 = vmatpush1.msra.mxu0 %v1321
    %2958 = vmatprep.subr.mxu0 0.0
    %2959 = vmatpush1.msra.mxu0 0.0
    %2960 = vmatprep.subr.mxu0 0.0
    %2961 = vmatpush1.msra.mxu0 0.0
    %2962 = vmatprep.subr.mxu0 0.0
    %2963 = vmatpush1.msra.mxu0 0.0
    %2964 = vmatprep.subr.mxu0 0.0
    %2965 = vmatpush1.msra.mxu0 0.0
    %2966 = vmatprep.subr.mxu0 0.0
    %2967 = vmatpush1.msra.mxu0 0.0
    %2968 = vmatprep.subr.mxu0 0.0
    %2969 = vmatpush1.msra.mxu0 0.0
    %2970 = vmatprep.subr.mxu0 0.0
    %2971 = vmatpush1.msra.mxu0 0.0
    %2972 = vmatprep.subr.mxu0 0.0
    %2973 = vmatpush1.msra.mxu0 0.0
    %2974 = vmatprep.subr.mxu0 0.0
    %2975 = vmatpush1.msra.mxu0 0.0
    %2976 = vmatprep.subr.mxu0 0.0
    %2977 = vmatpush1.msra.mxu0 0.0
    %2978 = vmatprep.subr.mxu0 0.0
    %2979 = vmatpush1.msra.mxu0 0.0
    %2980 = vmatprep.subr.mxu0 0.0
    %2981 = vmatpush1.msra.mxu0 0.0
    %2982 = vmatprep.subr.mxu0 0.0
    %2983 = vmatpush1.msra.mxu0 0.0
    %2984 = vmatprep.subr.mxu0 0.0
    %2985 = vmatpush1.msra.mxu0 0.0
    %2986 = vmatprep.subr.mxu0 0.0
    %2987 = vmatpush1.msra.mxu0 0.0
    %2988 = vmatprep.subr.mxu0 0.0
    %2989 = vmatpush1.msra.mxu0 0.0
    %2990 = vmatprep.subr.mxu0 0.0
    %2991 = vmatpush1.msra.mxu0 0.0
    %2992 = vmatprep.subr.mxu0 0.0
    %2993 = vmatpush1.msra.mxu0 0.0
    %2994 = vmatprep.subr.mxu0 0.0
    %2995 = vmatpush1.msra.mxu0 0.0
    %2996 = vmatprep.subr.mxu0 0.0
    %2997 = vmatpush1.msra.mxu0 0.0
    %2998 = vmatprep.subr.mxu0 0.0
    %2999 = vmatpush1.msra.mxu0 0.0
    %3000 = vmatprep.subr.mxu0 0.0
    %3001 = vmatpush1.msra.mxu0 0.0
    %3002 = vmatprep.subr.mxu0 0.0
    %3003 = vmatpush1.msra.mxu0 0.0
    %3004 = vmatprep.subr.mxu0 0.0
    %3005 = vmatpush1.msra.mxu0 0.0
    %3006 = vmatprep.subr.mxu0 0.0
    %3007 = vmatpush1.msra.mxu0 0.0
    %3008 = vmatprep.subr.mxu0 0.0
    %3009 = vmatpush1.msra.mxu0 0.0
    %3010 = vmatprep.subr.mxu0 0.0
    %3011 = vmatpush1.msra.mxu0 0.0
    %3012 = vmatprep.subr.mxu0 0.0
    %3013 = vmatpush1.msra.mxu0 0.0
    %3014 = vmatprep.mubr.f32.mxu0 0.0
    %3015 = vmatmul.mubr.f32.gmra.mrb[0].mxu0 %v2948
    %v3016 = vpop.f32.mrb[0].mxu0
    %v3017 = vadd.f32 %v1330, %v3016
    %v3018 = vpop.f32.mrb[0].mxu0
    %3019 = vdwg.mxu0
    %v3020 = vadd.f32 %v2945, %v3017
    %v3021 = vxor.u32 %v3020, 2147483648
    %v3022 = vmul.f32 %v3021, 1.442695
    %v3023 = vpow.pop %v3022
    %v3024 = vadd.f32 %v3023, 1.0
    %v3025 = vrcp.pop %v3024
    %v3026 = vmul.f32 1.0, %v3025
    %3028 = vrot.lane.b32.xlu0 %v3017, 64
    %v3029 = vpop.permute.xlu0 %3028
    %v3031 = vmul.f32 %v3026, %v3029
    %3033 = vrot.lane.b32.xlu0 %v3031, 64
    %v3034 = vpop.permute.xlu0 %3033
    %v3036 = vadd.f32 %v2945, %v3034
    %v3037 = vtanh.pop %v3036
    %v3038 = vsub.f32 1.0, %v3026
    %3040 = vrot.lane.b32.xlu0 %v3037, 96
    %v3041 = vpop.permute.xlu0 %3040
    %v3043 = vmul.f32 %v3038, %v3041
    %v3044 = vmul.f32 %v3026, %v2430
    %v3045 = vadd.f32 %v3043, %v3044
    %3047 = vrot.lane.b32.xlu0 %v3045, 96
    %v3048 = vpop.permute.xlu0 %3047
    %v3050 = vsel %vm147, %v3048, 0.0
    %3051 = vadd.xlane.f32.xlu0 %v3050
    %v3052 = vpop.xlane.xlu0 %3051
    %v3053 = vmul.f32 %v3052, %v380
    %v3054 = vsub.f32 %v3045, %v3053
    %v3055 = vmul.f32 %v3054, %v3054
    %3057 = vrot.lane.b32.xlu0 %v3055, 96
    %v3058 = vpop.permute.xlu0 %3057
    %v3060 = vsel %vm147, %v3058, 0.0
    %3061 = vadd.xlane.f32.xlu0 %v3060
    %v3062 = vpop.xlane.xlu0 %3061
    %v3063 = vmul.f32 %v3062, %v380
    %v3064 = vadd.f32 %v3063, 1e-05
    %v3065 = vrsqrt.pop %v3064
    %v3066 = vmul.f32 %v3054, %v3065
    %v3067 = vmul.f32 %v3066, %v737
    %v3068 = vadd.f32 %v3067, %v1461
    %3070 = vrot.lane.b32.xlu0 %v3068, 96
    %v3071 = vpop.permute.xlu0 %3070
    %v3072 = vsel %vm147, %v3071, 0
    %3074 = vmatprep.subr.mxu0 0.0
    %3075 = vmatpush1.msra.mxu0 %v1468
    %3076 = vmatprep.subr.mxu0 0.0
    %3077 = vmatpush1.msra.mxu0 %v1470
    %3078 = vmatprep.subr.mxu0 0.0
    %3079 = vmatpush1.msra.mxu0 %v1472
    %3080 = vmatprep.subr.mxu0 0.0
    %3081 = vmatpush1.msra.mxu0 %v1474
    %3082 = vmatprep.subr.mxu0 0.0
    %3083 = vmatpush1.msra.mxu0 0.0
    %3084 = vmatprep.subr.mxu0 0.0
    %3085 = vmatpush1.msra.mxu0 0.0
    %3086 = vmatprep.subr.mxu0 0.0
    %3087 = vmatpush1.msra.mxu0 0.0
    %3088 = vmatprep.subr.mxu0 0.0
    %3089 = vmatpush1.msra.mxu0 0.0
    %3090 = vmatprep.subr.mxu0 0.0
    %3091 = vmatpush1.msra.mxu0 0.0
    %3092 = vmatprep.subr.mxu0 0.0
    %3093 = vmatpush1.msra.mxu0 0.0
    %3094 = vmatprep.subr.mxu0 0.0
    %3095 = vmatpush1.msra.mxu0 0.0
    %3096 = vmatprep.subr.mxu0 0.0
    %3097 = vmatpush1.msra.mxu0 0.0
    %3098 = vmatprep.subr.mxu0 0.0
    %3099 = vmatpush1.msra.mxu0 0.0
    %3100 = vmatprep.subr.mxu0 0.0
    %3101 = vmatpush1.msra.mxu0 0.0
    %3102 = vmatprep.subr.mxu0 0.0
    %3103 = vmatpush1.msra.mxu0 0.0
    %3104 = vmatprep.subr.mxu0 0.0
    %3105 = vmatpush1.msra.mxu0 0.0
    %3106 = vmatprep.subr.mxu0 0.0
    %3107 = vmatpush1.msra.mxu0 0.0
    %3108 = vmatprep.subr.mxu0 0.0
    %3109 = vmatpush1.msra.mxu0 0.0
    %3110 = vmatprep.subr.mxu0 0.0
    %3111 = vmatpush1.msra.mxu0 0.0
    %3112 = vmatprep.subr.mxu0 0.0
    %3113 = vmatpush1.msra.mxu0 0.0
    %3114 = vmatprep.subr.mxu0 0.0
    %3115 = vmatpush1.msra.mxu0 0.0
    %3116 = vmatprep.subr.mxu0 0.0
    %3117 = vmatpush1.msra.mxu0 0.0
    %3118 = vmatprep.subr.mxu0 0.0
    %3119 = vmatpush1.msra.mxu0 0.0
    %3120 = vmatprep.subr.mxu0 0.0
    %3121 = vmatpush1.msra.mxu0 0.0
    %3122 = vmatprep.subr.mxu0 0.0
    %3123 = vmatpush1.msra.mxu0 0.0
    %3124 = vmatprep.subr.mxu0 0.0
    %3125 = vmatpush1.msra.mxu0 0.0
    %3126 = vmatprep.subr.mxu0 0.0
    %3127 = vmatpush1.msra.mxu0 0.0
    %3128 = vmatprep.subr.mxu0 0.0
    %3129 = vmatpush1.msra.mxu0 0.0
    %3130 = vmatprep.subr.mxu0 0.0
    %3131 = vmatpush1.msra.mxu0 0.0
    %3132 = vmatprep.subr.mxu0 0.0
    %3133 = vmatpush1.msra.mxu0 0.0
    %3134 = vmatprep.subr.mxu0 0.0
    %3135 = vmatpush1.msra.mxu0 0.0
    %3136 = vmatprep.subr.mxu0 0.0
    %3137 = vmatpush1.msra.mxu0 0.0
    %3138 = vmatprep.mubr.f32.mxu0 0.0
    %3139 = vmatmul.mubr.f32.gmra.mrb[0].mxu0 %v3072
    %v3140 = vpop.f32.mrb[0].mxu0
    %v3141 = vadd.f32 %v1480, %v3140
    %v3142 = vpop.f32.mrb[0].mxu0
    %3143 = vdwg.mxu0
    %v3144 = vmax.f32 %v3141, 0.0
    %v3146 = vsel %vm147, %v3144, 0
    %3148 = vmatprep.subr.mxu0 0.0
    %3149 = vmatpush1.msra.mxu0 %v1305
    %3150 = vmatprep.subr.mxu0 0.0
    %3151 = vmatpush1.msra.mxu0 %v1309
    %3152 = vmatprep.subr.mxu0 0.0
    %3153 = vmatpush1.msra.mxu0 %v1313
    %3154 = vmatprep.subr.mxu0 0.0
    %3155 = vmatpush1.msra.mxu0 %v1317
    %3156 = vmatprep.subr.mxu0 0.0
    %3157 = vmatpush1.msra.mxu0 0.0
    %3158 = vmatprep.subr.mxu0 0.0
    %3159 = vmatpush1.msra.mxu0 0.0
    %3160 = vmatprep.subr.mxu0 0.0
    %3161 = vmatpush1.msra.mxu0 0.0
    %3162 = vmatprep.subr.mxu0 0.0
    %3163 = vmatpush1.msra.mxu0 0.0
    %3164 = vmatprep.subr.mxu0 0.0
    %3165 = vmatpush1.msra.mxu0 0.0
    %3166 = vmatprep.subr.mxu0 0.0
    %3167 = vmatpush1.msra.mxu0 0.0
    %3168 = vmatprep.subr.mxu0 0.0
    %3169 = vmatpush1.msra.mxu0 0.0
    %3170 = vmatprep.subr.mxu0 0.0
    %3171 = vmatpush1.msra.mxu0 0.0
    %3172 = vmatprep.subr.mxu0 0.0
    %3173 = vmatpush1.msra.mxu0 0.0
    %3174 = vmatprep.subr.mxu0 0.0
    %3175 = vmatpush1.msra.mxu0 0.0
    %3176 = vmatprep.subr.mxu0 0.0
    %3177 = vmatpush1.msra.mxu0 0.0
    %3178 = vmatprep.subr.mxu0 0.0
    %3179 = vmatpush1.msra.mxu0 0.0
    %3180 = vmatprep.subr.mxu0 0.0
    %3181 = vmatpush1.msra.mxu0 0.0
    %3182 = vmatprep.subr.mxu0 0.0
    %3183 = vmatpush1.msra.mxu0 0.0
    %3184 = vmatprep.subr.mxu0 0.0
    %3185 = vmatpush1.msra.mxu0 0.0
    %3186 = vmatprep.subr.mxu0 0.0
    %3187 = vmatpush1.msra.mxu0 0.0
    %3188 = vmatprep.subr.mxu0 0.0
    %3189 = vmatpush1.msra.mxu0 0.0
    %3190 = vmatprep.subr.mxu0 0.0
    %3191 = vmatpush1.msra.mxu0 0.0
    %3192 = vmatprep.subr.mxu0 0.0
    %3193 = vmatpush1.msra.mxu0 0.0
    %3194 = vmatprep.subr.mxu0 0.0
    %3195 = vmatpush1.msra.mxu0 0.0
    %3196 = vmatprep.subr.mxu0 0.0
    %3197 = vmatpush1.msra.mxu0 0.0
    %3198 = vmatprep.subr.mxu0 0.0
    %3199 = vmatpush1.msra.mxu0 0.0
    %3200 = vmatprep.subr.mxu0 0.0
    %3201 = vmatpush1.msra.mxu0 0.0
    %3202 = vmatprep.subr.mxu0 0.0
    %3203 = vmatpush1.msra.mxu0 0.0
    %3204 = vmatprep.subr.mxu0 0.0
    %3205 = vmatpush1.msra.mxu0 0.0
    %3206 = vmatprep.subr.mxu0 0.0
    %3207 = vmatpush1.msra.mxu0 0.0
    %3208 = vmatprep.subr.mxu0 0.0
    %3209 = vmatpush1.msra.mxu0 0.0
    %3210 = vmatprep.subr.mxu0 0.0
    %3211 = vmatpush1.msra.mxu0 0.0
    %3212 = vmatprep.mubr.f32.mxu0 0.0
    %3213 = vmatmul.mubr.f32.gmra.mrb[0].mxu0 %v3146
    %v3214 = vpop.f32.mrb[0].mxu0
    %v3215 = vadd.f32 0.0, %v3214
    %v3216 = vpop.f32.mrb[0].mxu0
    %3217 = vdwg.mxu0
    %3219 = vrot.lane.b32.xlu0 %v3215, 32
    %v3220 = vpop.permute.xlu0 %3219
    %v3222 = vadd.f32 %v3045, %v3220
    %v3223 = vadd.f32 %v3222, %v1480
    %3224 = vst.msk [vmem:[#allocation4] sm:$0xf] %vm979, %v2724
    %3225 = vst.msk [vmem:[#allocation4 + $0x4] sm:$0xf] %vm979, %v2726
    %v3227 = vcombine.high %v3223, %v3223
    %3228 = vrot.lane.b32.xlu0 %v3223, 96
    %v3229 = vpop.permute.xlu0 %3228
    %3230 = vrot.lane.b32.xlu0 %v3227, 96
    %v3231 = vpop.permute.xlu0 %3230
    %vm3234 = vcmask 257024
    %3235 = vst.msk [vmem:[#allocation6] sm:$0xf] %vm3234, %v3229
    %3236 = vst.msk [vmem:[#allocation6 + $0x4] sm:$0xf] %vm3234, %v3231
    // Predicated region
    $region38: #{slot_image_forward.1} parent=1 // pred_check
      _
    $region39: #{slot_image_forward.1} parent=1 // pred_check_branch
      %3238 = sbr.rel (0) target = $region41
    $region40: #{slot_image_forward.1} parent=1 // pred_region
      %s3240 = ssub.s32 512, 512
      %3241 = vsyncadd [#allocation3], %s3240
      %s3242 = sshll.u32 [#allocation2], 4
      %s3243 = int_to_ptr.vmem [resolvable:$true] %s3242
      %3248 = dma.vmem_to_hbm [thread:$0]  %s3243, 512, %s9, [#allocation3], 128, 128, 8
    $region41: #{slot_image_forward.1} parent=1 // pred_fallthru
      _
    // Predicated region
    $region42: #{slot_image_forward.1} parent=1 // pred_check
      _
    $region43: #{slot_image_forward.1} parent=1 // pred_check_branch
      %3250 = sbr.rel (0) target = $region45
    $region44: #{slot_image_forward.1} parent=1 // pred_region
      %s3252 = ssub.s32 128, 128
      %3253 = vsyncadd [#allocation5], %s3252
      %s3254 = sshll.u32 [#allocation4], 4
      %s3255 = int_to_ptr.vmem [resolvable:$true] %s3254
      %3260 = dma.vmem_to_hbm [thread:$0]  %s3255, 128, %s10, [#allocation5], 64, 64, 4
    $region45: #{slot_image_forward.1} parent=1 // pred_fallthru
      _
    // Predicated region
    $region46: #{slot_image_forward.1} parent=1 // pred_check
      _
    $region47: #{slot_image_forward.1} parent=1 // pred_check_branch
      %3262 = sbr.rel (0) target = $region49
    $region48: #{slot_image_forward.1} parent=1 // pred_region
      %s3264 = ssub.s32 128, 128
      %3265 = vsyncadd [#allocation5], %s3264
      %s3266 = sshll.u32 [#allocation6], 4
      %s3267 = int_to_ptr.vmem [resolvable:$true] %s3266
      %3272 = dma.vmem_to_hbm [thread:$0]  %s3267, 128, %s11, [#allocation5], 64, 64, 4
    $region49: #{slot_image_forward.1} parent=1 // pred_fallthru
      _
    // Predicated region
    $region50: #{slot_image_forward.1} parent=1 // pred_check
      _
    $region51: #{slot_image_forward.1} parent=1 // pred_check_branch
      %3274 = sbr.rel (0) target = $region53
    $region52: #{slot_image_forward.1} parent=1 // pred_region
      %3275 = dma.done [#allocation3], 512
    $region53: #{slot_image_forward.1} parent=1 // pred_fallthru
      _
    // Predicated region
    $region54: #{slot_image_forward.1} parent=1 // pred_check
      _
    $region55: #{slot_image_forward.1} parent=1 // pred_check_branch
      %3277 = sbr.rel (0) target = $region57
    $region56: #{slot_image_forward.1} parent=1 // pred_region
      %3278 = dma.done [#allocation5], 128
    $region57: #{slot_image_forward.1} parent=1 // pred_fallthru
      _
    // Predicated region
    $region58: #{slot_image_forward.1} parent=1 // pred_check
      _
    $region59: #{slot_image_forward.1} parent=1 // pred_check_branch
      %3280 = sbr.rel (0) target = $region61
    $region60: #{slot_image_forward.1} parent=1 // pred_region
      %3281 = dma.done [#allocation5], 128
    $region61: #{slot_image_forward.1} parent=1 // pred_fallthru
      _
    %3282 = vsyncpa [#allocation3], 1
    %3283 = vsyncpa [#allocation5], 1

</llo_original>
